<compile_context>
chip_gen: v7x
topology: tpu7x:2x2x1
jax: 0.10.0
libtpu: 0.0.40
codegen_flags: <defaults>
</compile_context>

<pallas_src>
import math
import functools

import jax
import jax.numpy as jnp
from jax import lax
from jax.experimental import pallas as pl
from jax.experimental.pallas import tpu as pltpu


# ----------------------------- Pallas kernel --------------------------------
def self_attention_kernel(
    xq_ref,            # (1, TQ, D)  query-row block of the input (also residual)
    xkv_ref,           # (1, S,  D)  full sequence (K/V projection at qi == 0 only)
    wq_ref, bq_ref,    # (D, D) bf16 (pre-scaled by 1/sqrt(hd)), (1, D) f32
    wkv_ref, bkv_ref,  # (D, 2D) bf16, (1, 2D) f32   [K | V] fused
    wd_ref, bd_ref,    # (D, D) bf16, (1, D) f32
    gamma_ref, beta_ref,  # LayerNorm scale / shift, (1, D) f32
    o_ref,             # (1, TQ, D)  output block
    kv_ref,            # VMEM scratch (2, H, S, hd) compute_dtype  [K | V], head-major
    *, num_heads, head_size, eps, compute_dtype, exp_dtype,
):
    H, hd = num_heads, head_size
    D = H * hd

    # ---- K/V projection: once per batch row, carried across query tiles ----
    @pl.when(pl.program_id(1) == 0)
    def _compute_kv():
        xkv = xkv_ref[0].astype(compute_dtype)                      # (S, D)
        kv = jnp.dot(xkv, wkv_ref[...],
                     preferred_element_type=jnp.float32) + bkv_ref[...]  # (S, 2D) f32
        S = kv.shape[0]
        k = kv[:, :D].reshape(S, H, hd)
        v = kv[:, D:].reshape(S, H, hd)
        # store head-major so per-query-tile steps need no K/V rearrangement
        kv_ref[0] = jnp.transpose(k, (1, 0, 2)).astype(compute_dtype)    # (H, S, hd)
        kv_ref[1] = jnp.transpose(v, (1, 0, 2)).astype(compute_dtype)    # (H, S, hd)

    xq = xq_ref[0]                                                  # (TQ, D)
    xq_c = xq.astype(compute_dtype)

    # ---- Q projection (1/sqrt(hd) already folded into wq / bq) ----
    q = jnp.dot(xq_c, wq_ref[...],
                preferred_element_type=jnp.float32) + bq_ref[...]   # (TQ, D) f32
    TQ = q.shape[0]
    qh = jnp.transpose(q.reshape(TQ, H, hd), (1, 0, 2)).astype(compute_dtype)  # (H,TQ,hd)

    kh = kv_ref[0]                                                  # (H, S, hd) bf16
    vh = kv_ref[1]                                                  # (H, S, hd) bf16

    # ---- scores: batch-leading dot_general, f32 accumulation ----
    scores = jnp.einsum("hqd,hkd->hqk", qh, kh,
                        preferred_element_type=jnp.float32)         # (H, TQ, S)

    # ---- softmax over keys; normalization deferred to the small context ----
    m = jnp.max(scores, axis=-1, keepdims=True)                     # (H, TQ, 1) f32
    p = jnp.exp((scores - m).astype(exp_dtype))                     # (H, TQ, S) <= 1
    denom = jnp.sum(p, axis=-1, keepdims=True, dtype=jnp.float32)   # (H, TQ, 1) f32
    # attn_dropout: identity (eval mode)

    ctx = jnp.einsum("hqk,hkd->hqd", p.astype(compute_dtype), vh,
                     preferred_element_type=jnp.float32)            # (H, TQ, hd) f32
    ctx = ctx * pl.reciprocal(denom, approx=True)                   # deferred softmax norm
    ctx = jnp.transpose(ctx, (1, 0, 2)).reshape(TQ, D)              # (TQ, D) f32

    # ---- output dense projection ----
    hidden = jnp.dot(ctx.astype(compute_dtype), wd_ref[...],
                     preferred_element_type=jnp.float32) + bd_ref[...]
    # out_dropout: identity (eval mode)

    # ---- residual + LayerNorm (last dim), f32 statistics ----
    y = hidden + xq.astype(jnp.float32)
    u = jnp.mean(y, axis=-1, keepdims=True)
    d = y - u
    var = jnp.mean(d * d, axis=-1, keepdims=True)
    out = gamma_ref[...] * (d * lax.rsqrt(var + eps)) + beta_ref[...]

    o_ref[0] = out.astype(o_ref.dtype)


# --------------------------- per-chip heuristics ------------------------------
def _tpu_generation():
    try:
        kind = jax.devices()[0].device_kind.lower()
    except Exception:
        return None
    for g in (7, 6, 5, 4, 3, 2):
        if f"v{g}" in kind:
            return g
    return None


def _pick_vmem_limit_bytes(gen):
    cap = None
    try:
        cap = pltpu.get_tpu_info().vmem_capacity_bytes
    except Exception:
        cap = None
    if cap is None:
        # v7x has 64 MiB / TensorCore; v5e/v6e have 128 MiB.
        cap = 64 * 1024 * 1024 if (gen is not None and gen >= 7) else 128 * 1024 * 1024
    return min(96 * 1024 * 1024, (cap * 3) // 4)


# ------------------------------- wrapper -------------------------------------
def self_attention(x, params, *, num_heads, eps=1e-12,
                   compute_dtype=jnp.bfloat16, tq=None, cast_inputs=True):
    B, S, D = x.shape
    assert D % num_heads == 0
    head_size = D // num_heads

    gen = _tpu_generation()
    # bf16 exp is a win on v6e/v7x (bf16 EUP); keep f32 exp on v5e / unknown.
    exp_dtype = compute_dtype if (gen is not None and gen >= 6) else jnp.float32

    # Query-tile size: full S for short sequences; otherwise a multiple of 16
    # (bf16 sublane packing).  Smaller default on v7x's 64 MiB VMEM budget.
    if tq is None:
        if S <= 512:
            tq = S
        else:
            target = 256 if (gen is not None and gen >= 7) else 512
            tq = max((t for t in range(target, 15, -16) if S % t == 0), default=S)
    assert S % tq == 0 and (tq == S or tq % 16 == 0)

    out_dtype = x.dtype
    if cast_inputs:
        # Halves x DMA / VMEM; residual add & LayerNorm stats remain f32 in-kernel.
        x = x.astype(compute_dtype)

    # Pack / cast weights once on the host side of the call:
    #  - matmul weights in compute_dtype (bf16) -> halves DMA + VMEM
    #  - 1/sqrt(head_size) folded into wq / bq (removes the (H,TQ,S) scale mul)
    #  - K and V weights fused into a single (D, 2D) matrix
    scale = 1.0 / math.sqrt(head_size)
    wq = (params["wq"] * scale).astype(compute_dtype)
    bq = (params["bq"] * scale).astype(jnp.float32)
    wkv = jnp.concatenate([params["wk"], params["wv"]], axis=1).astype(compute_dtype)
    bkv = jnp.concatenate([params["bk"], params["bv"]], axis=1).astype(jnp.float32)
    wd = params["wd"].astype(compute_dtype)
    bd = params["bd"].astype(jnp.float32)
    gamma = params["gamma"].astype(jnp.float32)
    beta = params["beta"].astype(jnp.float32)

    kernel = functools.partial(
        self_attention_kernel,
        num_heads=num_heads, head_size=head_size, eps=eps,
        compute_dtype=compute_dtype, exp_dtype=exp_dtype,
    )

    grid = (B, S // tq)
    vmem_limit = _pick_vmem_limit_bytes(gen)

    def build(single_buffer_consts):
        const_kwargs = (
            dict(pipeline_mode=pl.Buffered(1)) if single_buffer_consts else {}
        )

        def const_spec(shape):
            n = len(shape)
            return pl.BlockSpec(shape, lambda b, qi, _n=n: (0,) * _n, **const_kwargs)

        return pl.pallas_call(
            kernel,
            out_shape=jax.ShapeDtypeStruct((B, S, D), out_dtype),
            grid_spec=pltpu.PrefetchScalarGridSpec(
                num_scalar_prefetch=0,
                grid=grid,
                in_specs=[
                    pl.BlockSpec((1, tq, D), lambda b, qi: (b, qi, 0)),  # x (query rows)
                    pl.BlockSpec((1, S, D), lambda b, qi: (b, 0, 0)),    # x (full, K/V)
                    const_spec((D, D)),        # wq (pre-scaled)
                    const_spec((1, D)),        # bq (pre-scaled)
                    const_spec((D, 2 * D)),    # wkv
                    const_spec((1, 2 * D)),    # bkv
                    const_spec((D, D)),        # wd
                    const_spec((1, D)),        # bd
                    const_spec((1, D)),        # gamma
                    const_spec((1, D)),        # beta
                ],
                out_specs=pl.BlockSpec((1, tq, D), lambda b, qi: (b, qi, 0)),
                scratch_shapes=[
                    # K/V carried across query tiles of the same batch row.
                    pltpu.VMEM((2, num_heads, S, head_size), compute_dtype),
                ],
            ),
            compiler_params=pltpu.CompilerParams(
                # qi MUST be "arbitrary": the KV scratch is carried across it.
                dimension_semantics=("parallel", "arbitrary"),
                vmem_limit_bytes=vmem_limit,
            ),
        )

    args = (x, x, wq, bq, wkv, bkv, wd, bd, gamma, beta)
    try:
        out = build(True)(*args)
        return jax.block_until_ready(out)
    except Exception:
        # pipeline_mode=pl.Buffered(1) unsupported on this jax build:
        # fall back to default (double-buffered) constant-operand specs.
        return build(False)(*args)


# -------------------------- pure-JAX reference --------------------------------
def self_attention_ref(x, params, *, num_heads, eps=1e-12):
    B, S, D = x.shape
    hd = D // num_heads

    def lin(a, w, b):
        return a @ w + b

    q = lin(x, params["wq"], params["bq"])
    k = lin(x, params["wk"], params["bk"])
    v = lin(x, params["wv"], params["bv"])

    def heads(t):  # (B,S,D) -> (B,H,S,hd)
        return t.reshape(B, S, num_heads, hd).transpose(0, 2, 1, 3)

    qh, kh, vh = heads(q), heads(k), heads(v)
    scores = jnp.einsum("bhqd,bhkd->bhqk", qh, kh) / math.sqrt(hd)
    probs = jax.nn.softmax(scores, axis=-1)
    ctx = jnp.einsum("bhqk,bhkd->bhqd", probs, vh)
    ctx = ctx.transpose(0, 2, 1, 3).reshape(B, S, D)
    hidden = lin(ctx, params["wd"], params["bd"])
    y = hidden + x
    u = jnp.mean(y, -1, keepdims=True)
    s = jnp.mean((y - u) ** 2, -1, keepdims=True)
    y = (y - u) / jnp.sqrt(s + eps)
    return params["gamma"] * y + params["beta"]


# --------------------------------- main ---------------------------------------
if __name__ == "__main__":
    # Small shapes consistent with the module: input_size == hidden_size for the
    # residual, hidden % heads == 0.  (D=32 < 128 is test-only; production BERT
    # D >= 768 is lane-dense.)
    B, S, D, H = 2, 8, 32, 4

    key = jax.random.PRNGKey(0)
    keys = jax.random.split(key, 10)

    def init_w(k):
        return jax.random.normal(k, (D, D), jnp.float32) * 0.05

    params = {
        "wq": init_w(keys[0]), "bq": jax.random.normal(keys[1], (1, D), jnp.float32) * 0.01,
        "wk": init_w(keys[2]), "bk": jax.random.normal(keys[3], (1, D), jnp.float32) * 0.01,
        "wv": init_w(keys[4]), "bv": jax.random.normal(keys[5], (1, D), jnp.float32) * 0.01,
        "wd": init_w(keys[6]), "bd": jax.random.normal(keys[7], (1, D), jnp.float32) * 0.01,
        "gamma": jnp.ones((1, D), jnp.float32),
        "beta": jnp.zeros((1, D), jnp.float32),
    }

    x = jax.random.normal(keys[8], (B, S, D), jnp.float32)

    out = self_attention(x, params, num_heads=H)
    out = jax.block_until_ready(out)

    ref = self_attention_ref(x, params, num_heads=H)
    assert out.shape == (B, S, D)
    # tolerance accounts for bf16 matmul operands / bf16 exp / bf16 x residual
    # and the approx EUP reciprocal in the deferred softmax normalization
    assert jnp.allclose(out, ref, atol=3e-2, rtol=3e-2), "mismatch vs pure-JAX reference"

    print("KERNEL_OK")
</pallas_src>

<mosaic_0001>
module attributes {stable_mosaic.version = 11 : i64} {
  func.func @self_attention_kernel(%arg0: i32, %arg1: i32, %arg2: memref<1x8x32xbf16, #tpu.memory_space<vmem>>, %arg3: memref<1x8x32xbf16, #tpu.memory_space<vmem>>, %arg4: memref<32x32xbf16, #tpu.memory_space<vmem>>, %arg5: memref<1x32xf32, #tpu.memory_space<vmem>>, %arg6: memref<32x64xbf16, #tpu.memory_space<vmem>>, %arg7: memref<1x64xf32, #tpu.memory_space<vmem>>, %arg8: memref<32x32xbf16, #tpu.memory_space<vmem>>, %arg9: memref<1x32xf32, #tpu.memory_space<vmem>>, %arg10: memref<1x32xf32, #tpu.memory_space<vmem>>, %arg11: memref<1x32xf32, #tpu.memory_space<vmem>>, %arg12: memref<1x8x32xf32, #tpu.memory_space<vmem>>, %arg13: memref<2x4x8x8xbf16, #tpu.memory_space<vmem>>) attributes {dimension_semantics = [#tpu.dimension_semantics<parallel>, #tpu.dimension_semantics<arbitrary>], iteration_bounds = array<i64: 2, 1>, scalar_prefetch = 0 : i64, scratch_operands = 1 : i64, tpu.core_type = #tpu.core_type<tc>, window_params = [{transform_indices = @transform_0, window_bounds = array<i64: 1, 8, 32>}, {transform_indices = @transform_1, window_bounds = array<i64: 1, 8, 32>}, {pipeline_mode = #tpu.pipeline_mode<synchronous>, transform_indices = @transform_2, window_bounds = array<i64: 32, 32>}, {pipeline_mode = #tpu.pipeline_mode<synchronous>, transform_indices = @transform_3, window_bounds = array<i64: 1, 32>}, {pipeline_mode = #tpu.pipeline_mode<synchronous>, transform_indices = @transform_4, window_bounds = array<i64: 32, 64>}, {pipeline_mode = #tpu.pipeline_mode<synchronous>, transform_indices = @transform_5, window_bounds = array<i64: 1, 64>}, {pipeline_mode = #tpu.pipeline_mode<synchronous>, transform_indices = @transform_6, window_bounds = array<i64: 32, 32>}, {pipeline_mode = #tpu.pipeline_mode<synchronous>, transform_indices = @transform_7, window_bounds = array<i64: 1, 32>}, {pipeline_mode = #tpu.pipeline_mode<synchronous>, transform_indices = @transform_8, window_bounds = array<i64: 1, 32>}, {pipeline_mode = #tpu.pipeline_mode<synchronous>, transform_indices = @transform_9, window_bounds = array<i64: 1, 32>}, {transform_indices = @transform_10, window_bounds = array<i64: 1, 8, 32>}]} {
    %c0_i32 = arith.constant 0 : i32
    %0 = arith.cmpi eq, %arg1, %c0_i32 : i32
    %1 = arith.extui %0 : i1 to i32
    %c0_i32_0 = arith.constant 0 : i32
    %2 = arith.cmpi ne, %1, %c0_i32_0 : i32
    scf.if %2 {
      %c0_35 = arith.constant 0 : index
      %c0_36 = arith.constant 0 : index
      %c0_37 = arith.constant 0 : index
      %65 = vector.load %arg3[%c0_35, %c0_36, %c0_37] : memref<1x8x32xbf16, #tpu.memory_space<vmem>>, vector<1x8x32xbf16>
      %66 = vector.shape_cast %65 : vector<1x8x32xbf16> to vector<8x32xbf16>
      %c0_38 = arith.constant 0 : index
      %c0_39 = arith.constant 0 : index
      %67 = vector.load %arg6[%c0_38, %c0_39] : memref<32x64xbf16, #tpu.memory_space<vmem>>, vector<32x64xbf16>
      %cst_40 = arith.constant dense<0.000000e+00> : vector<8x64xf32>
      %68 = tpu.matmul %66, %67, %cst_40 {dimension_numbers = #tpu.dot_dimension_numbers<[1], [0], [0], [1], [0, 0, 1, 1], [], []>} : vector<8x32xbf16>, vector<32x64xbf16>, vector<8x64xf32> -> vector<8x64xf32>
      %c0_41 = arith.constant 0 : index
      %c0_42 = arith.constant 0 : index
      %69 = vector.load %arg7[%c0_41, %c0_42] : memref<1x64xf32, #tpu.memory_space<vmem>>, vector<1x64xf32>
      %70 = vector.broadcast %69 : vector<1x64xf32> to vector<8x64xf32>
      %71 = arith.addf %68, %70 : vector<8x64xf32>
      %72 = vector.extract_strided_slice %71 {offsets = [0, 0], sizes = [8, 32], strides = [1, 1]} : vector<8x64xf32> to vector<8x32xf32>
      %73 = vector.shape_cast %72 : vector<8x32xf32> to vector<8x4x8xf32>
      %74 = vector.extract_strided_slice %71 {offsets = [0, 32], sizes = [8, 32], strides = [1, 1]} : vector<8x64xf32> to vector<8x32xf32>
      %75 = vector.shape_cast %74 : vector<8x32xf32> to vector<8x4x8xf32>
      %76 = tpu.transpose %73, [1, 0, 2] : vector<8x4x8xf32> -> vector<4x8x8xf32>
      %77 = arith.truncf %76 : vector<4x8x8xf32> to vector<4x8x8xbf16>
      %c0_43 = arith.constant 0 : index
      %c0_44 = arith.constant 0 : index
      %c0_45 = arith.constant 0 : index
      %c0_46 = arith.constant 0 : index
      %78 = vector.load %arg13[%c0_43, %c0_44, %c0_45, %c0_46] : memref<2x4x8x8xbf16, #tpu.memory_space<vmem>>, vector<1x4x8x8xbf16>
      %79 = vector.shape_cast %78 : vector<1x4x8x8xbf16> to vector<4x8x8xbf16>
      %80 = vector.shape_cast %77 : vector<4x8x8xbf16> to vector<1x4x8x8xbf16>
      tpu.vector_store %arg13[%c0_43, %c0_44, %c0_45, %c0_46], %80 {strides = array<i32>} : memref<2x4x8x8xbf16, #tpu.memory_space<vmem>>, vector<1x4x8x8xbf16>,
      %81 = tpu.transpose %75, [1, 0, 2] : vector<8x4x8xf32> -> vector<4x8x8xf32>
      %82 = arith.truncf %81 : vector<4x8x8xf32> to vector<4x8x8xbf16>
      %c1_47 = arith.constant 1 : index
      %c0_48 = arith.constant 0 : index
      %c0_49 = arith.constant 0 : index
      %c0_50 = arith.constant 0 : index
      %83 = vector.load %arg13[%c1_47, %c0_48, %c0_49, %c0_50] : memref<2x4x8x8xbf16, #tpu.memory_space<vmem>>, vector<1x4x8x8xbf16>
      %84 = vector.shape_cast %83 : vector<1x4x8x8xbf16> to vector<4x8x8xbf16>
      %85 = vector.shape_cast %82 : vector<4x8x8xbf16> to vector<1x4x8x8xbf16>
      tpu.vector_store %arg13[%c1_47, %c0_48, %c0_49, %c0_50], %85 {strides = array<i32>} : memref<2x4x8x8xbf16, #tpu.memory_space<vmem>>, vector<1x4x8x8xbf16>,
    } else {
    }
    %c0 = arith.constant 0 : index
    %c0_1 = arith.constant 0 : index
    %c0_2 = arith.constant 0 : index
    %3 = vector.load %arg2[%c0, %c0_1, %c0_2] : memref<1x8x32xbf16, #tpu.memory_space<vmem>>, vector<1x8x32xbf16>
    %4 = vector.shape_cast %3 : vector<1x8x32xbf16> to vector<8x32xbf16>
    %c0_3 = arith.constant 0 : index
    %c0_4 = arith.constant 0 : index
    %5 = vector.load %arg4[%c0_3, %c0_4] : memref<32x32xbf16, #tpu.memory_space<vmem>>, vector<32x32xbf16>
    %cst = arith.constant dense<0.000000e+00> : vector<8x32xf32>
    %6 = tpu.matmul %4, %5, %cst {dimension_numbers = #tpu.dot_dimension_numbers<[1], [0], [0], [1], [0, 0, 1, 1], [], []>} : vector<8x32xbf16>, vector<32x32xbf16>, vector<8x32xf32> -> vector<8x32xf32>
    %c0_5 = arith.constant 0 : index
    %c0_6 = arith.constant 0 : index
    %7 = vector.load %arg5[%c0_5, %c0_6] : memref<1x32xf32, #tpu.memory_space<vmem>>, vector<1x32xf32>
    %8 = vector.broadcast %7 : vector<1x32xf32> to vector<8x32xf32>
    %9 = arith.addf %6, %8 : vector<8x32xf32>
    %10 = vector.shape_cast %9 : vector<8x32xf32> to vector<8x4x8xf32>
    %11 = tpu.transpose %10, [1, 0, 2] : vector<8x4x8xf32> -> vector<4x8x8xf32>
    %12 = arith.truncf %11 : vector<4x8x8xf32> to vector<4x8x8xbf16>
    %c0_7 = arith.constant 0 : index
    %c0_8 = arith.constant 0 : index
    %c0_9 = arith.constant 0 : index
    %c0_10 = arith.constant 0 : index
    %13 = vector.load %arg13[%c0_7, %c0_8, %c0_9, %c0_10] : memref<2x4x8x8xbf16, #tpu.memory_space<vmem>>, vector<1x4x8x8xbf16>
    %14 = vector.shape_cast %13 : vector<1x4x8x8xbf16> to vector<4x8x8xbf16>
    %c1 = arith.constant 1 : index
    %c0_11 = arith.constant 0 : index
    %c0_12 = arith.constant 0 : index
    %c0_13 = arith.constant 0 : index
    %15 = vector.load %arg13[%c1, %c0_11, %c0_12, %c0_13] : memref<2x4x8x8xbf16, #tpu.memory_space<vmem>>, vector<1x4x8x8xbf16>
    %16 = vector.shape_cast %15 : vector<1x4x8x8xbf16> to vector<4x8x8xbf16>
    "tpu.trace_start"() <{level = 10 : i32, message = "hqd,hkd->hqk"}> : () -> ()
    %cst_14 = arith.constant dense<0.000000e+00> : vector<4x8x8xf32>
    %17 = tpu.matmul %12, %14, %cst_14 {dimension_numbers = #tpu.dot_dimension_numbers<[2], [2], [1], [1], [0, 0, 0, 1, 1, 1], [0], [0]>} : vector<4x8x8xbf16>, vector<4x8x8xbf16>, vector<4x8x8xf32> -> vector<4x8x8xf32>
    "tpu.trace_stop"() : () -> ()
    %cst_15 = arith.constant dense<0xFF800000> : vector<4x8xf32>
    %18 = vector.multi_reduction <maximumf>, %17, %cst_15 [2] : vector<4x8x8xf32> to vector<4x8xf32>
    %19 = vector.shape_cast %18 : vector<4x8xf32> to vector<4x8x1xf32>
    %20 = vector.broadcast %19 : vector<4x8x1xf32> to vector<4x8x8xf32>
    %21 = arith.subf %17, %20 : vector<4x8x8xf32>
    %22 = math.exp %21 : vector<4x8x8xf32>
    %cst_16 = arith.constant dense<0.000000e+00> : vector<4x8xf32>
    %23 = vector.multi_reduction <add>, %22, %cst_16 [2] : vector<4x8x8xf32> to vector<4x8xf32>
    %24 = vector.shape_cast %23 : vector<4x8xf32> to vector<4x8x1xf32>
    %25 = arith.truncf %22 : vector<4x8x8xf32> to vector<4x8x8xbf16>
    "tpu.trace_start"() <{level = 10 : i32, message = "hqk,hkd->hqd"}> : () -> ()
    %cst_17 = arith.constant dense<0.000000e+00> : vector<4x8x8xf32>
    %26 = tpu.matmul %25, %16, %cst_17 {dimension_numbers = #tpu.dot_dimension_numbers<[2], [1], [1], [2], [0, 0, 0, 1, 1, 2], [0], [0]>} : vector<4x8x8xbf16>, vector<4x8x8xbf16>, vector<4x8x8xf32> -> vector<4x8x8xf32>
    "tpu.trace_stop"() : () -> ()
    %27 = tpu.reciprocal %24 {approx = true} : vector<4x8x1xf32> -> vector<4x8x1xf32>
    %28 = vector.broadcast %27 : vector<4x8x1xf32> to vector<4x8x8xf32>
    %29 = arith.mulf %26, %28 : vector<4x8x8xf32>
    %30 = tpu.transpose %29, [1, 0, 2] : vector<4x8x8xf32> -> vector<8x4x8xf32>
    %31 = vector.shape_cast %30 : vector<8x4x8xf32> to vector<8x32xf32>
    %32 = arith.truncf %31 : vector<8x32xf32> to vector<8x32xbf16>
    %c0_18 = arith.constant 0 : index
    %c0_19 = arith.constant 0 : index
    %33 = vector.load %arg8[%c0_18, %c0_19] : memref<32x32xbf16, #tpu.memory_space<vmem>>, vector<32x32xbf16>
    %cst_20 = arith.constant dense<0.000000e+00> : vector<8x32xf32>
    %34 = tpu.matmul %32, %33, %cst_20 {dimension_numbers = #tpu.dot_dimension_numbers<[1], [0], [0], [1], [0, 0, 1, 1], [], []>} : vector<8x32xbf16>, vector<32x32xbf16>, vector<8x32xf32> -> vector<8x32xf32>
    %c0_21 = arith.constant 0 : index
    %c0_22 = arith.constant 0 : index
    %35 = vector.load %arg9[%c0_21, %c0_22] : memref<1x32xf32, #tpu.memory_space<vmem>>, vector<1x32xf32>
    %36 = vector.broadcast %35 : vector<1x32xf32> to vector<8x32xf32>
    %37 = arith.addf %34, %36 : vector<8x32xf32>
    %38 = arith.extf %4 : vector<8x32xbf16> to vector<8x32xf32>
    %39 = arith.addf %37, %38 : vector<8x32xf32>
    %cst_23 = arith.constant dense<0.000000e+00> : vector<8xf32>
    %40 = vector.multi_reduction <add>, %39, %cst_23 [1] : vector<8x32xf32> to vector<8xf32>
    %41 = vector.shape_cast %40 : vector<8xf32> to vector<8x1xf32>
    %cst_24 = arith.constant 3.200000e+01 : f32
    %42 = vector.broadcast %cst_24 : f32 to vector<8x1xf32>
    %43 = arith.divf %41, %42 : vector<8x1xf32>
    %44 = vector.broadcast %43 : vector<8x1xf32> to vector<8x32xf32>
    %45 = arith.subf %39, %44 : vector<8x32xf32>
    %46 = arith.mulf %45, %45 : vector<8x32xf32>
    %cst_25 = arith.constant dense<0.000000e+00> : vector<8xf32>
    %47 = vector.multi_reduction <add>, %46, %cst_25 [1] : vector<8x32xf32> to vector<8xf32>
    %48 = vector.shape_cast %47 : vector<8xf32> to vector<8x1xf32>
    %cst_26 = arith.constant 3.200000e+01 : f32
    %49 = vector.broadcast %cst_26 : f32 to vector<8x1xf32>
    %50 = arith.divf %48, %49 : vector<8x1xf32>
    %c0_27 = arith.constant 0 : index
    %c0_28 = arith.constant 0 : index
    %51 = vector.load %arg10[%c0_27, %c0_28] : memref<1x32xf32, #tpu.memory_space<vmem>>, vector<1x32xf32>
    %cst_29 = arith.constant 9.99999996E-13 : f32
    %52 = vector.broadcast %cst_29 : f32 to vector<8x1xf32>
    %53 = arith.addf %50, %52 : vector<8x1xf32>
    %54 = math.rsqrt %53 : vector<8x1xf32>
    %55 = vector.broadcast %54 : vector<8x1xf32> to vector<8x32xf32>
    %56 = arith.mulf %45, %55 : vector<8x32xf32>
    %57 = vector.broadcast %51 : vector<1x32xf32> to vector<8x32xf32>
    %58 = arith.mulf %57, %56 : vector<8x32xf32>
    %c0_30 = arith.constant 0 : index
    %c0_31 = arith.constant 0 : index
    %59 = vector.load %arg11[%c0_30, %c0_31] : memref<1x32xf32, #tpu.memory_space<vmem>>, vector<1x32xf32>
    %60 = vector.broadcast %59 : vector<1x32xf32> to vector<8x32xf32>
    %61 = arith.addf %58, %60 : vector<8x32xf32>
    %c0_32 = arith.constant 0 : index
    %c0_33 = arith.constant 0 : index
    %c0_34 = arith.constant 0 : index
    %62 = vector.load %arg12[%c0_32, %c0_33, %c0_34] : memref<1x8x32xf32, #tpu.memory_space<vmem>>, vector<1x8x32xf32>
    %63 = vector.shape_cast %62 : vector<1x8x32xf32> to vector<8x32xf32>
    %64 = vector.shape_cast %61 : vector<8x32xf32> to vector<1x8x32xf32>
    tpu.vector_store %arg12[%c0_32, %c0_33, %c0_34], %64 {strides = array<i32>} : memref<1x8x32xf32, #tpu.memory_space<vmem>>, vector<1x8x32xf32>,
    return
  }
  func.func @transform_0(%arg0: i32, %arg1: i32) -> (i32, i32, i32) {
    %c0_i32 = arith.constant 0 : i32
    %c0_i32_0 = arith.constant 0 : i32
    return %arg0, %arg1, %c0_i32 : i32, i32, i32
  }
  func.func @transform_1(%arg0: i32, %arg1: i32) -> (i32, i32, i32) {
    %c0_i32 = arith.constant 0 : i32
    %c0_i32_0 = arith.constant 0 : i32
    %c0_i32_1 = arith.constant 0 : i32
    return %arg0, %c0_i32, %c0_i32_0 : i32, i32, i32
  }
  func.func @transform_2(%arg0: i32, %arg1: i32) -> (i32, i32) {
    %c0_i32 = arith.constant 0 : i32
    %c0_i32_0 = arith.constant 0 : i32
    %c0_i32_1 = arith.constant 0 : i32
    return %c0_i32, %c0_i32_0 : i32, i32
  }
  func.func @transform_3(%arg0: i32, %arg1: i32) -> (i32, i32) {
    %c0_i32 = arith.constant 0 : i32
    %c0_i32_0 = arith.constant 0 : i32
    %c0_i32_1 = arith.constant 0 : i32
    return %c0_i32, %c0_i32_0 : i32, i32
  }
  func.func @transform_4(%arg0: i32, %arg1: i32) -> (i32, i32) {
    %c0_i32 = arith.constant 0 : i32
    %c0_i32_0 = arith.constant 0 : i32
    %c0_i32_1 = arith.constant 0 : i32
    return %c0_i32, %c0_i32_0 : i32, i32
  }
  func.func @transform_5(%arg0: i32, %arg1: i32) -> (i32, i32) {
    %c0_i32 = arith.constant 0 : i32
    %c0_i32_0 = arith.constant 0 : i32
    %c0_i32_1 = arith.constant 0 : i32
    return %c0_i32, %c0_i32_0 : i32, i32
  }
  func.func @transform_6(%arg0: i32, %arg1: i32) -> (i32, i32) {
    %c0_i32 = arith.constant 0 : i32
    %c0_i32_0 = arith.constant 0 : i32
    %c0_i32_1 = arith.constant 0 : i32
    return %c0_i32, %c0_i32_0 : i32, i32
  }
  func.func @transform_7(%arg0: i32, %arg1: i32) -> (i32, i32) {
    %c0_i32 = arith.constant 0 : i32
    %c0_i32_0 = arith.constant 0 : i32
    %c0_i32_1 = arith.constant 0 : i32
    return %c0_i32, %c0_i32_0 : i32, i32
  }
  func.func @transform_8(%arg0: i32, %arg1: i32) -> (i32, i32) {
    %c0_i32 = arith.constant 0 : i32
    %c0_i32_0 = arith.constant 0 : i32
    %c0_i32_1 = arith.constant 0 : i32
    return %c0_i32, %c0_i32_0 : i32, i32
  }
  func.func @transform_9(%arg0: i32, %arg1: i32) -> (i32, i32) {
    %c0_i32 = arith.constant 0 : i32
    %c0_i32_0 = arith.constant 0 : i32
    %c0_i32_1 = arith.constant 0 : i32
    return %c0_i32, %c0_i32_0 : i32, i32
  }
  func.func @transform_10(%arg0: i32, %arg1: i32) -> (i32, i32, i32) {
    %c0_i32 = arith.constant 0 : i32
    %c0_i32_0 = arith.constant 0 : i32
    return %arg0, %arg1, %c0_i32 : i32, i32, i32
  }
}

module attributes {stable_mosaic.version = 11 : i64} {
  func.func @self_attention_kernel(%arg0: i32, %arg1: i32, %arg2: memref<1x8x32xbf16, #tpu.memory_space<vmem>>, %arg3: memref<1x8x32xbf16, #tpu.memory_space<vmem>>, %arg4: memref<32x32xbf16, #tpu.memory_space<vmem>>, %arg5: memref<1x32xf32, #tpu.memory_space<vmem>>, %arg6: memref<32x64xbf16, #tpu.memory_space<vmem>>, %arg7: memref<1x64xf32, #tpu.memory_space<vmem>>, %arg8: memref<32x32xbf16, #tpu.memory_space<vmem>>, %arg9: memref<1x32xf32, #tpu.memory_space<vmem>>, %arg10: memref<1x32xf32, #tpu.memory_space<vmem>>, %arg11: memref<1x32xf32, #tpu.memory_space<vmem>>, %arg12: memref<1x8x32xf32, #tpu.memory_space<vmem>>, %arg13: memref<2x4x8x8xbf16, #tpu.memory_space<vmem>>) attributes {dimension_semantics = [#tpu.dimension_semantics<parallel>, #tpu.dimension_semantics<arbitrary>], iteration_bounds = array<i64: 2, 1>, scalar_prefetch = 0 : i64, scratch_operands = 1 : i64, tpu.core_type = #tpu.core_type<tc>, window_params = [{transform_indices = @transform_0, window_bounds = array<i64: 1, 8, 32>}, {transform_indices = @transform_1, window_bounds = array<i64: 1, 8, 32>}, {pipeline_mode = #tpu.pipeline_mode<synchronous>, transform_indices = @transform_2, window_bounds = array<i64: 32, 32>}, {pipeline_mode = #tpu.pipeline_mode<synchronous>, transform_indices = @transform_3, window_bounds = array<i64: 1, 32>}, {pipeline_mode = #tpu.pipeline_mode<synchronous>, transform_indices = @transform_4, window_bounds = array<i64: 32, 64>}, {pipeline_mode = #tpu.pipeline_mode<synchronous>, transform_indices = @transform_5, window_bounds = array<i64: 1, 64>}, {pipeline_mode = #tpu.pipeline_mode<synchronous>, transform_indices = @transform_6, window_bounds = array<i64: 32, 32>}, {pipeline_mode = #tpu.pipeline_mode<synchronous>, transform_indices = @transform_7, window_bounds = array<i64: 1, 32>}, {pipeline_mode = #tpu.pipeline_mode<synchronous>, transform_indices = @transform_8, window_bounds = array<i64: 1, 32>}, {pipeline_mode = #tpu.pipeline_mode<synchronous>, transform_indices = @transform_9, window_bounds = array<i64: 1, 32>}, {transform_indices = @transform_10, window_bounds = array<i64: 1, 8, 32>}]} {
    %c0_i32 = arith.constant 0 : i32
    %0 = arith.cmpi eq, %arg1, %c0_i32 : i32
    %1 = arith.extui %0 : i1 to i32
    %c0_i32_0 = arith.constant 0 : i32
    %2 = arith.cmpi ne, %1, %c0_i32_0 : i32
    scf.if %2 {
      %c0_35 = arith.constant 0 : index
      %c0_36 = arith.constant 0 : index
      %c0_37 = arith.constant 0 : index
      %65 = vector.load %arg3[%c0_35, %c0_36, %c0_37] : memref<1x8x32xbf16, #tpu.memory_space<vmem>>, vector<1x8x32xbf16>
      %66 = vector.shape_cast %65 : vector<1x8x32xbf16> to vector<8x32xbf16>
      %c0_38 = arith.constant 0 : index
      %c0_39 = arith.constant 0 : index
      %67 = vector.load %arg6[%c0_38, %c0_39] : memref<32x64xbf16, #tpu.memory_space<vmem>>, vector<32x64xbf16>
      %cst_40 = arith.constant dense<0.000000e+00> : vector<8x64xf32>
      %68 = tpu.matmul %66, %67, %cst_40 {dimension_numbers = #tpu.dot_dimension_numbers<[1], [0], [0], [1], [0, 0, 1, 1], [], []>} : vector<8x32xbf16>, vector<32x64xbf16>, vector<8x64xf32> -> vector<8x64xf32>
      %c0_41 = arith.constant 0 : index
      %c0_42 = arith.constant 0 : index
      %69 = vector.load %arg7[%c0_41, %c0_42] : memref<1x64xf32, #tpu.memory_space<vmem>>, vector<1x64xf32>
      %70 = vector.broadcast %69 : vector<1x64xf32> to vector<8x64xf32>
      %71 = arith.addf %68, %70 : vector<8x64xf32>
      %72 = vector.extract_strided_slice %71 {offsets = [0, 0], sizes = [8, 32], strides = [1, 1]} : vector<8x64xf32> to vector<8x32xf32>
      %73 = vector.shape_cast %72 : vector<8x32xf32> to vector<8x4x8xf32>
      %74 = vector.extract_strided_slice %71 {offsets = [0, 32], sizes = [8, 32], strides = [1, 1]} : vector<8x64xf32> to vector<8x32xf32>
      %75 = vector.shape_cast %74 : vector<8x32xf32> to vector<8x4x8xf32>
      %76 = tpu.transpose %73, [1, 0, 2] : vector<8x4x8xf32> -> vector<4x8x8xf32>
      %77 = arith.truncf %76 : vector<4x8x8xf32> to vector<4x8x8xbf16>
      %c0_43 = arith.constant 0 : index
      %c0_44 = arith.constant 0 : index
      %c0_45 = arith.constant 0 : index
      %c0_46 = arith.constant 0 : index
      %78 = vector.load %arg13[%c0_43, %c0_44, %c0_45, %c0_46] : memref<2x4x8x8xbf16, #tpu.memory_space<vmem>>, vector<1x4x8x8xbf16>
      %79 = vector.shape_cast %78 : vector<1x4x8x8xbf16> to vector<4x8x8xbf16>
      %80 = vector.shape_cast %77 : vector<4x8x8xbf16> to vector<1x4x8x8xbf16>
      tpu.vector_store %arg13[%c0_43, %c0_44, %c0_45, %c0_46], %80 {strides = array<i32>} : memref<2x4x8x8xbf16, #tpu.memory_space<vmem>>, vector<1x4x8x8xbf16>,
      %81 = tpu.transpose %75, [1, 0, 2] : vector<8x4x8xf32> -> vector<4x8x8xf32>
      %82 = arith.truncf %81 : vector<4x8x8xf32> to vector<4x8x8xbf16>
      %c1_47 = arith.constant 1 : index
      %c0_48 = arith.constant 0 : index
      %c0_49 = arith.constant 0 : index
      %c0_50 = arith.constant 0 : index
      %83 = vector.load %arg13[%c1_47, %c0_48, %c0_49, %c0_50] : memref<2x4x8x8xbf16, #tpu.memory_space<vmem>>, vector<1x4x8x8xbf16>
      %84 = vector.shape_cast %83 : vector<1x4x8x8xbf16> to vector<4x8x8xbf16>
      %85 = vector.shape_cast %82 : vector<4x8x8xbf16> to vector<1x4x8x8xbf16>
      tpu.vector_store %arg13[%c1_47, %c0_48, %c0_49, %c0_50], %85 {strides = array<i32>} : memref<2x4x8x8xbf16, #tpu.memory_space<vmem>>, vector<1x4x8x8xbf16>,
    } else {
    }
    %c0 = arith.constant 0 : index
    %c0_1 = arith.constant 0 : index
    %c0_2 = arith.constant 0 : index
    %3 = vector.load %arg2[%c0, %c0_1, %c0_2] : memref<1x8x32xbf16, #tpu.memory_space<vmem>>, vector<1x8x32xbf16>
    %4 = vector.shape_cast %3 : vector<1x8x32xbf16> to vector<8x32xbf16>
    %c0_3 = arith.constant 0 : index
    %c0_4 = arith.constant 0 : index
    %5 = vector.load %arg4[%c0_3, %c0_4] : memref<32x32xbf16, #tpu.memory_space<vmem>>, vector<32x32xbf16>
    %cst = arith.constant dense<0.000000e+00> : vector<8x32xf32>
    %6 = tpu.matmul %4, %5, %cst {dimension_numbers = #tpu.dot_dimension_numbers<[1], [0], [0], [1], [0, 0, 1, 1], [], []>} : vector<8x32xbf16>, vector<32x32xbf16>, vector<8x32xf32> -> vector<8x32xf32>
    %c0_5 = arith.constant 0 : index
    %c0_6 = arith.constant 0 : index
    %7 = vector.load %arg5[%c0_5, %c0_6] : memref<1x32xf32, #tpu.memory_space<vmem>>, vector<1x32xf32>
    %8 = vector.broadcast %7 : vector<1x32xf32> to vector<8x32xf32>
    %9 = arith.addf %6, %8 : vector<8x32xf32>
    %10 = vector.shape_cast %9 : vector<8x32xf32> to vector<8x4x8xf32>
    %11 = tpu.transpose %10, [1, 0, 2] : vector<8x4x8xf32> -> vector<4x8x8xf32>
    %12 = arith.truncf %11 : vector<4x8x8xf32> to vector<4x8x8xbf16>
    %c0_7 = arith.constant 0 : index
    %c0_8 = arith.constant 0 : index
    %c0_9 = arith.constant 0 : index
    %c0_10 = arith.constant 0 : index
    %13 = vector.load %arg13[%c0_7, %c0_8, %c0_9, %c0_10] : memref<2x4x8x8xbf16, #tpu.memory_space<vmem>>, vector<1x4x8x8xbf16>
    %14 = vector.shape_cast %13 : vector<1x4x8x8xbf16> to vector<4x8x8xbf16>
    %c1 = arith.constant 1 : index
    %c0_11 = arith.constant 0 : index
    %c0_12 = arith.constant 0 : index
    %c0_13 = arith.constant 0 : index
    %15 = vector.load %arg13[%c1, %c0_11, %c0_12, %c0_13] : memref<2x4x8x8xbf16, #tpu.memory_space<vmem>>, vector<1x4x8x8xbf16>
    %16 = vector.shape_cast %15 : vector<1x4x8x8xbf16> to vector<4x8x8xbf16>
    "tpu.trace_start"() <{level = 10 : i32, message = "hqd,hkd->hqk"}> : () -> ()
    %cst_14 = arith.constant dense<0.000000e+00> : vector<4x8x8xf32>
    %17 = tpu.matmul %12, %14, %cst_14 {dimension_numbers = #tpu.dot_dimension_numbers<[2], [2], [1], [1], [0, 0, 0, 1, 1, 1], [0], [0]>} : vector<4x8x8xbf16>, vector<4x8x8xbf16>, vector<4x8x8xf32> -> vector<4x8x8xf32>
    "tpu.trace_stop"() : () -> ()
    %cst_15 = arith.constant dense<0xFF800000> : vector<4x8xf32>
    %18 = vector.multi_reduction <maximumf>, %17, %cst_15 [2] : vector<4x8x8xf32> to vector<4x8xf32>
    %19 = vector.shape_cast %18 : vector<4x8xf32> to vector<4x8x1xf32>
    %20 = vector.broadcast %19 : vector<4x8x1xf32> to vector<4x8x8xf32>
    %21 = arith.subf %17, %20 : vector<4x8x8xf32>
    %22 = math.exp %21 : vector<4x8x8xf32>
    %cst_16 = arith.constant dense<0.000000e+00> : vector<4x8xf32>
    %23 = vector.multi_reduction <add>, %22, %cst_16 [2] : vector<4x8x8xf32> to vector<4x8xf32>
    %24 = vector.shape_cast %23 : vector<4x8xf32> to vector<4x8x1xf32>
    %25 = arith.truncf %22 : vector<4x8x8xf32> to vector<4x8x8xbf16>
    "tpu.trace_start"() <{level = 10 : i32, message = "hqk,hkd->hqd"}> : () -> ()
    %cst_17 = arith.constant dense<0.000000e+00> : vector<4x8x8xf32>
    %26 = tpu.matmul %25, %16, %cst_17 {dimension_numbers = #tpu.dot_dimension_numbers<[2], [1], [1], [2], [0, 0, 0, 1, 1, 2], [0], [0]>} : vector<4x8x8xbf16>, vector<4x8x8xbf16>, vector<4x8x8xf32> -> vector<4x8x8xf32>
    "tpu.trace_stop"() : () -> ()
    %27 = tpu.reciprocal %24 {approx = true} : vector<4x8x1xf32> -> vector<4x8x1xf32>
    %28 = vector.broadcast %27 : vector<4x8x1xf32> to vector<4x8x8xf32>
    %29 = arith.mulf %26, %28 : vector<4x8x8xf32>
    %30 = tpu.transpose %29, [1, 0, 2] : vector<4x8x8xf32> -> vector<8x4x8xf32>
    %31 = vector.shape_cast %30 : vector<8x4x8xf32> to vector<8x32xf32>
    %32 = arith.truncf %31 : vector<8x32xf32> to vector<8x32xbf16>
    %c0_18 = arith.constant 0 : index
    %c0_19 = arith.constant 0 : index
    %33 = vector.load %arg8[%c0_18, %c0_19] : memref<32x32xbf16, #tpu.memory_space<vmem>>, vector<32x32xbf16>
    %cst_20 = arith.constant dense<0.000000e+00> : vector<8x32xf32>
    %34 = tpu.matmul %32, %33, %cst_20 {dimension_numbers = #tpu.dot_dimension_numbers<[1], [0], [0], [1], [0, 0, 1, 1], [], []>} : vector<8x32xbf16>, vector<32x32xbf16>, vector<8x32xf32> -> vector<8x32xf32>
    %c0_21 = arith.constant 0 : index
    %c0_22 = arith.constant 0 : index
    %35 = vector.load %arg9[%c0_21, %c0_22] : memref<1x32xf32, #tpu.memory_space<vmem>>, vector<1x32xf32>
    %36 = vector.broadcast %35 : vector<1x32xf32> to vector<8x32xf32>
    %37 = arith.addf %34, %36 : vector<8x32xf32>
    %38 = arith.extf %4 : vector<8x32xbf16> to vector<8x32xf32>
    %39 = arith.addf %37, %38 : vector<8x32xf32>
    %cst_23 = arith.constant dense<0.000000e+00> : vector<8xf32>
    %40 = vector.multi_reduction <add>, %39, %cst_23 [1] : vector<8x32xf32> to vector<8xf32>
    %41 = vector.shape_cast %40 : vector<8xf32> to vector<8x1xf32>
    %cst_24 = arith.constant 3.200000e+01 : f32
    %42 = vector.broadcast %cst_24 : f32 to vector<8x1xf32>
    %43 = arith.divf %41, %42 : vector<8x1xf32>
    %44 = vector.broadcast %43 : vector<8x1xf32> to vector<8x32xf32>
    %45 = arith.subf %39, %44 : vector<8x32xf32>
    %46 = arith.mulf %45, %45 : vector<8x32xf32>
    %cst_25 = arith.constant dense<0.000000e+00> : vector<8xf32>
    %47 = vector.multi_reduction <add>, %46, %cst_25 [1] : vector<8x32xf32> to vector<8xf32>
    %48 = vector.shape_cast %47 : vector<8xf32> to vector<8x1xf32>
    %cst_26 = arith.constant 3.200000e+01 : f32
    %49 = vector.broadcast %cst_26 : f32 to vector<8x1xf32>
    %50 = arith.divf %48, %49 : vector<8x1xf32>
    %c0_27 = arith.constant 0 : index
    %c0_28 = arith.constant 0 : index
    %51 = vector.load %arg10[%c0_27, %c0_28] : memref<1x32xf32, #tpu.memory_space<vmem>>, vector<1x32xf32>
    %cst_29 = arith.constant 9.99999996E-13 : f32
    %52 = vector.broadcast %cst_29 : f32 to vector<8x1xf32>
    %53 = arith.addf %50, %52 : vector<8x1xf32>
    %54 = math.rsqrt %53 : vector<8x1xf32>
    %55 = vector.broadcast %54 : vector<8x1xf32> to vector<8x32xf32>
    %56 = arith.mulf %45, %55 : vector<8x32xf32>
    %57 = vector.broadcast %51 : vector<1x32xf32> to vector<8x32xf32>
    %58 = arith.mulf %57, %56 : vector<8x32xf32>
    %c0_30 = arith.constant 0 : index
    %c0_31 = arith.constant 0 : index
    %59 = vector.load %arg11[%c0_30, %c0_31] : memref<1x32xf32, #tpu.memory_space<vmem>>, vector<1x32xf32>
    %60 = vector.broadcast %59 : vector<1x32xf32> to vector<8x32xf32>
    %61 = arith.addf %58, %60 : vector<8x32xf32>
    %c0_32 = arith.constant 0 : index
    %c0_33 = arith.constant 0 : index
    %c0_34 = arith.constant 0 : index
    %62 = vector.load %arg12[%c0_32, %c0_33, %c0_34] : memref<1x8x32xf32, #tpu.memory_space<vmem>>, vector<1x8x32xf32>
    %63 = vector.shape_cast %62 : vector<1x8x32xf32> to vector<8x32xf32>
    %64 = vector.shape_cast %61 : vector<8x32xf32> to vector<1x8x32xf32>
    tpu.vector_store %arg12[%c0_32, %c0_33, %c0_34], %64 {strides = array<i32>} : memref<1x8x32xf32, #tpu.memory_space<vmem>>, vector<1x8x32xf32>,
    return
  }
  func.func @transform_0(%arg0: i32, %arg1: i32) -> (i32, i32, i32) {
    %c0_i32 = arith.constant 0 : i32
    %c0_i32_0 = arith.constant 0 : i32
    return %arg0, %arg1, %c0_i32 : i32, i32, i32
  }
  func.func @transform_1(%arg0: i32, %arg1: i32) -> (i32, i32, i32) {
    %c0_i32 = arith.constant 0 : i32
    %c0_i32_0 = arith.constant 0 : i32
    %c0_i32_1 = arith.constant 0 : i32
    return %arg0, %c0_i32, %c0_i32_0 : i32, i32, i32
  }
  func.func @transform_2(%arg0: i32, %arg1: i32) -> (i32, i32) {
    %c0_i32 = arith.constant 0 : i32
    %c0_i32_0 = arith.constant 0 : i32
    %c0_i32_1 = arith.constant 0 : i32
    return %c0_i32, %c0_i32_0 : i32, i32
  }
  func.func @transform_3(%arg0: i32, %arg1: i32) -> (i32, i32) {
    %c0_i32 = arith.constant 0 : i32
    %c0_i32_0 = arith.constant 0 : i32
    %c0_i32_1 = arith.constant 0 : i32
    return %c0_i32, %c0_i32_0 : i32, i32
  }
  func.func @transform_4(%arg0: i32, %arg1: i32) -> (i32, i32) {
    %c0_i32 = arith.constant 0 : i32
    %c0_i32_0 = arith.constant 0 : i32
    %c0_i32_1 = arith.constant 0 : i32
    return %c0_i32, %c0_i32_0 : i32, i32
  }
  func.func @transform_5(%arg0: i32, %arg1: i32) -> (i32, i32) {
    %c0_i32 = arith.constant 0 : i32
    %c0_i32_0 = arith.constant 0 : i32
    %c0_i32_1 = arith.constant 0 : i32
    return %c0_i32, %c0_i32_0 : i32, i32
  }
  func.func @transform_6(%arg0: i32, %arg1: i32) -> (i32, i32) {
    %c0_i32 = arith.constant 0 : i32
    %c0_i32_0 = arith.constant 0 : i32
    %c0_i32_1 = arith.constant 0 : i32
    return %c0_i32, %c0_i32_0 : i32, i32
  }
  func.func @transform_7(%arg0: i32, %arg1: i32) -> (i32, i32) {
    %c0_i32 = arith.constant 0 : i32
    %c0_i32_0 = arith.constant 0 : i32
    %c0_i32_1 = arith.constant 0 : i32
    return %c0_i32, %c0_i32_0 : i32, i32
  }
  func.func @transform_8(%arg0: i32, %arg1: i32) -> (i32, i32) {
    %c0_i32 = arith.constant 0 : i32
    %c0_i32_0 = arith.constant 0 : i32
    %c0_i32_1 = arith.constant 0 : i32
    return %c0_i32, %c0_i32_0 : i32, i32
  }
  func.func @transform_9(%arg0: i32, %arg1: i32) -> (i32, i32) {
    %c0_i32 = arith.constant 0 : i32
    %c0_i32_0 = arith.constant 0 : i32
    %c0_i32_1 = arith.constant 0 : i32
    return %c0_i32, %c0_i32_0 : i32, i32
  }
  func.func @transform_10(%arg0: i32, %arg1: i32) -> (i32, i32, i32) {
    %c0_i32 = arith.constant 0 : i32
    %c0_i32_0 = arith.constant 0 : i32
    return %arg0, %arg1, %c0_i32 : i32, i32, i32
  }
}

</mosaic_0001>

<llo_original>
// kernel: tpu_custom_call.1
$region0: #{tpu_custom_call.1}
  #allocation0 [shape = 'u32[]', space=smem, size = 0x4, offset = 0x4, fixed_abs, tag = 'smem constant byte address 0x4 - core index']
  #allocation1 [shape = 'u32[144,128]{1,0:T(1,128)}', space=vmem, size = 0x12000, scoped, tag = 'internal scratch']
  #allocation2 [shape = 'bf16[2,4,8,8]{3,2,1,0:T(8,128)(2,1)}', space=vmem, size = 0x4000, scoped, tag = 'scratch operand']
  %s0 = inlined_call_operand.hbm [shape: bf16[2,8,32], index: 0, kind: input, shape index: {}]
  %s1 = inlined_call_operand.hbm [shape: bf16[2,8,32], index: 1, kind: input, shape index: {}]
  %s2 = inlined_call_operand.hbm [shape: bf16[32,32], index: 2, kind: input, shape index: {}]
  %s3 = inlined_call_operand.hbm [shape: f32[1,32], index: 3, kind: input, shape index: {}]
  %s4 = inlined_call_operand.hbm [shape: bf16[32,64], index: 4, kind: input, shape index: {}]
  %s5 = inlined_call_operand.hbm [shape: f32[1,64], index: 5, kind: input, shape index: {}]
  %s6 = inlined_call_operand.hbm [shape: bf16[32,32], index: 6, kind: input, shape index: {}]
  %s7 = inlined_call_operand.hbm [shape: f32[1,32], index: 7, kind: input, shape index: {}]
  %s8 = inlined_call_operand.hbm [shape: f32[1,32], index: 8, kind: input, shape index: {}]
  %s9 = inlined_call_operand.hbm [shape: f32[1,32], index: 9, kind: input, shape index: {}]
  %s10 = inlined_call_operand.hbm [shape: f32[2,8,32], index: 10, kind: output, shape index: {}]
  %s11 = sld [smem:[#allocation0]]
  $region117: #{tpu_custom_call.1} parent=0
    _
  %s13 = ssub.s32 1, %s11
  %s14 = scalar_select 0, %s13, %s11
  $region1: #{tpu_custom_call.1} parent=0
    #allocation3 [shape = 'u8[4096]{0}', space=vmem, size = 0x1000, scoped, tag = 'input window, operand 0']
    #allocation4 [shape = 's32[2]{0}', space=sflag, size = 0x8, scoped, tag = 'scoped memory for tpu_custom_call.1']
    #allocation5 [shape = 's32[2]{0}', space=sflag, size = 0x8, scoped, tag = 'scoped memory for tpu_custom_call.1']
    #allocation6 [shape = 'u8[4096]{0}', space=vmem, size = 0x1000, scoped, tag = 'input window, operand 1']
    #allocation7 [shape = 's32[2]{0}', space=sflag, size = 0x8, scoped, tag = 'scoped memory for tpu_custom_call.1']
    #allocation8 [shape = 'u8[8192]{0}', space=vmem, size = 0x2000, scoped, tag = 'input window, operand 2, single buffered']
    #allocation9 [shape = 'u8[512]{0}', space=vmem, size = 0x400, scoped, tag = 'input window, operand 3, single buffered']
    #allocation10 [shape = 's32[1]{0}', space=sflag, size = 0x4, scoped, tag = 'scoped memory for tpu_custom_call.1']
    #allocation11 [shape = 'u8[8192]{0}', space=vmem, size = 0x2000, scoped, tag = 'input window, operand 4, single buffered']
    #allocation12 [shape = 'u8[512]{0}', space=vmem, size = 0x400, scoped, tag = 'input window, operand 5, single buffered']
    #allocation13 [shape = 's32[1]{0}', space=sflag, size = 0x4, scoped, tag = 'scoped memory for tpu_custom_call.1']
    #allocation14 [shape = 'u8[8192]{0}', space=vmem, size = 0x2000, scoped, tag = 'input window, operand 6, single buffered']
    #allocation15 [shape = 'u8[512]{0}', space=vmem, size = 0x400, scoped, tag = 'input window, operand 7, single buffered']
    #allocation16 [shape = 's32[1]{0}', space=sflag, size = 0x4, scoped, tag = 'scoped memory for tpu_custom_call.1']
    #allocation17 [shape = 'u8[512]{0}', space=vmem, size = 0x400, scoped, tag = 'input window, operand 8, single buffered']
    #allocation18 [shape = 'u8[512]{0}', space=vmem, size = 0x400, scoped, tag = 'input window, operand 9, single buffered']
    #allocation19 [shape = 's32[1]{0}', space=sflag, size = 0x4, scoped, tag = 'scoped memory for tpu_custom_call.1']
    #allocation20 [shape = 'u8[8192]{0}', space=vmem, size = 0x2000, scoped, tag = 'output window, operand 0']
    %15 = vsyncpa [#allocation4], 0
    %s16 = scalar_lea.sflag [#allocation4], 1
    %17 = vsyncpa %s16, 0
    %18 = vsyncpa [#allocation7], 0
    %s19 = scalar_lea.sflag [#allocation7], 1
    %20 = vsyncpa %s19, 0
    %21 = vsyncpa [#allocation10], 0
    %22 = vsyncpa [#allocation13], 0
    %23 = vsyncpa [#allocation16], 0
    %24 = vsyncpa [#allocation19], 0
    %25 = vsyncpa [#allocation5], 0
    %s26 = scalar_lea.sflag [#allocation5], 1
    %27 = vsyncpa %s26, 0
    loop: start=0, step=1, limit=4
    $region2: #{tpu_custom_call.1} parent=1 // loop_pre_header
      _
    $region3: #{tpu_custom_call.1} parent=1 // loop_header
      %s29 = sphi 0, %s33
      %p30 = scmp.ge.s32.totalorder %s29, 4
      %s36 = sphi 0, %s48
      %s37 = sphi 0, %s44
      %s38 = sphi 0, %s36
      %s39 = sphi 0, %s37
      %s40 = sphi 0, %s38
      %s41 = sphi 0, %s39
      %s53 = sphi 0, %s55
      %s56 = sphi 0, %s53
      %s57 = sphi 0, %s56
      %s73 = sphi 0, %s57
      %s79 = sphi 0, %s81
      %s82 = sphi 0, %s79
      %s83 = sphi 0, %s82
      %s99 = sphi 0, %s83
      %s103 = sphi 0, %s103
      %s105 = sphi 0, %s103
      %s106 = sphi 0, %s105
      %s120 = sphi 0, %s106
      %s124 = sphi 0, %s124
      %s126 = sphi 0, %s124
      %s127 = sphi 0, %s126
      %s141 = sphi 0, %s127
      %s145 = sphi 0, %s145
      %s147 = sphi 0, %s145
      %s148 = sphi 0, %s147
      %s162 = sphi 0, %s148
      %s166 = sphi 0, %s166
      %s168 = sphi 0, %s166
      %s169 = sphi 0, %s168
      %s183 = sphi 0, %s169
      %s187 = sphi 0, %s187
      %s189 = sphi 0, %s187
      %s190 = sphi 0, %s189
      %s204 = sphi 0, %s190
      %s208 = sphi 0, %s208
      %s210 = sphi 0, %s208
      %s211 = sphi 0, %s210
      %s225 = sphi 0, %s211
      %s229 = sphi 0, %s229
      %s231 = sphi 0, %s229
      %s232 = sphi 0, %s231
      %s246 = sphi 0, %s232
      %s250 = sphi 0, %s250
      %s252 = sphi 0, %s250
      %s253 = sphi 0, %s252
      %s267 = sphi 0, %s253
      %s275 = sphi 0, %s277
      %s278 = sphi 0, %s275
      %s279 = sphi 0, %s278
      %s295 = sphi 0, %s279
    $region4: #{tpu_custom_call.1} parent=1 // loop_header_branch
      %32 = sbr.rel (%p30) target = $region8
    $region5: #{tpu_custom_call.1} parent=1 // loop_body
      %s34 = ssub.s32 %s29, 1
      %s35 = ssub.s32 %s29, 2
      %s42 = sadd.s32 1, %s37
      %p43 = scmp.ge.s32.totalorder %s42, 1
      %s44 = scalar_select %p43, 0, %s42
      %s45 = sadd.s32 1, %s36
      %s46 = scalar_select %p43, %s45, %s36
      %p47 = scmp.ge.s32.totalorder %s46, 2
      %s48 = scalar_select %p47, 0, %s46
      %s49 = ssub.s32 %s36, %s48
      %s50 = ssub.s32 %s37, %s44
      %s51 = sor.u32 %s49, %s50
      %p52 = scmp.eq.s32.totalorder %s51, 0
      %s54 = sadd.s32 %s53, 1
      %s55 = scalar_select %p52, %s53, %s54
      %p58 = pneg %p52
      %p59 = scmp.eq.s32.totalorder %s29, 1
      %p60 = por %p58, %p59
      %p61 = scmp.ne.s32.totalorder %s53, %s56
      %p62 = scmp.eq.s32.totalorder %s29, 0
      %p63 = por %p61, %p62
      %p64 = scmp.ne.s32.totalorder %s53, %s56
      %p65 = scmp.eq.s32.totalorder %s34, 1
      %p66 = por %p64, %p65
      %p67 = scmp.ne.s32.totalorder %s56, %s57
      %p68 = scmp.eq.s32.totalorder %s34, 0
      %p69 = por %p67, %p68
      %p70 = scmp.ne.s32.totalorder %s56, %s57
      %p71 = scmp.eq.s32.totalorder %s35, 1
      %p72 = por %p70, %p71
      %p74 = scmp.ne.s32.totalorder %s57, %s73
      %p75 = scmp.eq.s32.totalorder %s35, 0
      %p76 = por %p74, %p75
      %s77 = ssub.s32 %s36, %s48
      %p78 = scmp.eq.s32.totalorder %s77, 0
      %s80 = sadd.s32 %s79, 1
      %s81 = scalar_select %p78, %s79, %s80
      %p84 = pneg %p78
      %p85 = scmp.eq.s32.totalorder %s29, 1
      %p86 = por %p84, %p85
      %p87 = scmp.ne.s32.totalorder %s79, %s82
      %p88 = scmp.eq.s32.totalorder %s29, 0
      %p89 = por %p87, %p88
      %p90 = scmp.ne.s32.totalorder %s79, %s82
      %p91 = scmp.eq.s32.totalorder %s34, 1
      %p92 = por %p90, %p91
      %p93 = scmp.ne.s32.totalorder %s82, %s83
      %p94 = scmp.eq.s32.totalorder %s34, 0
      %p95 = por %p93, %p94
      %p96 = scmp.ne.s32.totalorder %s82, %s83
      %p97 = scmp.eq.s32.totalorder %s35, 1
      %p98 = por %p96, %p97
      %p100 = scmp.ne.s32.totalorder %s83, %s99
      %p101 = scmp.eq.s32.totalorder %s35, 0
      %p102 = por %p100, %p101
      %s104 = sadd.s32 %s103, 1
      %p107 = scmp.eq.s32.totalorder %s29, 1
      %p108 = scmp.ne.s32.totalorder %s103, %s105
      %p109 = scmp.eq.s32.totalorder %s29, 0
      %p110 = por %p108, %p109
      %p111 = scmp.ne.s32.totalorder %s103, %s105
      %p112 = scmp.eq.s32.totalorder %s34, 1
      %p113 = por %p111, %p112
      %p114 = scmp.ne.s32.totalorder %s105, %s106
      %p115 = scmp.eq.s32.totalorder %s34, 0
      %p116 = por %p114, %p115
      %p117 = scmp.ne.s32.totalorder %s105, %s106
      %p118 = scmp.eq.s32.totalorder %s35, 1
      %p119 = por %p117, %p118
      %p121 = scmp.ne.s32.totalorder %s106, %s120
      %p122 = scmp.eq.s32.totalorder %s35, 0
      %p123 = por %p121, %p122
      %s125 = sadd.s32 %s124, 1
      %p128 = scmp.eq.s32.totalorder %s29, 1
      %p129 = scmp.ne.s32.totalorder %s124, %s126
      %p130 = scmp.eq.s32.totalorder %s29, 0
      %p131 = por %p129, %p130
      %p132 = scmp.ne.s32.totalorder %s124, %s126
      %p133 = scmp.eq.s32.totalorder %s34, 1
      %p134 = por %p132, %p133
      %p135 = scmp.ne.s32.totalorder %s126, %s127
      %p136 = scmp.eq.s32.totalorder %s34, 0
      %p137 = por %p135, %p136
      %p138 = scmp.ne.s32.totalorder %s126, %s127
      %p139 = scmp.eq.s32.totalorder %s35, 1
      %p140 = por %p138, %p139
      %p142 = scmp.ne.s32.totalorder %s127, %s141
      %p143 = scmp.eq.s32.totalorder %s35, 0
      %p144 = por %p142, %p143
      %s146 = sadd.s32 %s145, 1
      %p149 = scmp.eq.s32.totalorder %s29, 1
      %p150 = scmp.ne.s32.totalorder %s145, %s147
      %p151 = scmp.eq.s32.totalorder %s29, 0
      %p152 = por %p150, %p151
      %p153 = scmp.ne.s32.totalorder %s145, %s147
      %p154 = scmp.eq.s32.totalorder %s34, 1
      %p155 = por %p153, %p154
      %p156 = scmp.ne.s32.totalorder %s147, %s148
      %p157 = scmp.eq.s32.totalorder %s34, 0
      %p158 = por %p156, %p157
      %p159 = scmp.ne.s32.totalorder %s147, %s148
      %p160 = scmp.eq.s32.totalorder %s35, 1
      %p161 = por %p159, %p160
      %p163 = scmp.ne.s32.totalorder %s148, %s162
      %p164 = scmp.eq.s32.totalorder %s35, 0
      %p165 = por %p163, %p164
      %s167 = sadd.s32 %s166, 1
      %p170 = scmp.eq.s32.totalorder %s29, 1
      %p171 = scmp.ne.s32.totalorder %s166, %s168
      %p172 = scmp.eq.s32.totalorder %s29, 0
      %p173 = por %p171, %p172
      %p174 = scmp.ne.s32.totalorder %s166, %s168
      %p175 = scmp.eq.s32.totalorder %s34, 1
      %p176 = por %p174, %p175
      %p177 = scmp.ne.s32.totalorder %s168, %s169
      %p178 = scmp.eq.s32.totalorder %s34, 0
      %p179 = por %p177, %p178
      %p180 = scmp.ne.s32.totalorder %s168, %s169
      %p181 = scmp.eq.s32.totalorder %s35, 1
      %p182 = por %p180, %p181
      %p184 = scmp.ne.s32.totalorder %s169, %s183
      %p185 = scmp.eq.s32.totalorder %s35, 0
      %p186 = por %p184, %p185
      %s188 = sadd.s32 %s187, 1
      %p191 = scmp.eq.s32.totalorder %s29, 1
      %p192 = scmp.ne.s32.totalorder %s187, %s189
      %p193 = scmp.eq.s32.totalorder %s29, 0
      %p194 = por %p192, %p193
      %p195 = scmp.ne.s32.totalorder %s187, %s189
      %p196 = scmp.eq.s32.totalorder %s34, 1
      %p197 = por %p195, %p196
      %p198 = scmp.ne.s32.totalorder %s189, %s190
      %p199 = scmp.eq.s32.totalorder %s34, 0
      %p200 = por %p198, %p199
      %p201 = scmp.ne.s32.totalorder %s189, %s190
      %p202 = scmp.eq.s32.totalorder %s35, 1
      %p203 = por %p201, %p202
      %p205 = scmp.ne.s32.totalorder %s190, %s204
      %p206 = scmp.eq.s32.totalorder %s35, 0
      %p207 = por %p205, %p206
      %s209 = sadd.s32 %s208, 1
      %p212 = scmp.eq.s32.totalorder %s29, 1
      %p213 = scmp.ne.s32.totalorder %s208, %s210
      %p214 = scmp.eq.s32.totalorder %s29, 0
      %p215 = por %p213, %p214
      %p216 = scmp.ne.s32.totalorder %s208, %s210
      %p217 = scmp.eq.s32.totalorder %s34, 1
      %p218 = por %p216, %p217
      %p219 = scmp.ne.s32.totalorder %s210, %s211
      %p220 = scmp.eq.s32.totalorder %s34, 0
      %p221 = por %p219, %p220
      %p222 = scmp.ne.s32.totalorder %s210, %s211
      %p223 = scmp.eq.s32.totalorder %s35, 1
      %p224 = por %p222, %p223
      %p226 = scmp.ne.s32.totalorder %s211, %s225
      %p227 = scmp.eq.s32.totalorder %s35, 0
      %p228 = por %p226, %p227
      %s230 = sadd.s32 %s229, 1
      %p233 = scmp.eq.s32.totalorder %s29, 1
      %p234 = scmp.ne.s32.totalorder %s229, %s231
      %p235 = scmp.eq.s32.totalorder %s29, 0
      %p236 = por %p234, %p235
      %p237 = scmp.ne.s32.totalorder %s229, %s231
      %p238 = scmp.eq.s32.totalorder %s34, 1
      %p239 = por %p237, %p238
      %p240 = scmp.ne.s32.totalorder %s231, %s232
      %p241 = scmp.eq.s32.totalorder %s34, 0
      %p242 = por %p240, %p241
      %p243 = scmp.ne.s32.totalorder %s231, %s232
      %p244 = scmp.eq.s32.totalorder %s35, 1
      %p245 = por %p243, %p244
      %p247 = scmp.ne.s32.totalorder %s232, %s246
      %p248 = scmp.eq.s32.totalorder %s35, 0
      %p249 = por %p247, %p248
      %s251 = sadd.s32 %s250, 1
      %p254 = scmp.eq.s32.totalorder %s29, 1
      %p255 = scmp.ne.s32.totalorder %s250, %s252
      %p256 = scmp.eq.s32.totalorder %s29, 0
      %p257 = por %p255, %p256
      %p258 = scmp.ne.s32.totalorder %s250, %s252
      %p259 = scmp.eq.s32.totalorder %s34, 1
      %p260 = por %p258, %p259
      %p261 = scmp.ne.s32.totalorder %s252, %s253
      %p262 = scmp.eq.s32.totalorder %s34, 0
      %p263 = por %p261, %p262
      %p264 = scmp.ne.s32.totalorder %s252, %s253
      %p265 = scmp.eq.s32.totalorder %s35, 1
      %p266 = por %p264, %p265
      %p268 = scmp.ne.s32.totalorder %s253, %s267
      %p269 = scmp.eq.s32.totalorder %s35, 0
      %p270 = por %p268, %p269
      %s271 = ssub.s32 %s36, %s48
      %s272 = ssub.s32 %s37, %s44
      %s273 = sor.u32 %s271, %s272
      %p274 = scmp.eq.s32.totalorder %s273, 0
      %s276 = sadd.s32 %s275, 1
      %s277 = scalar_select %p274, %s275, %s276
      %p280 = pneg %p274
      %p281 = scmp.eq.s32.totalorder %s29, 1
      %p282 = por %p280, %p281
      %p283 = scmp.ne.s32.totalorder %s275, %s278
      %p284 = scmp.eq.s32.totalorder %s29, 0
      %p285 = por %p283, %p284
      %p286 = scmp.ne.s32.totalorder %s275, %s278
      %p287 = scmp.eq.s32.totalorder %s34, 1
      %p288 = por %p286, %p287
      %p289 = scmp.ne.s32.totalorder %s278, %s279
      %p290 = scmp.eq.s32.totalorder %s34, 0
      %p291 = por %p289, %p290
      %p292 = scmp.ne.s32.totalorder %s278, %s279
      %p293 = scmp.eq.s32.totalorder %s35, 1
      %p294 = por %p292, %p293
      %p296 = scmp.ne.s32.totalorder %s279, %s295
      %p297 = scmp.eq.s32.totalorder %s35, 0
      %p298 = por %p296, %p297
      %p299 = scmp.le.s32.totalorder 1, %s29
      %p300 = scmp.lt.s32.totalorder %s29, 3
      %p301 = pnand %p299, %p300
      %p302 = pneg %p301
      // Predicated region
      $region9: #{tpu_custom_call.1} parent=5 // pred_check
        _
      $region10: #{tpu_custom_call.1} parent=5 // pred_check_branch
        %304 = sbr.rel (%p301) target = $region12
      $region11: #{tpu_custom_call.1} parent=5 // pred_region
        %s305 = ssub.s32 %s29, 1
        // Predicated region
        $region13: #{tpu_custom_call.1} parent=11 // pred_check
          %p306 = pneg %p116
        $region14: #{tpu_custom_call.1} parent=11 // pred_check_branch
          %308 = sbr.rel (%p306) target = $region16
        $region15: #{tpu_custom_call.1} parent=11 // pred_region
          %s310 = ssub.s32 256, 256
          %311 = vsyncadd [#allocation7], %s310
          %s312 = sshll.u32 [#allocation8], 4
          %s313 = int_to_ptr.vmem [resolvable:$true] %s312
          %318 = dma.hbm_to_vmem [thread:$0]  %s2, 256, %s313, [#allocation7], 64, 64, 4
        $region16: #{tpu_custom_call.1} parent=11 // pred_fallthru
          _
        // Predicated region
        $region17: #{tpu_custom_call.1} parent=11 // pred_check
          %p319 = pneg %p137
        $region18: #{tpu_custom_call.1} parent=11 // pred_check_branch
          %321 = sbr.rel (%p319) target = $region20
        $region19: #{tpu_custom_call.1} parent=11 // pred_region
          %s323 = ssub.s32 16, 16
          %324 = vsyncadd [#allocation10], %s323
          %s326 = sshll.u32 [#allocation9], 4
          %s327 = int_to_ptr.vmem [resolvable:$true] %s326
          %329 = dma.hbm_to_vmem [thread:$0]  %s3, 16, %s327, [#allocation10]
        $region20: #{tpu_custom_call.1} parent=11 // pred_fallthru
          _
        // Predicated region
        $region21: #{tpu_custom_call.1} parent=11 // pred_check
          %p330 = pneg %p158
        $region22: #{tpu_custom_call.1} parent=11 // pred_check_branch
          %332 = sbr.rel (%p330) target = $region24
        $region23: #{tpu_custom_call.1} parent=11 // pred_region
          %s334 = ssub.s32 256, 256
          %335 = vsyncadd [#allocation10], %s334
          %s336 = sshll.u32 [#allocation11], 4
          %s337 = int_to_ptr.vmem [resolvable:$true] %s336
          %342 = dma.hbm_to_vmem [thread:$0]  %s4, 256, %s337, [#allocation10], 64, 64, 4
        $region24: #{tpu_custom_call.1} parent=11 // pred_fallthru
          _
        // Predicated region
        $region25: #{tpu_custom_call.1} parent=11 // pred_check
          %p343 = pneg %p179
        $region26: #{tpu_custom_call.1} parent=11 // pred_check_branch
          %345 = sbr.rel (%p343) target = $region28
        $region27: #{tpu_custom_call.1} parent=11 // pred_region
          %s347 = ssub.s32 16, 16
          %348 = vsyncadd [#allocation13], %s347
          %s350 = sshll.u32 [#allocation12], 4
          %s351 = int_to_ptr.vmem [resolvable:$true] %s350
          %353 = dma.hbm_to_vmem [thread:$0]  %s5, 16, %s351, [#allocation13]
        $region28: #{tpu_custom_call.1} parent=11 // pred_fallthru
          _
        // Predicated region
        $region29: #{tpu_custom_call.1} parent=11 // pred_check
          %p354 = pneg %p200
        $region30: #{tpu_custom_call.1} parent=11 // pred_check_branch
          %356 = sbr.rel (%p354) target = $region32
        $region31: #{tpu_custom_call.1} parent=11 // pred_region
          %s358 = ssub.s32 256, 256
          %359 = vsyncadd [#allocation13], %s358
          %s360 = sshll.u32 [#allocation14], 4
          %s361 = int_to_ptr.vmem [resolvable:$true] %s360
          %366 = dma.hbm_to_vmem [thread:$0]  %s6, 256, %s361, [#allocation13], 64, 64, 4
        $region32: #{tpu_custom_call.1} parent=11 // pred_fallthru
          _
        // Predicated region
        $region33: #{tpu_custom_call.1} parent=11 // pred_check
          %p367 = pneg %p221
        $region34: #{tpu_custom_call.1} parent=11 // pred_check_branch
          %369 = sbr.rel (%p367) target = $region36
        $region35: #{tpu_custom_call.1} parent=11 // pred_region
          %s371 = ssub.s32 16, 16
          %372 = vsyncadd [#allocation16], %s371
          %s374 = sshll.u32 [#allocation15], 4
          %s375 = int_to_ptr.vmem [resolvable:$true] %s374
          %377 = dma.hbm_to_vmem [thread:$0]  %s7, 16, %s375, [#allocation16]
        $region36: #{tpu_custom_call.1} parent=11 // pred_fallthru
          _
        // Predicated region
        $region37: #{tpu_custom_call.1} parent=11 // pred_check
          %p378 = pneg %p242
        $region38: #{tpu_custom_call.1} parent=11 // pred_check_branch
          %380 = sbr.rel (%p378) target = $region40
        $region39: #{tpu_custom_call.1} parent=11 // pred_region
          %s382 = ssub.s32 16, 16
          %383 = vsyncadd [#allocation16], %s382
          %s385 = sshll.u32 [#allocation17], 4
          %s386 = int_to_ptr.vmem [resolvable:$true] %s385
          %388 = dma.hbm_to_vmem [thread:$0]  %s8, 16, %s386, [#allocation16]
        $region40: #{tpu_custom_call.1} parent=11 // pred_fallthru
          _
        // Predicated region
        $region41: #{tpu_custom_call.1} parent=11 // pred_check
          %p389 = pneg %p263
        $region42: #{tpu_custom_call.1} parent=11 // pred_check_branch
          %391 = sbr.rel (%p389) target = $region44
        $region43: #{tpu_custom_call.1} parent=11 // pred_region
          %s393 = ssub.s32 16, 16
          %394 = vsyncadd [#allocation19], %s393
          %s396 = sshll.u32 [#allocation18], 4
          %s397 = int_to_ptr.vmem [resolvable:$true] %s396
          %399 = dma.hbm_to_vmem [thread:$0]  %s9, 16, %s397, [#allocation19]
        $region44: #{tpu_custom_call.1} parent=11 // pred_fallthru
          _
      $region12: #{tpu_custom_call.1} parent=5 // pred_fallthru
        _
      %p400 = scmp.lt.s32.totalorder %s29, 2
      // Predicated region
      $region45: #{tpu_custom_call.1} parent=5 // pred_check
        %p401 = pneg %p400
      $region46: #{tpu_custom_call.1} parent=5 // pred_check_branch
        %403 = sbr.rel (%p401) target = $region48
      $region47: #{tpu_custom_call.1} parent=5 // pred_region
        // Predicated region
        $region49: #{tpu_custom_call.1} parent=47 // pred_check
          %p404 = pneg %p63
        $region50: #{tpu_custom_call.1} parent=47 // pred_check_branch
          %406 = sbr.rel (%p404) target = $region52
        $region51: #{tpu_custom_call.1} parent=47 // pred_region
          %s407 = sand.u32 %s53, 1
          %s408 = scalar_lea.sflag [#allocation4], %s407
          %s409 = sand.u32 %s53, 1
          %s410 = smul.addr %s409, 4
          %s411 = scalar_lea.vmem [#allocation3], %s410
          %s413 = ssub.s32 64, 64
          %414 = vsyncadd %s408, %s413
          %s415 = sadd.s32 %s37, %s36
          %s416 = smul.addr %s415, 64
          %s417 = scalar_lea.hbm %s0, %s416
          %s419 = sshll.u32 %s411, 4
          %s420 = int_to_ptr.vmem [resolvable:$true] %s419
          %422 = dma.hbm_to_vmem [thread:$0]  %s417, 64, %s420, %s408
        $region52: #{tpu_custom_call.1} parent=47 // pred_fallthru
          _
        // Predicated region
        $region53: #{tpu_custom_call.1} parent=47 // pred_check
          %p423 = pneg %p89
        $region54: #{tpu_custom_call.1} parent=47 // pred_check_branch
          %425 = sbr.rel (%p423) target = $region56
        $region55: #{tpu_custom_call.1} parent=47 // pred_region
          %s426 = sand.u32 %s29, 1
          %s427 = scalar_lea.sflag [#allocation7], %s426
          %s428 = sand.u32 %s79, 1
          %s429 = smul.addr %s428, 4
          %s430 = scalar_lea.vmem [#allocation6], %s429
          %s432 = ssub.s32 64, 64
          %433 = vsyncadd %s427, %s432
          %s434 = smul.addr %s36, 64
          %s435 = scalar_lea.hbm %s1, %s434
          %s437 = sshll.u32 %s430, 4
          %s438 = int_to_ptr.vmem [resolvable:$true] %s437
          %440 = dma.hbm_to_vmem [thread:$0]  %s435, 64, %s438, %s427
        $region56: #{tpu_custom_call.1} parent=47 // pred_fallthru
          _
      $region48: #{tpu_custom_call.1} parent=5 // pred_fallthru
        _
      %p441 = scmp.le.s32.totalorder 1, %s29
      %p442 = scmp.lt.s32.totalorder %s29, 3
      %p443 = pnand %p441, %p442
      %p444 = pneg %p443
      // Predicated region
      $region57: #{tpu_custom_call.1} parent=5 // pred_check
        _
      $region58: #{tpu_custom_call.1} parent=5 // pred_check_branch
        %446 = sbr.rel (%p443) target = $region60
      $region59: #{tpu_custom_call.1} parent=5 // pred_region
        %s447 = ssub.s32 %s29, 1
        %s448 = sand.u32 %s56, 1
        %s449 = scalar_lea.sflag [#allocation4], %s448
        %s450 = sand.u32 %s56, 1
        %s451 = smul.addr %s450, 4
        %s452 = scalar_lea.vmem [#allocation3], %s451
        // Predicated region
        $region61: #{tpu_custom_call.1} parent=59 // pred_check
          %p453 = pneg %p69
        $region62: #{tpu_custom_call.1} parent=59 // pred_check_branch
          %455 = sbr.rel (%p453) target = $region64
        $region63: #{tpu_custom_call.1} parent=59 // pred_region
          %456 = dma.done %s449, 64
        $region64: #{tpu_custom_call.1} parent=59 // pred_fallthru
          _
        %s457 = sand.u32 %s34, 1
        %s458 = scalar_lea.sflag [#allocation7], %s457
        %s459 = sand.u32 %s82, 1
        %s460 = smul.addr %s459, 4
        %s461 = scalar_lea.vmem [#allocation6], %s460
        // Predicated region
        $region65: #{tpu_custom_call.1} parent=59 // pred_check
          %p462 = pneg %p95
        $region66: #{tpu_custom_call.1} parent=59 // pred_check_branch
          %464 = sbr.rel (%p462) target = $region68
        $region67: #{tpu_custom_call.1} parent=59 // pred_region
          %465 = dma.done %s458, 64
        $region68: #{tpu_custom_call.1} parent=59 // pred_fallthru
          _
        // Predicated region
        $region69: #{tpu_custom_call.1} parent=59 // pred_check
          %p466 = pneg %p116
        $region70: #{tpu_custom_call.1} parent=59 // pred_check_branch
          %468 = sbr.rel (%p466) target = $region72
        $region71: #{tpu_custom_call.1} parent=59 // pred_region
          %469 = dma.done [#allocation7], 256
        $region72: #{tpu_custom_call.1} parent=59 // pred_fallthru
          _
        // Predicated region
        $region73: #{tpu_custom_call.1} parent=59 // pred_check
          %p470 = pneg %p137
        $region74: #{tpu_custom_call.1} parent=59 // pred_check_branch
          %472 = sbr.rel (%p470) target = $region76
        $region75: #{tpu_custom_call.1} parent=59 // pred_region
          %473 = dma.done [#allocation10], 16
        $region76: #{tpu_custom_call.1} parent=59 // pred_fallthru
          _
        // Predicated region
        $region77: #{tpu_custom_call.1} parent=59 // pred_check
          %p474 = pneg %p158
        $region78: #{tpu_custom_call.1} parent=59 // pred_check_branch
          %476 = sbr.rel (%p474) target = $region80
        $region79: #{tpu_custom_call.1} parent=59 // pred_region
          %477 = dma.done [#allocation10], 256
        $region80: #{tpu_custom_call.1} parent=59 // pred_fallthru
          _
        // Predicated region
        $region81: #{tpu_custom_call.1} parent=59 // pred_check
          %p478 = pneg %p179
        $region82: #{tpu_custom_call.1} parent=59 // pred_check_branch
          %480 = sbr.rel (%p478) target = $region84
        $region83: #{tpu_custom_call.1} parent=59 // pred_region
          %481 = dma.done [#allocation13], 16
        $region84: #{tpu_custom_call.1} parent=59 // pred_fallthru
          _
        // Predicated region
        $region85: #{tpu_custom_call.1} parent=59 // pred_check
          %p482 = pneg %p200
        $region86: #{tpu_custom_call.1} parent=59 // pred_check_branch
          %484 = sbr.rel (%p482) target = $region88
        $region87: #{tpu_custom_call.1} parent=59 // pred_region
          %485 = dma.done [#allocation13], 256
        $region88: #{tpu_custom_call.1} parent=59 // pred_fallthru
          _
        // Predicated region
        $region89: #{tpu_custom_call.1} parent=59 // pred_check
          %p486 = pneg %p221
        $region90: #{tpu_custom_call.1} parent=59 // pred_check_branch
          %488 = sbr.rel (%p486) target = $region92
        $region91: #{tpu_custom_call.1} parent=59 // pred_region
          %489 = dma.done [#allocation16], 16
        $region92: #{tpu_custom_call.1} parent=59 // pred_fallthru
          _
        // Predicated region
        $region93: #{tpu_custom_call.1} parent=59 // pred_check
          %p490 = pneg %p242
        $region94: #{tpu_custom_call.1} parent=59 // pred_check_branch
          %492 = sbr.rel (%p490) target = $region96
        $region95: #{tpu_custom_call.1} parent=59 // pred_region
          %493 = dma.done [#allocation16], 16
        $region96: #{tpu_custom_call.1} parent=59 // pred_fallthru
          _
        // Predicated region
        $region97: #{tpu_custom_call.1} parent=59 // pred_check
          %p494 = pneg %p263
        $region98: #{tpu_custom_call.1} parent=59 // pred_check_branch
          %496 = sbr.rel (%p494) target = $region100
        $region99: #{tpu_custom_call.1} parent=59 // pred_region
          %497 = dma.done [#allocation19], 16
        $region100: #{tpu_custom_call.1} parent=59 // pred_fallthru
          _
        %s498 = sand.u32 %s56, 1
        %s499 = scalar_lea.sflag [#allocation4], %s498
        %s500 = sand.u32 %s56, 1
        %s501 = smul.addr %s500, 4
        %s502 = scalar_lea.vmem [#allocation3], %s501
        %p503 = pneg %p69
        %p504 = pneg %p66
        %s505 = sand.u32 %s34, 1
        %s506 = scalar_lea.sflag [#allocation7], %s505
        %s507 = sand.u32 %s82, 1
        %s508 = smul.addr %s507, 4
        %s509 = scalar_lea.vmem [#allocation6], %s508
        %p510 = pneg %p95
        %p511 = pneg %p92
        %p512 = pneg %p116
        %p513 = pneg %p113
        %p514 = pneg %p137
        %p515 = pneg %p134
        %p516 = pneg %p158
        %p517 = pneg %p155
        %p518 = pneg %p179
        %p519 = pneg %p176
        %p520 = pneg %p200
        %p521 = pneg %p197
        %p522 = pneg %p221
        %p523 = pneg %p218
        %p524 = pneg %p242
        %p525 = pneg %p239
        %p526 = pneg %p263
        %p527 = pneg %p260
        %p528 = pneg %p291
        %p529 = pneg %p288
        %s530 = sand.u32 %s278, 1
        %s531 = scalar_lea.sflag [#allocation5], %s530
        %s532 = sand.u32 %s278, 1
        %s533 = smul.addr %s532, 8
        %s534 = scalar_lea.vmem [#allocation20], %s533
        %p536 = scmp.eq.s32.totalorder %s39, 0
        // Predicated region
        $region101: #{tpu_custom_call.1} parent=59 // pred_check
          %p537 = pneg %p536
        $region102: #{tpu_custom_call.1} parent=59 // pred_check_branch
          %539 = sbr.rel (%p537) target = $region104
        $region103: #{tpu_custom_call.1} parent=59 // pred_region
          %v540 = vld [vmem:[%s461] sm:$0xf]
          %v541 = vld [vmem:[#allocation11] sm:$0xf]
          %v542 = vld [vmem:[#allocation11 + $0x4] sm:$0xf]
          %v543 = vld [vmem:[#allocation11 + $0x8] sm:$0xf]
          %v544 = vld [vmem:[#allocation11 + $0xc] sm:$0xf]
          %v545 = vld [vmem:[#allocation12] sm:$0x1]
          %v547 = vlaneseq
          %v548 = vshrl.u32 %v547, 7
          %v549 = vsub.s32 0, %v548
          %v550 = vrot.slane %v545, %v549
          %v556 = vunpack.c.l.b16 %v541
          %v557 = vunpack.c.l.b16 %v542
          %v558 = vunpack.c.l.b16 %v543
          %v559 = vunpack.c.l.b16 %v544
          %v560 = vpack.c.b16 %v557, %v556
          %v561 = vpack.c.b16 %v559, %v558
          %vm564 = vcmask 261120
          %v566 = vsel %vm564, %v540, 0
          %568 = vmatprep.subr.bf16.mxu0 0
          %569 = vmatpush1.bf16.msra.mxu0 %v560
          %570 = vmatprep.subr.bf16.mxu0 0
          %571 = vmatpush1.bf16.msra.mxu0 %v561
          %572 = vmatprep.subr.bf16.mxu0 0
          %573 = vmatpush1.bf16.msra.mxu0 0
          %574 = vmatprep.subr.bf16.mxu0 0
          %575 = vmatpush1.bf16.msra.mxu0 0
          %576 = vmatprep.subr.bf16.mxu0 0
          %577 = vmatpush1.bf16.msra.mxu0 0
          %578 = vmatprep.subr.bf16.mxu0 0
          %579 = vmatpush1.bf16.msra.mxu0 0
          %580 = vmatprep.subr.bf16.mxu0 0
          %581 = vmatpush1.bf16.msra.mxu0 0
          %582 = vmatprep.subr.bf16.mxu0 0
          %583 = vmatpush1.bf16.msra.mxu0 0
          %584 = vmatprep.subr.bf16.mxu0 0
          %585 = vmatpush1.bf16.msra.mxu0 0
          %586 = vmatprep.subr.bf16.mxu0 0
          %587 = vmatpush1.bf16.msra.mxu0 0
          %588 = vmatprep.subr.bf16.mxu0 0
          %589 = vmatpush1.bf16.msra.mxu0 0
          %590 = vmatprep.subr.bf16.mxu0 0
          %591 = vmatpush1.bf16.msra.mxu0 0
          %592 = vmatprep.subr.bf16.mxu0 0
          %593 = vmatpush1.bf16.msra.mxu0 0
          %594 = vmatprep.subr.bf16.mxu0 0
          %595 = vmatpush1.bf16.msra.mxu0 0
          %596 = vmatprep.subr.bf16.mxu0 0
          %597 = vmatpush1.bf16.msra.mxu0 0
          %598 = vmatprep.subr.bf16.mxu0 0
          %599 = vmatpush1.bf16.msra.mxu0 0
          %600 = vmatprep.mubr.bf16.mxu0 0
          %601 = vmatmul.mubr.bf16.gmra.mrb[0].mxu0 %v566
          %v602 = vpop.f32.mrb[0].mxu0
          %v603 = vadd.f32 %v550, %v602
          %v604 = vpop.f32.mrb[0].mxu0
          %v605 = vpop.f32.mrb[0].mxu0
          %v606 = vpop.f32.mrb[0].mxu0
          %607 = vdwg.mxu0
          %609 = vrot.lane.b32.xlu0 %v603, 120
          %v610 = vpop.permute.xlu0 %609
          %612 = vrot.lane.b32.xlu0 %v603, 112
          %v613 = vpop.permute.xlu0 %612
          %615 = vrot.lane.b32.xlu0 %v603, 104
          %v616 = vpop.permute.xlu0 %615
          %v618 = vcombine.low %v603, %v613
          %v619 = vcombine.high %v603, %v613
          %v621 = vunpack.c.l.s4 1983009808
          %v622 = vunpack.c.0.s8 %v621
          %v623 = vlaneseq
          %v624 = vshrl.u32 %v623, 7
          %v625 = vsub.s32 %v622, %v624
          %v626 = vrot.slane %v618, %v625
          %v628 = vunpack.c.l.s4 1983009808
          %v629 = vunpack.c.0.s8 %v628
          %v630 = vlaneseq
          %v631 = vshrl.u32 %v630, 7
          %v632 = vsub.s32 %v629, %v631
          %v633 = vrot.slane %v619, %v632
          %v634 = vcombine.low %v610, %v616
          %v635 = vcombine.high %v610, %v616
          %v637 = vunpack.c.l.s4 1983009808
          %v638 = vunpack.c.0.s8 %v637
          %v639 = vlaneseq
          %v640 = vshrl.u32 %v639, 7
          %v641 = vsub.s32 %v638, %v640
          %v642 = vrot.slane %v634, %v641
          %v644 = vunpack.c.l.s4 1983009808
          %v645 = vunpack.c.0.s8 %v644
          %v646 = vlaneseq
          %v647 = vshrl.u32 %v646, 7
          %v648 = vsub.s32 %v645, %v647
          %v649 = vrot.slane %v635, %v648
          %v650 = vcombine.low %v626, %v642
          %v651 = vcombine.high %v626, %v642
          %v653 = vunpack.c.l.s4 1934713408
          %v654 = vunpack.c.0.s8 %v653
          %v655 = vlaneseq
          %v656 = vshrl.u32 %v655, 7
          %v657 = vsub.s32 %v654, %v656
          %v658 = vrot.slane %v650, %v657
          %v660 = vunpack.c.l.s4 1934713408
          %v661 = vunpack.c.0.s8 %v660
          %v662 = vlaneseq
          %v663 = vshrl.u32 %v662, 7
          %v664 = vsub.s32 %v661, %v663
          %v665 = vrot.slane %v651, %v664
          %v666 = vcombine.low %v633, %v649
          %v667 = vcombine.high %v633, %v649
          %v669 = vunpack.c.l.s4 1934713408
          %v670 = vunpack.c.0.s8 %v669
          %v671 = vlaneseq
          %v672 = vshrl.u32 %v671, 7
          %v673 = vsub.s32 %v670, %v672
          %v674 = vrot.slane %v666, %v673
          %v676 = vunpack.c.l.s4 1934713408
          %v677 = vunpack.c.0.s8 %v676
          %v678 = vlaneseq
          %v679 = vshrl.u32 %v678, 7
          %v680 = vsub.s32 %v677, %v679
          %v681 = vrot.slane %v667, %v680
          %v682 = vcombine.high %v658, 0.0
          %v683 = vcombine.high %v665, 0.0
          %v684 = vcombine.high %v674, 0.0
          %v685 = vcombine.high %v681, 0.0
          %686 = vrot.lane.b32.xlu0 %v603, 96
          %v687 = vpop.permute.xlu0 %686
          %688 = vrot.lane.b32.xlu0 %v610, 96
          %v689 = vpop.permute.xlu0 %688
          %690 = vrot.lane.b32.xlu0 %v613, 96
          %v691 = vpop.permute.xlu0 %690
          %692 = vrot.lane.b32.xlu0 %v616, 96
          %v693 = vpop.permute.xlu0 %692
          %v698 = vcombine.low %v687, %v691
          %v699 = vcombine.high %v687, %v691
          %v701 = vunpack.c.l.s4 1983009808
          %v702 = vunpack.c.0.s8 %v701
          %v703 = vlaneseq
          %v704 = vshrl.u32 %v703, 7
          %v705 = vsub.s32 %v702, %v704
          %v706 = vrot.slane %v698, %v705
          %v708 = vunpack.c.l.s4 1983009808
          %v709 = vunpack.c.0.s8 %v708
          %v710 = vlaneseq
          %v711 = vshrl.u32 %v710, 7
          %v712 = vsub.s32 %v709, %v711
          %v713 = vrot.slane %v699, %v712
          %v714 = vcombine.low %v689, %v693
          %v715 = vcombine.high %v689, %v693
          %v717 = vunpack.c.l.s4 1983009808
          %v718 = vunpack.c.0.s8 %v717
          %v719 = vlaneseq
          %v720 = vshrl.u32 %v719, 7
          %v721 = vsub.s32 %v718, %v720
          %v722 = vrot.slane %v714, %v721
          %v724 = vunpack.c.l.s4 1983009808
          %v725 = vunpack.c.0.s8 %v724
          %v726 = vlaneseq
          %v727 = vshrl.u32 %v726, 7
          %v728 = vsub.s32 %v725, %v727
          %v729 = vrot.slane %v715, %v728
          %v730 = vcombine.low %v706, %v722
          %v731 = vcombine.high %v706, %v722
          %v733 = vunpack.c.l.s4 1934713408
          %v734 = vunpack.c.0.s8 %v733
          %v735 = vlaneseq
          %v736 = vshrl.u32 %v735, 7
          %v737 = vsub.s32 %v734, %v736
          %v738 = vrot.slane %v730, %v737
          %v740 = vunpack.c.l.s4 1934713408
          %v741 = vunpack.c.0.s8 %v740
          %v742 = vlaneseq
          %v743 = vshrl.u32 %v742, 7
          %v744 = vsub.s32 %v741, %v743
          %v745 = vrot.slane %v731, %v744
          %v746 = vcombine.low %v713, %v729
          %v747 = vcombine.high %v713, %v729
          %v749 = vunpack.c.l.s4 1934713408
          %v750 = vunpack.c.0.s8 %v749
          %v751 = vlaneseq
          %v752 = vshrl.u32 %v751, 7
          %v753 = vsub.s32 %v750, %v752
          %v754 = vrot.slane %v746, %v753
          %v756 = vunpack.c.l.s4 1934713408
          %v757 = vunpack.c.0.s8 %v756
          %v758 = vlaneseq
          %v759 = vshrl.u32 %v758, 7
          %v760 = vsub.s32 %v757, %v759
          %v761 = vrot.slane %v747, %v760
          %v762 = vcombine.high %v738, 0.0
          %v763 = vcombine.high %v745, 0.0
          %v764 = vcombine.high %v754, 0.0
          %v765 = vcombine.high %v761, 0.0
          %v766 = vcombine.low %v658, %v665
          %v768 = vunpack.c.l.s4 1983009808
          %v769 = vunpack.c.0.s8 %v768
          %v770 = vlaneseq
          %v771 = vshrl.u32 %v770, 7
          %v772 = vsub.s32 %v769, %v771
          %v773 = vrot.slane %v766, %v772
          %v774 = vcombine.low %v682, %v683
          %v776 = vunpack.c.l.s4 1983009808
          %v777 = vunpack.c.0.s8 %v776
          %v778 = vlaneseq
          %v779 = vshrl.u32 %v778, 7
          %v780 = vsub.s32 %v777, %v779
          %v781 = vrot.slane %v774, %v780
          %v782 = vcombine.low %v674, %v681
          %v784 = vunpack.c.l.s4 1983009808
          %v785 = vunpack.c.0.s8 %v784
          %v786 = vlaneseq
          %v787 = vshrl.u32 %v786, 7
          %v788 = vsub.s32 %v785, %v787
          %v789 = vrot.slane %v782, %v788
          %v790 = vcombine.low %v684, %v685
          %v792 = vunpack.c.l.s4 1983009808
          %v793 = vunpack.c.0.s8 %v792
          %v794 = vlaneseq
          %v795 = vshrl.u32 %v794, 7
          %v796 = vsub.s32 %v793, %v795
          %v797 = vrot.slane %v790, %v796
          %v798 = vcombine.low %v773, %v781
          %v799 = vcombine.high %v773, %v781
          %v801 = vunpack.c.l.s4 1934713408
          %v802 = vunpack.c.0.s8 %v801
          %v803 = vlaneseq
          %v804 = vshrl.u32 %v803, 7
          %v805 = vsub.s32 %v802, %v804
          %v806 = vrot.slane %v798, %v805
          %v808 = vunpack.c.l.s4 1934713408
          %v809 = vunpack.c.0.s8 %v808
          %v810 = vlaneseq
          %v811 = vshrl.u32 %v810, 7
          %v812 = vsub.s32 %v809, %v811
          %v813 = vrot.slane %v799, %v812
          %v814 = vcombine.low %v789, %v797
          %v815 = vcombine.high %v789, %v797
          %v817 = vunpack.c.l.s4 1934713408
          %v818 = vunpack.c.0.s8 %v817
          %v819 = vlaneseq
          %v820 = vshrl.u32 %v819, 7
          %v821 = vsub.s32 %v818, %v820
          %v822 = vrot.slane %v814, %v821
          %v824 = vunpack.c.l.s4 1934713408
          %v825 = vunpack.c.0.s8 %v824
          %v826 = vlaneseq
          %v827 = vshrl.u32 %v826, 7
          %v828 = vsub.s32 %v825, %v827
          %v829 = vrot.slane %v815, %v828
          %v830 = vcombine.low %v806, %v822
          %v831 = vcombine.high %v806, %v822
          %v832 = vcombine.low %v813, %v829
          %v833 = vcombine.high %v813, %v829
          %v834 = vpack.c.bf16 %v830, %v830
          %v835 = vpack.c.bf16 %v831, %v831
          %v836 = vpack.c.bf16 %v832, %v832
          %v837 = vpack.c.bf16 %v833, %v833
          %vm838 = vcmask 60416
          %839 = vst.msk [vmem:[#allocation2] sm:$0xf] %vm838, %v834
          %840 = vst.msk [vmem:[#allocation2 + $0x4] sm:$0xf] %vm838, %v835
          %841 = vst.msk [vmem:[#allocation2 + $0x8] sm:$0xf] %vm838, %v836
          %842 = vst.msk [vmem:[#allocation2 + $0xc] sm:$0xf] %vm838, %v837
          %v843 = vcombine.low %v738, %v745
          %v845 = vunpack.c.l.s4 1983009808
          %v846 = vunpack.c.0.s8 %v845
          %v847 = vlaneseq
          %v848 = vshrl.u32 %v847, 7
          %v849 = vsub.s32 %v846, %v848
          %v850 = vrot.slane %v843, %v849
          %v851 = vcombine.low %v762, %v763
          %v853 = vunpack.c.l.s4 1983009808
          %v854 = vunpack.c.0.s8 %v853
          %v855 = vlaneseq
          %v856 = vshrl.u32 %v855, 7
          %v857 = vsub.s32 %v854, %v856
          %v858 = vrot.slane %v851, %v857
          %v859 = vcombine.low %v754, %v761
          %v861 = vunpack.c.l.s4 1983009808
          %v862 = vunpack.c.0.s8 %v861
          %v863 = vlaneseq
          %v864 = vshrl.u32 %v863, 7
          %v865 = vsub.s32 %v862, %v864
          %v866 = vrot.slane %v859, %v865
          %v867 = vcombine.low %v764, %v765
          %v869 = vunpack.c.l.s4 1983009808
          %v870 = vunpack.c.0.s8 %v869
          %v871 = vlaneseq
          %v872 = vshrl.u32 %v871, 7
          %v873 = vsub.s32 %v870, %v872
          %v874 = vrot.slane %v867, %v873
          %v875 = vcombine.low %v850, %v858
          %v876 = vcombine.high %v850, %v858
          %v878 = vunpack.c.l.s4 1934713408
          %v879 = vunpack.c.0.s8 %v878
          %v880 = vlaneseq
          %v881 = vshrl.u32 %v880, 7
          %v882 = vsub.s32 %v879, %v881
          %v883 = vrot.slane %v875, %v882
          %v885 = vunpack.c.l.s4 1934713408
          %v886 = vunpack.c.0.s8 %v885
          %v887 = vlaneseq
          %v888 = vshrl.u32 %v887, 7
          %v889 = vsub.s32 %v886, %v888
          %v890 = vrot.slane %v876, %v889
          %v891 = vcombine.low %v866, %v874
          %v892 = vcombine.high %v866, %v874
          %v894 = vunpack.c.l.s4 1934713408
          %v895 = vunpack.c.0.s8 %v894
          %v896 = vlaneseq
          %v897 = vshrl.u32 %v896, 7
          %v898 = vsub.s32 %v895, %v897
          %v899 = vrot.slane %v891, %v898
          %v901 = vunpack.c.l.s4 1934713408
          %v902 = vunpack.c.0.s8 %v901
          %v903 = vlaneseq
          %v904 = vshrl.u32 %v903, 7
          %v905 = vsub.s32 %v902, %v904
          %v906 = vrot.slane %v892, %v905
          %v907 = vcombine.low %v883, %v899
          %v908 = vcombine.high %v883, %v899
          %v909 = vcombine.low %v890, %v906
          %v910 = vcombine.high %v890, %v906
          %v911 = vpack.c.bf16 %v907, %v907
          %v912 = vpack.c.bf16 %v908, %v908
          %v913 = vpack.c.bf16 %v909, %v909
          %v914 = vpack.c.bf16 %v910, %v910
          %s915 = scalar_lea.vmem [#allocation2], 16
          %916 = vst.msk [vmem:[%s915] sm:$0xf] %vm838, %v911
          %917 = vst.msk [vmem:[%s915 + $0x4] sm:$0xf] %vm838, %v912
          %918 = vst.msk [vmem:[%s915 + $0x8] sm:$0xf] %vm838, %v913
          %919 = vst.msk [vmem:[%s915 + $0xc] sm:$0xf] %vm838, %v914
        $region104: #{tpu_custom_call.1} parent=59 // pred_fallthru
          _
        %v920 = vld [vmem:[%s452] sm:$0xf]
        %v921 = vld [vmem:[#allocation8] sm:$0xf]
        %v922 = vld [vmem:[#allocation8 + $0x4] sm:$0xf]
        %v923 = vld [vmem:[#allocation8 + $0x8] sm:$0xf]
        %v924 = vld [vmem:[#allocation8 + $0xc] sm:$0xf]
        %v925 = vld [vmem:[#allocation9] sm:$0x1]
        %v927 = vlaneseq
        %v928 = vshrl.u32 %v927, 7
        %v929 = vsub.s32 0, %v928
        %v930 = vrot.slane %v925, %v929
        %v936 = vunpack.c.l.b16 %v921
        %v937 = vunpack.c.l.b16 %v922
        %v938 = vunpack.c.l.b16 %v923
        %v939 = vunpack.c.l.b16 %v924
        %v940 = vpack.c.b16 %v937, %v936
        %v941 = vpack.c.b16 %v939, %v938
        %vm944 = vcmask 261120
        %v946 = vsel %vm944, %v920, 0
        %948 = vmatprep.subr.bf16.mxu0 0
        %949 = vmatpush1.bf16.msra.mxu0 %v940
        %950 = vmatprep.subr.bf16.mxu0 0
        %951 = vmatpush1.bf16.msra.mxu0 %v941
        %952 = vmatprep.subr.bf16.mxu0 0
        %953 = vmatpush1.bf16.msra.mxu0 0
        %954 = vmatprep.subr.bf16.mxu0 0
        %955 = vmatpush1.bf16.msra.mxu0 0
        %956 = vmatprep.subr.bf16.mxu0 0
        %957 = vmatpush1.bf16.msra.mxu0 0
        %958 = vmatprep.subr.bf16.mxu0 0
        %959 = vmatpush1.bf16.msra.mxu0 0
        %960 = vmatprep.subr.bf16.mxu0 0
        %961 = vmatpush1.bf16.msra.mxu0 0
        %962 = vmatprep.subr.bf16.mxu0 0
        %963 = vmatpush1.bf16.msra.mxu0 0
        %964 = vmatprep.subr.bf16.mxu0 0
        %965 = vmatpush1.bf16.msra.mxu0 0
        %966 = vmatprep.subr.bf16.mxu0 0
        %967 = vmatpush1.bf16.msra.mxu0 0
        %968 = vmatprep.subr.bf16.mxu0 0
        %969 = vmatpush1.bf16.msra.mxu0 0
        %970 = vmatprep.subr.bf16.mxu0 0
        %971 = vmatpush1.bf16.msra.mxu0 0
        %972 = vmatprep.subr.bf16.mxu0 0
        %973 = vmatpush1.bf16.msra.mxu0 0
        %974 = vmatprep.subr.bf16.mxu0 0
        %975 = vmatpush1.bf16.msra.mxu0 0
        %976 = vmatprep.subr.bf16.mxu0 0
        %977 = vmatpush1.bf16.msra.mxu0 0
        %978 = vmatprep.subr.bf16.mxu0 0
        %979 = vmatpush1.bf16.msra.mxu0 0
        %980 = vmatprep.mubr.bf16.mxu0 0
        %981 = vmatmul.mubr.bf16.gmra.mrb[0].mxu0 %v946
        %v982 = vpop.f32.mrb[0].mxu0
        %v983 = vadd.f32 %v930, %v982
        %v984 = vpop.f32.mrb[0].mxu0
        %v985 = vpop.f32.mrb[0].mxu0
        %v986 = vpop.f32.mrb[0].mxu0
        %987 = vdwg.mxu0
        %989 = vrot.lane.b32.xlu0 %v983, 120
        %v990 = vpop.permute.xlu0 %989
        %992 = vrot.lane.b32.xlu0 %v983, 112
        %v993 = vpop.permute.xlu0 %992
        %995 = vrot.lane.b32.xlu0 %v983, 104
        %v996 = vpop.permute.xlu0 %995
        %v998 = vcombine.low %v983, %v993
        %v999 = vcombine.high %v983, %v993
        %v1001 = vunpack.c.l.s4 1983009808
        %v1002 = vunpack.c.0.s8 %v1001
        %v1003 = vlaneseq
        %v1004 = vshrl.u32 %v1003, 7
        %v1005 = vsub.s32 %v1002, %v1004
        %v1006 = vrot.slane %v998, %v1005
        %v1008 = vunpack.c.l.s4 1983009808
        %v1009 = vunpack.c.0.s8 %v1008
        %v1010 = vlaneseq
        %v1011 = vshrl.u32 %v1010, 7
        %v1012 = vsub.s32 %v1009, %v1011
        %v1013 = vrot.slane %v999, %v1012
        %v1014 = vcombine.low %v990, %v996
        %v1015 = vcombine.high %v990, %v996
        %v1017 = vunpack.c.l.s4 1983009808
        %v1018 = vunpack.c.0.s8 %v1017
        %v1019 = vlaneseq
        %v1020 = vshrl.u32 %v1019, 7
        %v1021 = vsub.s32 %v1018, %v1020
        %v1022 = vrot.slane %v1014, %v1021
        %v1024 = vunpack.c.l.s4 1983009808
        %v1025 = vunpack.c.0.s8 %v1024
        %v1026 = vlaneseq
        %v1027 = vshrl.u32 %v1026, 7
        %v1028 = vsub.s32 %v1025, %v1027
        %v1029 = vrot.slane %v1015, %v1028
        %v1030 = vcombine.low %v1006, %v1022
        %v1031 = vcombine.high %v1006, %v1022
        %v1033 = vunpack.c.l.s4 1934713408
        %v1034 = vunpack.c.0.s8 %v1033
        %v1035 = vlaneseq
        %v1036 = vshrl.u32 %v1035, 7
        %v1037 = vsub.s32 %v1034, %v1036
        %v1038 = vrot.slane %v1030, %v1037
        %v1040 = vunpack.c.l.s4 1934713408
        %v1041 = vunpack.c.0.s8 %v1040
        %v1042 = vlaneseq
        %v1043 = vshrl.u32 %v1042, 7
        %v1044 = vsub.s32 %v1041, %v1043
        %v1045 = vrot.slane %v1031, %v1044
        %v1046 = vcombine.low %v1013, %v1029
        %v1047 = vcombine.high %v1013, %v1029
        %v1049 = vunpack.c.l.s4 1934713408
        %v1050 = vunpack.c.0.s8 %v1049
        %v1051 = vlaneseq
        %v1052 = vshrl.u32 %v1051, 7
        %v1053 = vsub.s32 %v1050, %v1052
        %v1054 = vrot.slane %v1046, %v1053
        %v1056 = vunpack.c.l.s4 1934713408
        %v1057 = vunpack.c.0.s8 %v1056
        %v1058 = vlaneseq
        %v1059 = vshrl.u32 %v1058, 7
        %v1060 = vsub.s32 %v1057, %v1059
        %v1061 = vrot.slane %v1047, %v1060
        %v1062 = vcombine.high %v1038, 0.0
        %v1063 = vcombine.high %v1045, 0.0
        %v1064 = vcombine.high %v1054, 0.0
        %v1065 = vcombine.high %v1061, 0.0
        %v1066 = vcombine.low %v1038, %v1045
        %v1068 = vunpack.c.l.s4 1983009808
        %v1069 = vunpack.c.0.s8 %v1068
        %v1070 = vlaneseq
        %v1071 = vshrl.u32 %v1070, 7
        %v1072 = vsub.s32 %v1069, %v1071
        %v1073 = vrot.slane %v1066, %v1072
        %v1074 = vcombine.low %v1062, %v1063
        %v1076 = vunpack.c.l.s4 1983009808
        %v1077 = vunpack.c.0.s8 %v1076
        %v1078 = vlaneseq
        %v1079 = vshrl.u32 %v1078, 7
        %v1080 = vsub.s32 %v1077, %v1079
        %v1081 = vrot.slane %v1074, %v1080
        %v1082 = vcombine.low %v1054, %v1061
        %v1084 = vunpack.c.l.s4 1983009808
        %v1085 = vunpack.c.0.s8 %v1084
        %v1086 = vlaneseq
        %v1087 = vshrl.u32 %v1086, 7
        %v1088 = vsub.s32 %v1085, %v1087
        %v1089 = vrot.slane %v1082, %v1088
        %v1090 = vcombine.low %v1064, %v1065
        %v1092 = vunpack.c.l.s4 1983009808
        %v1093 = vunpack.c.0.s8 %v1092
        %v1094 = vlaneseq
        %v1095 = vshrl.u32 %v1094, 7
        %v1096 = vsub.s32 %v1093, %v1095
        %v1097 = vrot.slane %v1090, %v1096
        %v1098 = vcombine.low %v1073, %v1081
        %v1099 = vcombine.high %v1073, %v1081
        %v1101 = vunpack.c.l.s4 1934713408
        %v1102 = vunpack.c.0.s8 %v1101
        %v1103 = vlaneseq
        %v1104 = vshrl.u32 %v1103, 7
        %v1105 = vsub.s32 %v1102, %v1104
        %v1106 = vrot.slane %v1098, %v1105
        %v1108 = vunpack.c.l.s4 1934713408
        %v1109 = vunpack.c.0.s8 %v1108
        %v1110 = vlaneseq
        %v1111 = vshrl.u32 %v1110, 7
        %v1112 = vsub.s32 %v1109, %v1111
        %v1113 = vrot.slane %v1099, %v1112
        %v1114 = vcombine.low %v1089, %v1097
        %v1115 = vcombine.high %v1089, %v1097
        %v1117 = vunpack.c.l.s4 1934713408
        %v1118 = vunpack.c.0.s8 %v1117
        %v1119 = vlaneseq
        %v1120 = vshrl.u32 %v1119, 7
        %v1121 = vsub.s32 %v1118, %v1120
        %v1122 = vrot.slane %v1114, %v1121
        %v1124 = vunpack.c.l.s4 1934713408
        %v1125 = vunpack.c.0.s8 %v1124
        %v1126 = vlaneseq
        %v1127 = vshrl.u32 %v1126, 7
        %v1128 = vsub.s32 %v1125, %v1127
        %v1129 = vrot.slane %v1115, %v1128
        %v1130 = vcombine.low %v1106, %v1122
        %v1131 = vcombine.high %v1106, %v1122
        %v1132 = vcombine.low %v1113, %v1129
        %v1133 = vcombine.high %v1113, %v1129
        %v1134 = vpack.c.bf16 %v1130, %v1130
        %v1135 = vpack.c.bf16 %v1131, %v1131
        %v1136 = vpack.c.bf16 %v1132, %v1132
        %v1137 = vpack.c.bf16 %v1133, %v1133
        %v1138 = vld [vmem:[#allocation2] sm:$0xf]
        %v1139 = vld [vmem:[#allocation2 + $0x4] sm:$0xf]
        %v1140 = vld [vmem:[#allocation2 + $0x8] sm:$0xf]
        %v1141 = vld [vmem:[#allocation2 + $0xc] sm:$0xf]
        %s1142 = scalar_lea.vmem [#allocation2], 16
        %v1143 = vld [vmem:[%s1142] sm:$0xf]
        %v1144 = vld [vmem:[%s1142 + $0x4] sm:$0xf]
        %v1145 = vld [vmem:[%s1142 + $0x8] sm:$0xf]
        %v1146 = vld [vmem:[%s1142 + $0xc] sm:$0xf]
        %vm1147 = vcmask 64512
        %v1149 = vsel %vm1147, %v1134, 0
        %v1152 = vsel %vm1147, %v1138, 0
        %1154 = vmatprep.subr.bf16.mxu0 0
        %1155 = vmatpush1.bf16.xpose.msra.mxu0 %v1152
        %1156 = vmatprep.subr.bf16.mxu0 0
        %1157 = vmatpush1.bf16.xpose.msra.mxu0 0
        %1158 = vmatprep.subr.bf16.mxu0 0
        %1159 = vmatpush1.bf16.xpose.msra.mxu0 0
        %1160 = vmatprep.subr.bf16.mxu0 0
        %1161 = vmatpush1.bf16.xpose.msra.mxu0 0
        %1162 = vmatprep.subr.bf16.mxu0 0
        %1163 = vmatpush1.bf16.xpose.msra.mxu0 0
        %1164 = vmatprep.subr.bf16.mxu0 0
        %1165 = vmatpush1.bf16.xpose.msra.mxu0 0
        %1166 = vmatprep.subr.bf16.mxu0 0
        %1167 = vmatpush1.bf16.xpose.msra.mxu0 0
        %1168 = vmatprep.subr.bf16.mxu0 0
        %1169 = vmatpush1.bf16.xpose.msra.mxu0 0
        %1170 = vmatprep.subr.bf16.mxu0 0
        %1171 = vmatpush1.bf16.xpose.msra.mxu0 0
        %1172 = vmatprep.subr.bf16.mxu0 0
        %1173 = vmatpush1.bf16.xpose.msra.mxu0 0
        %1174 = vmatprep.subr.bf16.mxu0 0
        %1175 = vmatpush1.bf16.xpose.msra.mxu0 0
        %1176 = vmatprep.subr.bf16.mxu0 0
        %1177 = vmatpush1.bf16.xpose.msra.mxu0 0
        %1178 = vmatprep.subr.bf16.mxu0 0
        %1179 = vmatpush1.bf16.xpose.msra.mxu0 0
        %1180 = vmatprep.subr.bf16.mxu0 0
        %1181 = vmatpush1.bf16.xpose.msra.mxu0 0
        %1182 = vmatprep.subr.bf16.mxu0 0
        %1183 = vmatpush1.bf16.xpose.msra.mxu0 0
        %1184 = vmatprep.subr.bf16.mxu0 0
        %1185 = vmatpush1.bf16.xpose.msra.mxu0 0
        %1186 = vmatprep.mubr.bf16.mxu0 0
        %1187 = vmatmul.mubr.bf16.gmra.mrb[0].mxu0 %v1149
        %v1188 = vpop.f32.mrb[0].mxu0
        %v1189 = vadd.f32 0.0, %v1188
        %v1190 = vpop.f32.mrb[0].mxu0
        %v1191 = vpop.f32.mrb[0].mxu0
        %v1192 = vpop.f32.mrb[0].mxu0
        %1193 = vdwg.mxu0
        %v1195 = vsel %vm1147, %v1135, 0
        %v1198 = vsel %vm1147, %v1139, 0
        %1200 = vmatprep.subr.bf16.mxu0 0
        %1201 = vmatpush1.bf16.xpose.msra.mxu0 %v1198
        %1202 = vmatprep.subr.bf16.mxu0 0
        %1203 = vmatpush1.bf16.xpose.msra.mxu0 0
        %1204 = vmatprep.subr.bf16.mxu0 0
        %1205 = vmatpush1.bf16.xpose.msra.mxu0 0
        %1206 = vmatprep.subr.bf16.mxu0 0
        %1207 = vmatpush1.bf16.xpose.msra.mxu0 0
        %1208 = vmatprep.subr.bf16.mxu0 0
        %1209 = vmatpush1.bf16.xpose.msra.mxu0 0
        %1210 = vmatprep.subr.bf16.mxu0 0
        %1211 = vmatpush1.bf16.xpose.msra.mxu0 0
        %1212 = vmatprep.subr.bf16.mxu0 0
        %1213 = vmatpush1.bf16.xpose.msra.mxu0 0
        %1214 = vmatprep.subr.bf16.mxu0 0
        %1215 = vmatpush1.bf16.xpose.msra.mxu0 0
        %1216 = vmatprep.subr.bf16.mxu0 0
        %1217 = vmatpush1.bf16.xpose.msra.mxu0 0
        %1218 = vmatprep.subr.bf16.mxu0 0
        %1219 = vmatpush1.bf16.xpose.msra.mxu0 0
        %1220 = vmatprep.subr.bf16.mxu0 0
        %1221 = vmatpush1.bf16.xpose.msra.mxu0 0
        %1222 = vmatprep.subr.bf16.mxu0 0
        %1223 = vmatpush1.bf16.xpose.msra.mxu0 0
        %1224 = vmatprep.subr.bf16.mxu0 0
        %1225 = vmatpush1.bf16.xpose.msra.mxu0 0
        %1226 = vmatprep.subr.bf16.mxu0 0
        %1227 = vmatpush1.bf16.xpose.msra.mxu0 0
        %1228 = vmatprep.subr.bf16.mxu0 0
        %1229 = vmatpush1.bf16.xpose.msra.mxu0 0
        %1230 = vmatprep.subr.bf16.mxu0 0
        %1231 = vmatpush1.bf16.xpose.msra.mxu0 0
        %1232 = vmatprep.mubr.bf16.mxu0 0
        %1233 = vmatmul.mubr.bf16.gmra.mrb[0].mxu0 %v1195
        %v1234 = vpop.f32.mrb[0].mxu0
        %v1235 = vadd.f32 0.0, %v1234
        %v1236 = vpop.f32.mrb[0].mxu0
        %v1237 = vpop.f32.mrb[0].mxu0
        %v1238 = vpop.f32.mrb[0].mxu0
        %1239 = vdwg.mxu0
        %v1241 = vsel %vm1147, %v1136, 0
        %v1244 = vsel %vm1147, %v1140, 0
        %1246 = vmatprep.subr.bf16.mxu0 0
        %1247 = vmatpush1.bf16.xpose.msra.mxu0 %v1244
        %1248 = vmatprep.subr.bf16.mxu0 0
        %1249 = vmatpush1.bf16.xpose.msra.mxu0 0
        %1250 = vmatprep.subr.bf16.mxu0 0
        %1251 = vmatpush1.bf16.xpose.msra.mxu0 0
        %1252 = vmatprep.subr.bf16.mxu0 0
        %1253 = vmatpush1.bf16.xpose.msra.mxu0 0
        %1254 = vmatprep.subr.bf16.mxu0 0
        %1255 = vmatpush1.bf16.xpose.msra.mxu0 0
        %1256 = vmatprep.subr.bf16.mxu0 0
        %1257 = vmatpush1.bf16.xpose.msra.mxu0 0
        %1258 = vmatprep.subr.bf16.mxu0 0
        %1259 = vmatpush1.bf16.xpose.msra.mxu0 0
        %1260 = vmatprep.subr.bf16.mxu0 0
        %1261 = vmatpush1.bf16.xpose.msra.mxu0 0
        %1262 = vmatprep.subr.bf16.mxu0 0
        %1263 = vmatpush1.bf16.xpose.msra.mxu0 0
        %1264 = vmatprep.subr.bf16.mxu0 0
        %1265 = vmatpush1.bf16.xpose.msra.mxu0 0
        %1266 = vmatprep.subr.bf16.mxu0 0
        %1267 = vmatpush1.bf16.xpose.msra.mxu0 0
        %1268 = vmatprep.subr.bf16.mxu0 0
        %1269 = vmatpush1.bf16.xpose.msra.mxu0 0
        %1270 = vmatprep.subr.bf16.mxu0 0
        %1271 = vmatpush1.bf16.xpose.msra.mxu0 0
        %1272 = vmatprep.subr.bf16.mxu0 0
        %1273 = vmatpush1.bf16.xpose.msra.mxu0 0
        %1274 = vmatprep.subr.bf16.mxu0 0
        %1275 = vmatpush1.bf16.xpose.msra.mxu0 0
        %1276 = vmatprep.subr.bf16.mxu0 0
        %1277 = vmatpush1.bf16.xpose.msra.mxu0 0
        %1278 = vmatprep.mubr.bf16.mxu0 0
        %1279 = vmatmul.mubr.bf16.gmra.mrb[0].mxu0 %v1241
        %v1280 = vpop.f32.mrb[0].mxu0
        %v1281 = vadd.f32 0.0, %v1280
        %v1282 = vpop.f32.mrb[0].mxu0
        %v1283 = vpop.f32.mrb[0].mxu0
        %v1284 = vpop.f32.mrb[0].mxu0
        %1285 = vdwg.mxu0
        %v1287 = vsel %vm1147, %v1137, 0
        %v1290 = vsel %vm1147, %v1141, 0
        %1292 = vmatprep.subr.bf16.mxu0 0
        %1293 = vmatpush1.bf16.xpose.msra.mxu0 %v1290
        %1294 = vmatprep.subr.bf16.mxu0 0
        %1295 = vmatpush1.bf16.xpose.msra.mxu0 0
        %1296 = vmatprep.subr.bf16.mxu0 0
        %1297 = vmatpush1.bf16.xpose.msra.mxu0 0
        %1298 = vmatprep.subr.bf16.mxu0 0
        %1299 = vmatpush1.bf16.xpose.msra.mxu0 0
        %1300 = vmatprep.subr.bf16.mxu0 0
        %1301 = vmatpush1.bf16.xpose.msra.mxu0 0
        %1302 = vmatprep.subr.bf16.mxu0 0
        %1303 = vmatpush1.bf16.xpose.msra.mxu0 0
        %1304 = vmatprep.subr.bf16.mxu0 0
        %1305 = vmatpush1.bf16.xpose.msra.mxu0 0
        %1306 = vmatprep.subr.bf16.mxu0 0
        %1307 = vmatpush1.bf16.xpose.msra.mxu0 0
        %1308 = vmatprep.subr.bf16.mxu0 0
        %1309 = vmatpush1.bf16.xpose.msra.mxu0 0
        %1310 = vmatprep.subr.bf16.mxu0 0
        %1311 = vmatpush1.bf16.xpose.msra.mxu0 0
        %1312 = vmatprep.subr.bf16.mxu0 0
        %1313 = vmatpush1.bf16.xpose.msra.mxu0 0
        %1314 = vmatprep.subr.bf16.mxu0 0
        %1315 = vmatpush1.bf16.xpose.msra.mxu0 0
        %1316 = vmatprep.subr.bf16.mxu0 0
        %1317 = vmatpush1.bf16.xpose.msra.mxu0 0
        %1318 = vmatprep.subr.bf16.mxu0 0
        %1319 = vmatpush1.bf16.xpose.msra.mxu0 0
        %1320 = vmatprep.subr.bf16.mxu0 0
        %1321 = vmatpush1.bf16.xpose.msra.mxu0 0
        %1322 = vmatprep.subr.bf16.mxu0 0
        %1323 = vmatpush1.bf16.xpose.msra.mxu0 0
        %1324 = vmatprep.mubr.bf16.mxu0 0
        %1325 = vmatmul.mubr.bf16.gmra.mrb[0].mxu0 %v1287
        %v1326 = vpop.f32.mrb[0].mxu0
        %v1327 = vadd.f32 0.0, %v1326
        %v1328 = vpop.f32.mrb[0].mxu0
        %v1329 = vpop.f32.mrb[0].mxu0
        %v1330 = vpop.f32.mrb[0].mxu0
        %1331 = vdwg.mxu0
        %v1332 = vsel %vm1147, %v1189, -inf
        %1333 = vmax.xlane.f32.xlu0 %v1332
        %v1334 = vpop.xlane.xlu0 %1333
        %v1335 = vsel %vm1147, %v1235, -inf
        %1336 = vmax.xlane.f32.xlu0 %v1335
        %v1337 = vpop.xlane.xlu0 %1336
        %v1338 = vsel %vm1147, %v1281, -inf
        %1339 = vmax.xlane.f32.xlu0 %v1338
        %v1340 = vpop.xlane.xlu0 %1339
        %v1341 = vsel %vm1147, %v1327, -inf
        %1342 = vmax.xlane.f32.xlu0 %v1341
        %v1343 = vpop.xlane.xlu0 %1342
        %v1344 = vsub.f32 %v1189, %v1334
        %v1345 = vsub.f32 %v1235, %v1337
        %v1346 = vsub.f32 %v1281, %v1340
        %v1347 = vsub.f32 %v1327, %v1343
        %v1348 = vmul.f32 %v1344, 1.442695
        %v1349 = vpow.pop %v1348
        %v1350 = vmul.f32 %v1345, 1.442695
        %v1351 = vpow.pop %v1350
        %v1352 = vmul.f32 %v1346, 1.442695
        %v1353 = vpow.pop %v1352
        %v1354 = vmul.f32 %v1347, 1.442695
        %v1355 = vpow.pop %v1354
        %v1356 = vsel %vm1147, %v1349, 0.0
        %1357 = vadd.xlane.f32.xlu0 %v1356
        %v1358 = vpop.xlane.xlu0 %1357
        %v1359 = vsel %vm1147, %v1351, 0.0
        %1360 = vadd.xlane.f32.xlu0 %v1359
        %v1361 = vpop.xlane.xlu0 %1360
        %v1362 = vsel %vm1147, %v1353, 0.0
        %1363 = vadd.xlane.f32.xlu0 %v1362
        %v1364 = vpop.xlane.xlu0 %1363
        %v1365 = vsel %vm1147, %v1355, 0.0
        %1366 = vadd.xlane.f32.xlu0 %v1365
        %v1367 = vpop.xlane.xlu0 %1366
        %v1368 = vpack.c.bf16 %v1349, %v1349
        %v1369 = vpack.c.bf16 %v1351, %v1351
        %v1370 = vpack.c.bf16 %v1353, %v1353
        %v1371 = vpack.c.bf16 %v1355, %v1355
        %v1373 = vsel %vm1147, %v1368, 0
        %vm1375 = vcmask 1043456
        %v1377 = vsel %vm1375, %v1143, 0
        %1379 = vmatprep.subr.bf16.mxu0 0
        %1380 = vmatpush1.bf16.msra.mxu0 %v1377
        %1381 = vmatprep.subr.bf16.mxu0 0
        %1382 = vmatpush1.bf16.msra.mxu0 0
        %1383 = vmatprep.subr.bf16.mxu0 0
        %1384 = vmatpush1.bf16.msra.mxu0 0
        %1385 = vmatprep.subr.bf16.mxu0 0
        %1386 = vmatpush1.bf16.msra.mxu0 0
        %1387 = vmatprep.subr.bf16.mxu0 0
        %1388 = vmatpush1.bf16.msra.mxu0 0
        %1389 = vmatprep.subr.bf16.mxu0 0
        %1390 = vmatpush1.bf16.msra.mxu0 0
        %1391 = vmatprep.subr.bf16.mxu0 0
        %1392 = vmatpush1.bf16.msra.mxu0 0
        %1393 = vmatprep.subr.bf16.mxu0 0
        %1394 = vmatpush1.bf16.msra.mxu0 0
        %1395 = vmatprep.subr.bf16.mxu0 0
        %1396 = vmatpush1.bf16.msra.mxu0 0
        %1397 = vmatprep.subr.bf16.mxu0 0
        %1398 = vmatpush1.bf16.msra.mxu0 0
        %1399 = vmatprep.subr.bf16.mxu0 0
        %1400 = vmatpush1.bf16.msra.mxu0 0
        %1401 = vmatprep.subr.bf16.mxu0 0
        %1402 = vmatpush1.bf16.msra.mxu0 0
        %1403 = vmatprep.subr.bf16.mxu0 0
        %1404 = vmatpush1.bf16.msra.mxu0 0
        %1405 = vmatprep.subr.bf16.mxu0 0
        %1406 = vmatpush1.bf16.msra.mxu0 0
        %1407 = vmatprep.subr.bf16.mxu0 0
        %1408 = vmatpush1.bf16.msra.mxu0 0
        %1409 = vmatprep.subr.bf16.mxu0 0
        %1410 = vmatpush1.bf16.msra.mxu0 0
        %1411 = vmatprep.mubr.bf16.mxu0 0
        %1412 = vmatmul.mubr.bf16.gmra.mrb[0].mxu0 %v1373
        %v1413 = vpop.f32.mrb[0].mxu0
        %v1414 = vadd.f32 0.0, %v1413
        %v1415 = vpop.f32.mrb[0].mxu0
        %v1416 = vpop.f32.mrb[0].mxu0
        %v1417 = vpop.f32.mrb[0].mxu0
        %1418 = vdwg.mxu0
        %v1420 = vsel %vm1147, %v1369, 0
        %v1423 = vsel %vm1375, %v1144, 0
        %1425 = vmatprep.subr.bf16.mxu0 0
        %1426 = vmatpush1.bf16.msra.mxu0 %v1423
        %1427 = vmatprep.subr.bf16.mxu0 0
        %1428 = vmatpush1.bf16.msra.mxu0 0
        %1429 = vmatprep.subr.bf16.mxu0 0
        %1430 = vmatpush1.bf16.msra.mxu0 0
        %1431 = vmatprep.subr.bf16.mxu0 0
        %1432 = vmatpush1.bf16.msra.mxu0 0
        %1433 = vmatprep.subr.bf16.mxu0 0
        %1434 = vmatpush1.bf16.msra.mxu0 0
        %1435 = vmatprep.subr.bf16.mxu0 0
        %1436 = vmatpush1.bf16.msra.mxu0 0
        %1437 = vmatprep.subr.bf16.mxu0 0
        %1438 = vmatpush1.bf16.msra.mxu0 0
        %1439 = vmatprep.subr.bf16.mxu0 0
        %1440 = vmatpush1.bf16.msra.mxu0 0
        %1441 = vmatprep.subr.bf16.mxu0 0
        %1442 = vmatpush1.bf16.msra.mxu0 0
        %1443 = vmatprep.subr.bf16.mxu0 0
        %1444 = vmatpush1.bf16.msra.mxu0 0
        %1445 = vmatprep.subr.bf16.mxu0 0
        %1446 = vmatpush1.bf16.msra.mxu0 0
        %1447 = vmatprep.subr.bf16.mxu0 0
        %1448 = vmatpush1.bf16.msra.mxu0 0
        %1449 = vmatprep.subr.bf16.mxu0 0
        %1450 = vmatpush1.bf16.msra.mxu0 0
        %1451 = vmatprep.subr.bf16.mxu0 0
        %1452 = vmatpush1.bf16.msra.mxu0 0
        %1453 = vmatprep.subr.bf16.mxu0 0
        %1454 = vmatpush1.bf16.msra.mxu0 0
        %1455 = vmatprep.subr.bf16.mxu0 0
        %1456 = vmatpush1.bf16.msra.mxu0 0
        %1457 = vmatprep.mubr.bf16.mxu0 0
        %1458 = vmatmul.mubr.bf16.gmra.mrb[0].mxu0 %v1420
        %v1459 = vpop.f32.mrb[0].mxu0
        %v1460 = vadd.f32 0.0, %v1459
        %v1461 = vpop.f32.mrb[0].mxu0
        %v1462 = vpop.f32.mrb[0].mxu0
        %v1463 = vpop.f32.mrb[0].mxu0
        %1464 = vdwg.mxu0
        %v1466 = vsel %vm1147, %v1370, 0
        %v1469 = vsel %vm1375, %v1145, 0
        %1471 = vmatprep.subr.bf16.mxu0 0
        %1472 = vmatpush1.bf16.msra.mxu0 %v1469
        %1473 = vmatprep.subr.bf16.mxu0 0
        %1474 = vmatpush1.bf16.msra.mxu0 0
        %1475 = vmatprep.subr.bf16.mxu0 0
        %1476 = vmatpush1.bf16.msra.mxu0 0
        %1477 = vmatprep.subr.bf16.mxu0 0
        %1478 = vmatpush1.bf16.msra.mxu0 0
        %1479 = vmatprep.subr.bf16.mxu0 0
        %1480 = vmatpush1.bf16.msra.mxu0 0
        %1481 = vmatprep.subr.bf16.mxu0 0
        %1482 = vmatpush1.bf16.msra.mxu0 0
        %1483 = vmatprep.subr.bf16.mxu0 0
        %1484 = vmatpush1.bf16.msra.mxu0 0
        %1485 = vmatprep.subr.bf16.mxu0 0
        %1486 = vmatpush1.bf16.msra.mxu0 0
        %1487 = vmatprep.subr.bf16.mxu0 0
        %1488 = vmatpush1.bf16.msra.mxu0 0
        %1489 = vmatprep.subr.bf16.mxu0 0
        %1490 = vmatpush1.bf16.msra.mxu0 0
        %1491 = vmatprep.subr.bf16.mxu0 0
        %1492 = vmatpush1.bf16.msra.mxu0 0
        %1493 = vmatprep.subr.bf16.mxu0 0
        %1494 = vmatpush1.bf16.msra.mxu0 0
        %1495 = vmatprep.subr.bf16.mxu0 0
        %1496 = vmatpush1.bf16.msra.mxu0 0
        %1497 = vmatprep.subr.bf16.mxu0 0
        %1498 = vmatpush1.bf16.msra.mxu0 0
        %1499 = vmatprep.subr.bf16.mxu0 0
        %1500 = vmatpush1.bf16.msra.mxu0 0
        %1501 = vmatprep.subr.bf16.mxu0 0
        %1502 = vmatpush1.bf16.msra.mxu0 0
        %1503 = vmatprep.mubr.bf16.mxu0 0
        %1504 = vmatmul.mubr.bf16.gmra.mrb[0].mxu0 %v1466
        %v1505 = vpop.f32.mrb[0].mxu0
        %v1506 = vadd.f32 0.0, %v1505
        %v1507 = vpop.f32.mrb[0].mxu0
        %v1508 = vpop.f32.mrb[0].mxu0
        %v1509 = vpop.f32.mrb[0].mxu0
        %1510 = vdwg.mxu0
        %v1512 = vsel %vm1147, %v1371, 0
        %v1515 = vsel %vm1375, %v1146, 0
        %1517 = vmatprep.subr.bf16.mxu0 0
        %1518 = vmatpush1.bf16.msra.mxu0 %v1515
        %1519 = vmatprep.subr.bf16.mxu0 0
        %1520 = vmatpush1.bf16.msra.mxu0 0
        %1521 = vmatprep.subr.bf16.mxu0 0
        %1522 = vmatpush1.bf16.msra.mxu0 0
        %1523 = vmatprep.subr.bf16.mxu0 0
        %1524 = vmatpush1.bf16.msra.mxu0 0
        %1525 = vmatprep.subr.bf16.mxu0 0
        %1526 = vmatpush1.bf16.msra.mxu0 0
        %1527 = vmatprep.subr.bf16.mxu0 0
        %1528 = vmatpush1.bf16.msra.mxu0 0
        %1529 = vmatprep.subr.bf16.mxu0 0
        %1530 = vmatpush1.bf16.msra.mxu0 0
        %1531 = vmatprep.subr.bf16.mxu0 0
        %1532 = vmatpush1.bf16.msra.mxu0 0
        %1533 = vmatprep.subr.bf16.mxu0 0
        %1534 = vmatpush1.bf16.msra.mxu0 0
        %1535 = vmatprep.subr.bf16.mxu0 0
        %1536 = vmatpush1.bf16.msra.mxu0 0
        %1537 = vmatprep.subr.bf16.mxu0 0
        %1538 = vmatpush1.bf16.msra.mxu0 0
        %1539 = vmatprep.subr.bf16.mxu0 0
        %1540 = vmatpush1.bf16.msra.mxu0 0
        %1541 = vmatprep.subr.bf16.mxu0 0
        %1542 = vmatpush1.bf16.msra.mxu0 0
        %1543 = vmatprep.subr.bf16.mxu0 0
        %1544 = vmatpush1.bf16.msra.mxu0 0
        %1545 = vmatprep.subr.bf16.mxu0 0
        %1546 = vmatpush1.bf16.msra.mxu0 0
        %1547 = vmatprep.subr.bf16.mxu0 0
        %1548 = vmatpush1.bf16.msra.mxu0 0
        %1549 = vmatprep.mubr.bf16.mxu0 0
        %1550 = vmatmul.mubr.bf16.gmra.mrb[0].mxu0 %v1512
        %v1551 = vpop.f32.mrb[0].mxu0
        %v1552 = vadd.f32 0.0, %v1551
        %v1553 = vpop.f32.mrb[0].mxu0
        %v1554 = vpop.f32.mrb[0].mxu0
        %v1555 = vpop.f32.mrb[0].mxu0
        %1556 = vdwg.mxu0
        %v1557 = vrcp.pop %v1358
        %v1558 = vrcp.pop %v1361
        %v1559 = vrcp.pop %v1364
        %v1560 = vrcp.pop %v1367
        %v1561 = vmul.f32 %v1414, %v1557
        %v1562 = vmul.f32 %v1460, %v1558
        %v1563 = vmul.f32 %v1506, %v1559
        %v1564 = vmul.f32 %v1552, %v1560
        %v1565 = vcombine.low %v1561, %v1563
        %v1566 = vcombine.high %v1561, %v1563
        %v1568 = vunpack.c.l.s4 1983009808
        %v1569 = vunpack.c.0.s8 %v1568
        %v1570 = vlaneseq
        %v1571 = vshrl.u32 %v1570, 7
        %v1572 = vsub.s32 %v1569, %v1571
        %v1573 = vrot.slane %v1565, %v1572
        %v1575 = vunpack.c.l.s4 1983009808
        %v1576 = vunpack.c.0.s8 %v1575
        %v1577 = vlaneseq
        %v1578 = vshrl.u32 %v1577, 7
        %v1579 = vsub.s32 %v1576, %v1578
        %v1580 = vrot.slane %v1566, %v1579
        %v1581 = vcombine.low %v1562, %v1564
        %v1582 = vcombine.high %v1562, %v1564
        %v1584 = vunpack.c.l.s4 1983009808
        %v1585 = vunpack.c.0.s8 %v1584
        %v1586 = vlaneseq
        %v1587 = vshrl.u32 %v1586, 7
        %v1588 = vsub.s32 %v1585, %v1587
        %v1589 = vrot.slane %v1581, %v1588
        %v1591 = vunpack.c.l.s4 1983009808
        %v1592 = vunpack.c.0.s8 %v1591
        %v1593 = vlaneseq
        %v1594 = vshrl.u32 %v1593, 7
        %v1595 = vsub.s32 %v1592, %v1594
        %v1596 = vrot.slane %v1582, %v1595
        %v1597 = vcombine.low %v1573, %v1589
        %v1598 = vcombine.high %v1573, %v1589
        %v1600 = vunpack.c.l.s4 1934713408
        %v1601 = vunpack.c.0.s8 %v1600
        %v1602 = vlaneseq
        %v1603 = vshrl.u32 %v1602, 7
        %v1604 = vsub.s32 %v1601, %v1603
        %v1605 = vrot.slane %v1597, %v1604
        %v1607 = vunpack.c.l.s4 1934713408
        %v1608 = vunpack.c.0.s8 %v1607
        %v1609 = vlaneseq
        %v1610 = vshrl.u32 %v1609, 7
        %v1611 = vsub.s32 %v1608, %v1610
        %v1612 = vrot.slane %v1598, %v1611
        %v1613 = vcombine.low %v1580, %v1596
        %v1614 = vcombine.high %v1580, %v1596
        %v1616 = vunpack.c.l.s4 1934713408
        %v1617 = vunpack.c.0.s8 %v1616
        %v1618 = vlaneseq
        %v1619 = vshrl.u32 %v1618, 7
        %v1620 = vsub.s32 %v1617, %v1619
        %v1621 = vrot.slane %v1613, %v1620
        %v1623 = vunpack.c.l.s4 1934713408
        %v1624 = vunpack.c.0.s8 %v1623
        %v1625 = vlaneseq
        %v1626 = vshrl.u32 %v1625, 7
        %v1627 = vsub.s32 %v1624, %v1626
        %v1628 = vrot.slane %v1614, %v1627
        %v1629 = vcombine.high %v1605, 0.0
        %v1630 = vcombine.high %v1612, 0.0
        %v1631 = vcombine.high %v1621, 0.0
        %v1632 = vcombine.high %v1628, 0.0
        %v1633 = vcombine.low %v1605, %v1612
        %v1635 = vunpack.c.l.s4 1983009808
        %v1636 = vunpack.c.0.s8 %v1635
        %v1637 = vlaneseq
        %v1638 = vshrl.u32 %v1637, 7
        %v1639 = vsub.s32 %v1636, %v1638
        %v1640 = vrot.slane %v1633, %v1639
        %v1641 = vcombine.low %v1629, %v1630
        %v1643 = vunpack.c.l.s4 1983009808
        %v1644 = vunpack.c.0.s8 %v1643
        %v1645 = vlaneseq
        %v1646 = vshrl.u32 %v1645, 7
        %v1647 = vsub.s32 %v1644, %v1646
        %v1648 = vrot.slane %v1641, %v1647
        %v1649 = vcombine.low %v1621, %v1628
        %v1651 = vunpack.c.l.s4 1983009808
        %v1652 = vunpack.c.0.s8 %v1651
        %v1653 = vlaneseq
        %v1654 = vshrl.u32 %v1653, 7
        %v1655 = vsub.s32 %v1652, %v1654
        %v1656 = vrot.slane %v1649, %v1655
        %v1657 = vcombine.low %v1631, %v1632
        %v1659 = vunpack.c.l.s4 1983009808
        %v1660 = vunpack.c.0.s8 %v1659
        %v1661 = vlaneseq
        %v1662 = vshrl.u32 %v1661, 7
        %v1663 = vsub.s32 %v1660, %v1662
        %v1664 = vrot.slane %v1657, %v1663
        %v1665 = vcombine.low %v1640, %v1648
        %v1666 = vcombine.high %v1640, %v1648
        %v1668 = vunpack.c.l.s4 1934713408
        %v1669 = vunpack.c.0.s8 %v1668
        %v1670 = vlaneseq
        %v1671 = vshrl.u32 %v1670, 7
        %v1672 = vsub.s32 %v1669, %v1671
        %v1673 = vrot.slane %v1665, %v1672
        %v1675 = vunpack.c.l.s4 1934713408
        %v1676 = vunpack.c.0.s8 %v1675
        %v1677 = vlaneseq
        %v1678 = vshrl.u32 %v1677, 7
        %v1679 = vsub.s32 %v1676, %v1678
        %v1680 = vrot.slane %v1666, %v1679
        %v1681 = vcombine.low %v1656, %v1664
        %v1682 = vcombine.high %v1656, %v1664
        %v1684 = vunpack.c.l.s4 1934713408
        %v1685 = vunpack.c.0.s8 %v1684
        %v1686 = vlaneseq
        %v1687 = vshrl.u32 %v1686, 7
        %v1688 = vsub.s32 %v1685, %v1687
        %v1689 = vrot.slane %v1681, %v1688
        %v1691 = vunpack.c.l.s4 1934713408
        %v1692 = vunpack.c.0.s8 %v1691
        %v1693 = vlaneseq
        %v1694 = vshrl.u32 %v1693, 7
        %v1695 = vsub.s32 %v1692, %v1694
        %v1696 = vrot.slane %v1682, %v1695
        %v1697 = vcombine.low %v1673, %v1689
        %v1698 = vcombine.high %v1673, %v1689
        %v1699 = vcombine.low %v1680, %v1696
        %v1700 = vcombine.high %v1680, %v1696
        %1702 = vrot.lane.b32.xlu0 %v1698, 8
        %v1703 = vpop.permute.xlu0 %1702
        %1706 = vrot.lane.b32.xlu0 %v1699, 16
        %v1707 = vpop.permute.xlu0 %1706
        %1710 = vrot.lane.b32.xlu0 %v1700, 24
        %v1711 = vpop.permute.xlu0 %1710
        %v1713 = vsel %vm1147, %v1697, %v1703
        %vm1714 = vcmask 130048
        %v1715 = vsel %vm1714, %v1713, %v1707
        %vm1716 = vcmask 195584
        %v1717 = vsel %vm1716, %v1715, %v1711
        %v1718 = vpack.c.bf16 %v1717, %v1717
        %v1719 = vld [vmem:[#allocation14] sm:$0xf]
        %v1720 = vld [vmem:[#allocation14 + $0x4] sm:$0xf]
        %v1721 = vld [vmem:[#allocation14 + $0x8] sm:$0xf]
        %v1722 = vld [vmem:[#allocation14 + $0xc] sm:$0xf]
        %v1723 = vld [vmem:[#allocation15] sm:$0x1]
        %v1725 = vlaneseq
        %v1726 = vshrl.u32 %v1725, 7
        %v1727 = vsub.s32 0, %v1726
        %v1728 = vrot.slane %v1723, %v1727
        %v1734 = vunpack.c.l.b16 %v1719
        %v1735 = vunpack.c.l.b16 %v1720
        %v1736 = vunpack.c.l.b16 %v1721
        %v1737 = vunpack.c.l.b16 %v1722
        %v1738 = vpack.c.b16 %v1735, %v1734
        %v1739 = vpack.c.b16 %v1737, %v1736
        %v1743 = vsel %vm944, %v1718, 0
        %1745 = vmatprep.subr.bf16.mxu0 0
        %1746 = vmatpush1.bf16.msra.mxu0 %v1738
        %1747 = vmatprep.subr.bf16.mxu0 0
        %1748 = vmatpush1.bf16.msra.mxu0 %v1739
        %1749 = vmatprep.subr.bf16.mxu0 0
        %1750 = vmatpush1.bf16.msra.mxu0 0
        %1751 = vmatprep.subr.bf16.mxu0 0
        %1752 = vmatpush1.bf16.msra.mxu0 0
        %1753 = vmatprep.subr.bf16.mxu0 0
        %1754 = vmatpush1.bf16.msra.mxu0 0
        %1755 = vmatprep.subr.bf16.mxu0 0
        %1756 = vmatpush1.bf16.msra.mxu0 0
        %1757 = vmatprep.subr.bf16.mxu0 0
        %1758 = vmatpush1.bf16.msra.mxu0 0
        %1759 = vmatprep.subr.bf16.mxu0 0
        %1760 = vmatpush1.bf16.msra.mxu0 0
        %1761 = vmatprep.subr.bf16.mxu0 0
        %1762 = vmatpush1.bf16.msra.mxu0 0
        %1763 = vmatprep.subr.bf16.mxu0 0
        %1764 = vmatpush1.bf16.msra.mxu0 0
        %1765 = vmatprep.subr.bf16.mxu0 0
        %1766 = vmatpush1.bf16.msra.mxu0 0
        %1767 = vmatprep.subr.bf16.mxu0 0
        %1768 = vmatpush1.bf16.msra.mxu0 0
        %1769 = vmatprep.subr.bf16.mxu0 0
        %1770 = vmatpush1.bf16.msra.mxu0 0
        %1771 = vmatprep.subr.bf16.mxu0 0
        %1772 = vmatpush1.bf16.msra.mxu0 0
        %1773 = vmatprep.subr.bf16.mxu0 0
        %1774 = vmatpush1.bf16.msra.mxu0 0
        %1775 = vmatprep.subr.bf16.mxu0 0
        %1776 = vmatpush1.bf16.msra.mxu0 0
        %1777 = vmatprep.mubr.bf16.mxu0 0
        %1778 = vmatmul.mubr.bf16.gmra.mrb[0].mxu0 %v1743
        %v1779 = vpop.f32.mrb[0].mxu0
        %v1780 = vadd.f32 %v1728, %v1779
        %v1781 = vpop.f32.mrb[0].mxu0
        %v1782 = vpop.f32.mrb[0].mxu0
        %v1783 = vpop.f32.mrb[0].mxu0
        %1784 = vdwg.mxu0
        %v1785 = vunpack.c.l.bf16 %v920
        %v1786 = vadd.f32 %v1780, %v1785
        %v1787 = vsel %vm944, %v1786, 0.0
        %1788 = vadd.xlane.f32.xlu0 %v1787
        %v1789 = vpop.xlane.xlu0 %1788
        %v1790 = vrcp.pop 32.0
        %v1791 = vmul.f32 %v1789, %v1790
        %v1792 = vsub.f32 %v1786, %v1791
        %v1793 = vmul.f32 %v1792, %v1792
        %v1794 = vsel %vm944, %v1793, 0.0
        %1795 = vadd.xlane.f32.xlu0 %v1794
        %v1796 = vpop.xlane.xlu0 %1795
        %v1797 = vmul.f32 %v1796, %v1790
        %v1798 = vld [vmem:[#allocation17] sm:$0x1]
        %v1799 = vadd.f32 %v1797, 1e-12
        %v1800 = vrsqrt.pop %v1799
        %v1801 = vmul.f32 %v1792, %v1800
        %v1803 = vlaneseq
        %v1804 = vshrl.u32 %v1803, 7
        %v1805 = vsub.s32 0, %v1804
        %v1806 = vrot.slane %v1798, %v1805
        %v1808 = vmul.f32 %v1806, %v1801
        %v1809 = vld [vmem:[#allocation18] sm:$0x1]
        %v1811 = vlaneseq
        %v1812 = vshrl.u32 %v1811, 7
        %v1813 = vsub.s32 0, %v1812
        %v1814 = vrot.slane %v1809, %v1813
        %v1816 = vadd.f32 %v1808, %v1814
        %1817 = vst.msk [vmem:[%s534] sm:$0xff] %vm944, %v1816
        %s1818 = sand.u32 %s278, 1
        %s1819 = scalar_lea.sflag [#allocation5], %s1818
        %s1820 = sand.u32 %s278, 1
        %s1821 = smul.addr %s1820, 8
        %s1822 = scalar_lea.vmem [#allocation20], %s1821
        // Predicated region
        $region105: #{tpu_custom_call.1} parent=59 // pred_check
          %p1823 = pneg %p288
        $region106: #{tpu_custom_call.1} parent=59 // pred_check_branch
          %1825 = sbr.rel (%p1823) target = $region108
        $region107: #{tpu_custom_call.1} parent=59 // pred_region
          %s1827 = ssub.s32 128, 128
          %1828 = vsyncadd %s1819, %s1827
          %s1829 = sadd.s32 %s39, %s38
          %s1830 = smul.addr %s1829, 128
          %s1831 = scalar_lea.hbm %s10, %s1830
          %s1833 = sshll.u32 %s1822, 4
          %s1834 = int_to_ptr.vmem [resolvable:$true] %s1833
          %1836 = dma.vmem_to_hbm [thread:$0]  %s1834, 128, %s1831, %s1819
        $region108: #{tpu_custom_call.1} parent=59 // pred_fallthru
          _
      $region60: #{tpu_custom_call.1} parent=5 // pred_fallthru
        _
      %p1837 = scmp.le.s32.totalorder 2, %s29
      // Predicated region
      $region109: #{tpu_custom_call.1} parent=5 // pred_check
        %p1838 = pneg %p1837
      $region110: #{tpu_custom_call.1} parent=5 // pred_check_branch
        %1840 = sbr.rel (%p1838) target = $region112
      $region111: #{tpu_custom_call.1} parent=5 // pred_region
        %s1841 = ssub.s32 %s29, 2
        // Predicated region
        $region113: #{tpu_custom_call.1} parent=111 // pred_check
          %p1842 = pneg %p294
        $region114: #{tpu_custom_call.1} parent=111 // pred_check_branch
          %1844 = sbr.rel (%p1842) target = $region116
        $region115: #{tpu_custom_call.1} parent=111 // pred_region
          %s1845 = sand.u32 %s279, 1
          %s1846 = scalar_lea.sflag [#allocation5], %s1845
          %s1847 = sand.u32 %s279, 1
          %s1848 = smul.addr %s1847, 8
          %s1849 = scalar_lea.vmem [#allocation20], %s1848
          %1850 = dma.done %s1846, 128
        $region116: #{tpu_custom_call.1} parent=111 // pred_fallthru
          _
      $region112: #{tpu_custom_call.1} parent=5 // pred_fallthru
        _
    $region6: #{tpu_custom_call.1} parent=1 // loop_footer
      %s33 = sadd.s32 1, %s29
    $region7: #{tpu_custom_call.1} parent=1 // loop_footer_branch
      %28 = sbr.rel target = $region3
    $region8: #{tpu_custom_call.1} parent=1 // loop_exit
      _
    %1851 = vsyncpa [#allocation4], 1
    %s1852 = scalar_lea.sflag [#allocation4], 1
    %1853 = vsyncpa %s1852, 1
    %1854 = vsyncpa [#allocation7], 1
    %s1855 = scalar_lea.sflag [#allocation7], 1
    %1856 = vsyncpa %s1855, 1
    %1857 = vsyncpa [#allocation10], 1
    %1858 = vsyncpa [#allocation13], 1
    %1859 = vsyncpa [#allocation16], 1
    %1860 = vsyncpa [#allocation19], 1
    %1861 = vsyncpa [#allocation5], 1
    %s1862 = scalar_lea.sflag [#allocation5], 1
    %1863 = vsyncpa %s1862, 1

// kernel: tpu_custom_call.1
$region0: #{tpu_custom_call.1}
  #allocation0 [shape = 'u32[]', space=smem, size = 0x4, offset = 0x4, fixed_abs, tag = 'smem constant byte address 0x4 - core index']
  #allocation1 [shape = 'u32[144,128]{1,0:T(1,128)}', space=vmem, size = 0x12000, scoped, tag = 'internal scratch']
  #allocation2 [shape = 'bf16[2,4,8,8]{3,2,1,0:T(8,128)(2,1)}', space=vmem, size = 0x4000, scoped, tag = 'scratch operand']
  %s0 = inlined_call_operand.hbm [shape: bf16[2,8,32], index: 0, kind: input, shape index: {}]
  %s1 = inlined_call_operand.hbm [shape: bf16[2,8,32], index: 1, kind: input, shape index: {}]
  %s2 = inlined_call_operand.hbm [shape: bf16[32,32], index: 2, kind: input, shape index: {}]
  %s3 = inlined_call_operand.hbm [shape: f32[1,32], index: 3, kind: input, shape index: {}]
  %s4 = inlined_call_operand.hbm [shape: bf16[32,64], index: 4, kind: input, shape index: {}]
  %s5 = inlined_call_operand.hbm [shape: f32[1,64], index: 5, kind: input, shape index: {}]
  %s6 = inlined_call_operand.hbm [shape: bf16[32,32], index: 6, kind: input, shape index: {}]
  %s7 = inlined_call_operand.hbm [shape: f32[1,32], index: 7, kind: input, shape index: {}]
  %s8 = inlined_call_operand.hbm [shape: f32[1,32], index: 8, kind: input, shape index: {}]
  %s9 = inlined_call_operand.hbm [shape: f32[1,32], index: 9, kind: input, shape index: {}]
  %s10 = inlined_call_operand.hbm [shape: f32[2,8,32], index: 10, kind: output, shape index: {}]
  %s11 = sld [smem:[#allocation0]]
  $region117: #{tpu_custom_call.1} parent=0
    _
  %s13 = ssub.s32 1, %s11
  %s14 = scalar_select 0, %s13, %s11
  $region1: #{tpu_custom_call.1} parent=0
    #allocation3 [shape = 'u8[4096]{0}', space=vmem, size = 0x1000, scoped, tag = 'input window, operand 0']
    #allocation4 [shape = 's32[2]{0}', space=sflag, size = 0x8, scoped, tag = 'scoped memory for tpu_custom_call.1']
    #allocation5 [shape = 's32[2]{0}', space=sflag, size = 0x8, scoped, tag = 'scoped memory for tpu_custom_call.1']
    #allocation6 [shape = 'u8[4096]{0}', space=vmem, size = 0x1000, scoped, tag = 'input window, operand 1']
    #allocation7 [shape = 's32[2]{0}', space=sflag, size = 0x8, scoped, tag = 'scoped memory for tpu_custom_call.1']
    #allocation8 [shape = 'u8[8192]{0}', space=vmem, size = 0x2000, scoped, tag = 'input window, operand 2, single buffered']
    #allocation9 [shape = 'u8[512]{0}', space=vmem, size = 0x400, scoped, tag = 'input window, operand 3, single buffered']
    #allocation10 [shape = 's32[1]{0}', space=sflag, size = 0x4, scoped, tag = 'scoped memory for tpu_custom_call.1']
    #allocation11 [shape = 'u8[8192]{0}', space=vmem, size = 0x2000, scoped, tag = 'input window, operand 4, single buffered']
    #allocation12 [shape = 'u8[512]{0}', space=vmem, size = 0x400, scoped, tag = 'input window, operand 5, single buffered']
    #allocation13 [shape = 's32[1]{0}', space=sflag, size = 0x4, scoped, tag = 'scoped memory for tpu_custom_call.1']
    #allocation14 [shape = 'u8[8192]{0}', space=vmem, size = 0x2000, scoped, tag = 'input window, operand 6, single buffered']
    #allocation15 [shape = 'u8[512]{0}', space=vmem, size = 0x400, scoped, tag = 'input window, operand 7, single buffered']
    #allocation16 [shape = 's32[1]{0}', space=sflag, size = 0x4, scoped, tag = 'scoped memory for tpu_custom_call.1']
    #allocation17 [shape = 'u8[512]{0}', space=vmem, size = 0x400, scoped, tag = 'input window, operand 8, single buffered']
    #allocation18 [shape = 'u8[512]{0}', space=vmem, size = 0x400, scoped, tag = 'input window, operand 9, single buffered']
    #allocation19 [shape = 's32[1]{0}', space=sflag, size = 0x4, scoped, tag = 'scoped memory for tpu_custom_call.1']
    #allocation20 [shape = 'u8[8192]{0}', space=vmem, size = 0x2000, scoped, tag = 'output window, operand 0']
    %15 = vsyncpa [#allocation4], 0
    %s16 = scalar_lea.sflag [#allocation4], 1
    %17 = vsyncpa %s16, 0
    %18 = vsyncpa [#allocation7], 0
    %s19 = scalar_lea.sflag [#allocation7], 1
    %20 = vsyncpa %s19, 0
    %21 = vsyncpa [#allocation10], 0
    %22 = vsyncpa [#allocation13], 0
    %23 = vsyncpa [#allocation16], 0
    %24 = vsyncpa [#allocation19], 0
    %25 = vsyncpa [#allocation5], 0
    %s26 = scalar_lea.sflag [#allocation5], 1
    %27 = vsyncpa %s26, 0
    loop: start=0, step=1, limit=4
    $region2: #{tpu_custom_call.1} parent=1 // loop_pre_header
      _
    $region3: #{tpu_custom_call.1} parent=1 // loop_header
      %s29 = sphi 0, %s33
      %p30 = scmp.ge.s32.totalorder %s29, 4
      %s36 = sphi 0, %s48
      %s37 = sphi 0, %s44
      %s38 = sphi 0, %s36
      %s39 = sphi 0, %s37
      %s40 = sphi 0, %s38
      %s41 = sphi 0, %s39
      %s53 = sphi 0, %s55
      %s56 = sphi 0, %s53
      %s57 = sphi 0, %s56
      %s73 = sphi 0, %s57
      %s79 = sphi 0, %s81
      %s82 = sphi 0, %s79
      %s83 = sphi 0, %s82
      %s99 = sphi 0, %s83
      %s103 = sphi 0, %s103
      %s105 = sphi 0, %s103
      %s106 = sphi 0, %s105
      %s120 = sphi 0, %s106
      %s124 = sphi 0, %s124
      %s126 = sphi 0, %s124
      %s127 = sphi 0, %s126
      %s141 = sphi 0, %s127
      %s145 = sphi 0, %s145
      %s147 = sphi 0, %s145
      %s148 = sphi 0, %s147
      %s162 = sphi 0, %s148
      %s166 = sphi 0, %s166
      %s168 = sphi 0, %s166
      %s169 = sphi 0, %s168
      %s183 = sphi 0, %s169
      %s187 = sphi 0, %s187
      %s189 = sphi 0, %s187
      %s190 = sphi 0, %s189
      %s204 = sphi 0, %s190
      %s208 = sphi 0, %s208
      %s210 = sphi 0, %s208
      %s211 = sphi 0, %s210
      %s225 = sphi 0, %s211
      %s229 = sphi 0, %s229
      %s231 = sphi 0, %s229
      %s232 = sphi 0, %s231
      %s246 = sphi 0, %s232
      %s250 = sphi 0, %s250
      %s252 = sphi 0, %s250
      %s253 = sphi 0, %s252
      %s267 = sphi 0, %s253
      %s275 = sphi 0, %s277
      %s278 = sphi 0, %s275
      %s279 = sphi 0, %s278
      %s295 = sphi 0, %s279
    $region4: #{tpu_custom_call.1} parent=1 // loop_header_branch
      %32 = sbr.rel (%p30) target = $region8
    $region5: #{tpu_custom_call.1} parent=1 // loop_body
      %s34 = ssub.s32 %s29, 1
      %s35 = ssub.s32 %s29, 2
      %s42 = sadd.s32 1, %s37
      %p43 = scmp.ge.s32.totalorder %s42, 1
      %s44 = scalar_select %p43, 0, %s42
      %s45 = sadd.s32 1, %s36
      %s46 = scalar_select %p43, %s45, %s36
      %p47 = scmp.ge.s32.totalorder %s46, 2
      %s48 = scalar_select %p47, 0, %s46
      %s49 = ssub.s32 %s36, %s48
      %s50 = ssub.s32 %s37, %s44
      %s51 = sor.u32 %s49, %s50
      %p52 = scmp.eq.s32.totalorder %s51, 0
      %s54 = sadd.s32 %s53, 1
      %s55 = scalar_select %p52, %s53, %s54
      %p58 = pneg %p52
      %p59 = scmp.eq.s32.totalorder %s29, 1
      %p60 = por %p58, %p59
      %p61 = scmp.ne.s32.totalorder %s53, %s56
      %p62 = scmp.eq.s32.totalorder %s29, 0
      %p63 = por %p61, %p62
      %p64 = scmp.ne.s32.totalorder %s53, %s56
      %p65 = scmp.eq.s32.totalorder %s34, 1
      %p66 = por %p64, %p65
      %p67 = scmp.ne.s32.totalorder %s56, %s57
      %p68 = scmp.eq.s32.totalorder %s34, 0
      %p69 = por %p67, %p68
      %p70 = scmp.ne.s32.totalorder %s56, %s57
      %p71 = scmp.eq.s32.totalorder %s35, 1
      %p72 = por %p70, %p71
      %p74 = scmp.ne.s32.totalorder %s57, %s73
      %p75 = scmp.eq.s32.totalorder %s35, 0
      %p76 = por %p74, %p75
      %s77 = ssub.s32 %s36, %s48
      %p78 = scmp.eq.s32.totalorder %s77, 0
      %s80 = sadd.s32 %s79, 1
      %s81 = scalar_select %p78, %s79, %s80
      %p84 = pneg %p78
      %p85 = scmp.eq.s32.totalorder %s29, 1
      %p86 = por %p84, %p85
      %p87 = scmp.ne.s32.totalorder %s79, %s82
      %p88 = scmp.eq.s32.totalorder %s29, 0
      %p89 = por %p87, %p88
      %p90 = scmp.ne.s32.totalorder %s79, %s82
      %p91 = scmp.eq.s32.totalorder %s34, 1
      %p92 = por %p90, %p91
      %p93 = scmp.ne.s32.totalorder %s82, %s83
      %p94 = scmp.eq.s32.totalorder %s34, 0
      %p95 = por %p93, %p94
      %p96 = scmp.ne.s32.totalorder %s82, %s83
      %p97 = scmp.eq.s32.totalorder %s35, 1
      %p98 = por %p96, %p97
      %p100 = scmp.ne.s32.totalorder %s83, %s99
      %p101 = scmp.eq.s32.totalorder %s35, 0
      %p102 = por %p100, %p101
      %s104 = sadd.s32 %s103, 1
      %p107 = scmp.eq.s32.totalorder %s29, 1
      %p108 = scmp.ne.s32.totalorder %s103, %s105
      %p109 = scmp.eq.s32.totalorder %s29, 0
      %p110 = por %p108, %p109
      %p111 = scmp.ne.s32.totalorder %s103, %s105
      %p112 = scmp.eq.s32.totalorder %s34, 1
      %p113 = por %p111, %p112
      %p114 = scmp.ne.s32.totalorder %s105, %s106
      %p115 = scmp.eq.s32.totalorder %s34, 0
      %p116 = por %p114, %p115
      %p117 = scmp.ne.s32.totalorder %s105, %s106
      %p118 = scmp.eq.s32.totalorder %s35, 1
      %p119 = por %p117, %p118
      %p121 = scmp.ne.s32.totalorder %s106, %s120
      %p122 = scmp.eq.s32.totalorder %s35, 0
      %p123 = por %p121, %p122
      %s125 = sadd.s32 %s124, 1
      %p128 = scmp.eq.s32.totalorder %s29, 1
      %p129 = scmp.ne.s32.totalorder %s124, %s126
      %p130 = scmp.eq.s32.totalorder %s29, 0
      %p131 = por %p129, %p130
      %p132 = scmp.ne.s32.totalorder %s124, %s126
      %p133 = scmp.eq.s32.totalorder %s34, 1
      %p134 = por %p132, %p133
      %p135 = scmp.ne.s32.totalorder %s126, %s127
      %p136 = scmp.eq.s32.totalorder %s34, 0
      %p137 = por %p135, %p136
      %p138 = scmp.ne.s32.totalorder %s126, %s127
      %p139 = scmp.eq.s32.totalorder %s35, 1
      %p140 = por %p138, %p139
      %p142 = scmp.ne.s32.totalorder %s127, %s141
      %p143 = scmp.eq.s32.totalorder %s35, 0
      %p144 = por %p142, %p143
      %s146 = sadd.s32 %s145, 1
      %p149 = scmp.eq.s32.totalorder %s29, 1
      %p150 = scmp.ne.s32.totalorder %s145, %s147
      %p151 = scmp.eq.s32.totalorder %s29, 0
      %p152 = por %p150, %p151
      %p153 = scmp.ne.s32.totalorder %s145, %s147
      %p154 = scmp.eq.s32.totalorder %s34, 1
      %p155 = por %p153, %p154
      %p156 = scmp.ne.s32.totalorder %s147, %s148
      %p157 = scmp.eq.s32.totalorder %s34, 0
      %p158 = por %p156, %p157
      %p159 = scmp.ne.s32.totalorder %s147, %s148
      %p160 = scmp.eq.s32.totalorder %s35, 1
      %p161 = por %p159, %p160
      %p163 = scmp.ne.s32.totalorder %s148, %s162
      %p164 = scmp.eq.s32.totalorder %s35, 0
      %p165 = por %p163, %p164
      %s167 = sadd.s32 %s166, 1
      %p170 = scmp.eq.s32.totalorder %s29, 1
      %p171 = scmp.ne.s32.totalorder %s166, %s168
      %p172 = scmp.eq.s32.totalorder %s29, 0
      %p173 = por %p171, %p172
      %p174 = scmp.ne.s32.totalorder %s166, %s168
      %p175 = scmp.eq.s32.totalorder %s34, 1
      %p176 = por %p174, %p175
      %p177 = scmp.ne.s32.totalorder %s168, %s169
      %p178 = scmp.eq.s32.totalorder %s34, 0
      %p179 = por %p177, %p178
      %p180 = scmp.ne.s32.totalorder %s168, %s169
      %p181 = scmp.eq.s32.totalorder %s35, 1
      %p182 = por %p180, %p181
      %p184 = scmp.ne.s32.totalorder %s169, %s183
      %p185 = scmp.eq.s32.totalorder %s35, 0
      %p186 = por %p184, %p185
      %s188 = sadd.s32 %s187, 1
      %p191 = scmp.eq.s32.totalorder %s29, 1
      %p192 = scmp.ne.s32.totalorder %s187, %s189
      %p193 = scmp.eq.s32.totalorder %s29, 0
      %p194 = por %p192, %p193
      %p195 = scmp.ne.s32.totalorder %s187, %s189
      %p196 = scmp.eq.s32.totalorder %s34, 1
      %p197 = por %p195, %p196
      %p198 = scmp.ne.s32.totalorder %s189, %s190
      %p199 = scmp.eq.s32.totalorder %s34, 0
      %p200 = por %p198, %p199
      %p201 = scmp.ne.s32.totalorder %s189, %s190
      %p202 = scmp.eq.s32.totalorder %s35, 1
      %p203 = por %p201, %p202
      %p205 = scmp.ne.s32.totalorder %s190, %s204
      %p206 = scmp.eq.s32.totalorder %s35, 0
      %p207 = por %p205, %p206
      %s209 = sadd.s32 %s208, 1
      %p212 = scmp.eq.s32.totalorder %s29, 1
      %p213 = scmp.ne.s32.totalorder %s208, %s210
      %p214 = scmp.eq.s32.totalorder %s29, 0
      %p215 = por %p213, %p214
      %p216 = scmp.ne.s32.totalorder %s208, %s210
      %p217 = scmp.eq.s32.totalorder %s34, 1
      %p218 = por %p216, %p217
      %p219 = scmp.ne.s32.totalorder %s210, %s211
      %p220 = scmp.eq.s32.totalorder %s34, 0
      %p221 = por %p219, %p220
      %p222 = scmp.ne.s32.totalorder %s210, %s211
      %p223 = scmp.eq.s32.totalorder %s35, 1
      %p224 = por %p222, %p223
      %p226 = scmp.ne.s32.totalorder %s211, %s225
      %p227 = scmp.eq.s32.totalorder %s35, 0
      %p228 = por %p226, %p227
      %s230 = sadd.s32 %s229, 1
      %p233 = scmp.eq.s32.totalorder %s29, 1
      %p234 = scmp.ne.s32.totalorder %s229, %s231
      %p235 = scmp.eq.s32.totalorder %s29, 0
      %p236 = por %p234, %p235
      %p237 = scmp.ne.s32.totalorder %s229, %s231
      %p238 = scmp.eq.s32.totalorder %s34, 1
      %p239 = por %p237, %p238
      %p240 = scmp.ne.s32.totalorder %s231, %s232
      %p241 = scmp.eq.s32.totalorder %s34, 0
      %p242 = por %p240, %p241
      %p243 = scmp.ne.s32.totalorder %s231, %s232
      %p244 = scmp.eq.s32.totalorder %s35, 1
      %p245 = por %p243, %p244
      %p247 = scmp.ne.s32.totalorder %s232, %s246
      %p248 = scmp.eq.s32.totalorder %s35, 0
      %p249 = por %p247, %p248
      %s251 = sadd.s32 %s250, 1
      %p254 = scmp.eq.s32.totalorder %s29, 1
      %p255 = scmp.ne.s32.totalorder %s250, %s252
      %p256 = scmp.eq.s32.totalorder %s29, 0
      %p257 = por %p255, %p256
      %p258 = scmp.ne.s32.totalorder %s250, %s252
      %p259 = scmp.eq.s32.totalorder %s34, 1
      %p260 = por %p258, %p259
      %p261 = scmp.ne.s32.totalorder %s252, %s253
      %p262 = scmp.eq.s32.totalorder %s34, 0
      %p263 = por %p261, %p262
      %p264 = scmp.ne.s32.totalorder %s252, %s253
      %p265 = scmp.eq.s32.totalorder %s35, 1
      %p266 = por %p264, %p265
      %p268 = scmp.ne.s32.totalorder %s253, %s267
      %p269 = scmp.eq.s32.totalorder %s35, 0
      %p270 = por %p268, %p269
      %s271 = ssub.s32 %s36, %s48
      %s272 = ssub.s32 %s37, %s44
      %s273 = sor.u32 %s271, %s272
      %p274 = scmp.eq.s32.totalorder %s273, 0
      %s276 = sadd.s32 %s275, 1
      %s277 = scalar_select %p274, %s275, %s276
      %p280 = pneg %p274
      %p281 = scmp.eq.s32.totalorder %s29, 1
      %p282 = por %p280, %p281
      %p283 = scmp.ne.s32.totalorder %s275, %s278
      %p284 = scmp.eq.s32.totalorder %s29, 0
      %p285 = por %p283, %p284
      %p286 = scmp.ne.s32.totalorder %s275, %s278
      %p287 = scmp.eq.s32.totalorder %s34, 1
      %p288 = por %p286, %p287
      %p289 = scmp.ne.s32.totalorder %s278, %s279
      %p290 = scmp.eq.s32.totalorder %s34, 0
      %p291 = por %p289, %p290
      %p292 = scmp.ne.s32.totalorder %s278, %s279
      %p293 = scmp.eq.s32.totalorder %s35, 1
      %p294 = por %p292, %p293
      %p296 = scmp.ne.s32.totalorder %s279, %s295
      %p297 = scmp.eq.s32.totalorder %s35, 0
      %p298 = por %p296, %p297
      %p299 = scmp.le.s32.totalorder 1, %s29
      %p300 = scmp.lt.s32.totalorder %s29, 3
      %p301 = pnand %p299, %p300
      %p302 = pneg %p301
      // Predicated region
      $region9: #{tpu_custom_call.1} parent=5 // pred_check
        _
      $region10: #{tpu_custom_call.1} parent=5 // pred_check_branch
        %304 = sbr.rel (%p301) target = $region12
      $region11: #{tpu_custom_call.1} parent=5 // pred_region
        %s305 = ssub.s32 %s29, 1
        // Predicated region
        $region13: #{tpu_custom_call.1} parent=11 // pred_check
          %p306 = pneg %p116
        $region14: #{tpu_custom_call.1} parent=11 // pred_check_branch
          %308 = sbr.rel (%p306) target = $region16
        $region15: #{tpu_custom_call.1} parent=11 // pred_region
          %s310 = ssub.s32 256, 256
          %311 = vsyncadd [#allocation7], %s310
          %s312 = sshll.u32 [#allocation8], 4
          %s313 = int_to_ptr.vmem [resolvable:$true] %s312
          %318 = dma.hbm_to_vmem [thread:$0]  %s2, 256, %s313, [#allocation7], 64, 64, 4
        $region16: #{tpu_custom_call.1} parent=11 // pred_fallthru
          _
        // Predicated region
        $region17: #{tpu_custom_call.1} parent=11 // pred_check
          %p319 = pneg %p137
        $region18: #{tpu_custom_call.1} parent=11 // pred_check_branch
          %321 = sbr.rel (%p319) target = $region20
        $region19: #{tpu_custom_call.1} parent=11 // pred_region
          %s323 = ssub.s32 16, 16
          %324 = vsyncadd [#allocation10], %s323
          %s326 = sshll.u32 [#allocation9], 4
          %s327 = int_to_ptr.vmem [resolvable:$true] %s326
          %329 = dma.hbm_to_vmem [thread:$0]  %s3, 16, %s327, [#allocation10]
        $region20: #{tpu_custom_call.1} parent=11 // pred_fallthru
          _
        // Predicated region
        $region21: #{tpu_custom_call.1} parent=11 // pred_check
          %p330 = pneg %p158
        $region22: #{tpu_custom_call.1} parent=11 // pred_check_branch
          %332 = sbr.rel (%p330) target = $region24
        $region23: #{tpu_custom_call.1} parent=11 // pred_region
          %s334 = ssub.s32 256, 256
          %335 = vsyncadd [#allocation10], %s334
          %s336 = sshll.u32 [#allocation11], 4
          %s337 = int_to_ptr.vmem [resolvable:$true] %s336
          %342 = dma.hbm_to_vmem [thread:$0]  %s4, 256, %s337, [#allocation10], 64, 64, 4
        $region24: #{tpu_custom_call.1} parent=11 // pred_fallthru
          _
        // Predicated region
        $region25: #{tpu_custom_call.1} parent=11 // pred_check
          %p343 = pneg %p179
        $region26: #{tpu_custom_call.1} parent=11 // pred_check_branch
          %345 = sbr.rel (%p343) target = $region28
        $region27: #{tpu_custom_call.1} parent=11 // pred_region
          %s347 = ssub.s32 16, 16
          %348 = vsyncadd [#allocation13], %s347
          %s350 = sshll.u32 [#allocation12], 4
          %s351 = int_to_ptr.vmem [resolvable:$true] %s350
          %353 = dma.hbm_to_vmem [thread:$0]  %s5, 16, %s351, [#allocation13]
        $region28: #{tpu_custom_call.1} parent=11 // pred_fallthru
          _
        // Predicated region
        $region29: #{tpu_custom_call.1} parent=11 // pred_check
          %p354 = pneg %p200
        $region30: #{tpu_custom_call.1} parent=11 // pred_check_branch
          %356 = sbr.rel (%p354) target = $region32
        $region31: #{tpu_custom_call.1} parent=11 // pred_region
          %s358 = ssub.s32 256, 256
          %359 = vsyncadd [#allocation13], %s358
          %s360 = sshll.u32 [#allocation14], 4
          %s361 = int_to_ptr.vmem [resolvable:$true] %s360
          %366 = dma.hbm_to_vmem [thread:$0]  %s6, 256, %s361, [#allocation13], 64, 64, 4
        $region32: #{tpu_custom_call.1} parent=11 // pred_fallthru
          _
        // Predicated region
        $region33: #{tpu_custom_call.1} parent=11 // pred_check
          %p367 = pneg %p221
        $region34: #{tpu_custom_call.1} parent=11 // pred_check_branch
          %369 = sbr.rel (%p367) target = $region36
        $region35: #{tpu_custom_call.1} parent=11 // pred_region
          %s371 = ssub.s32 16, 16
          %372 = vsyncadd [#allocation16], %s371
          %s374 = sshll.u32 [#allocation15], 4
          %s375 = int_to_ptr.vmem [resolvable:$true] %s374
          %377 = dma.hbm_to_vmem [thread:$0]  %s7, 16, %s375, [#allocation16]
        $region36: #{tpu_custom_call.1} parent=11 // pred_fallthru
          _
        // Predicated region
        $region37: #{tpu_custom_call.1} parent=11 // pred_check
          %p378 = pneg %p242
        $region38: #{tpu_custom_call.1} parent=11 // pred_check_branch
          %380 = sbr.rel (%p378) target = $region40
        $region39: #{tpu_custom_call.1} parent=11 // pred_region
          %s382 = ssub.s32 16, 16
          %383 = vsyncadd [#allocation16], %s382
          %s385 = sshll.u32 [#allocation17], 4
          %s386 = int_to_ptr.vmem [resolvable:$true] %s385
          %388 = dma.hbm_to_vmem [thread:$0]  %s8, 16, %s386, [#allocation16]
        $region40: #{tpu_custom_call.1} parent=11 // pred_fallthru
          _
        // Predicated region
        $region41: #{tpu_custom_call.1} parent=11 // pred_check
          %p389 = pneg %p263
        $region42: #{tpu_custom_call.1} parent=11 // pred_check_branch
          %391 = sbr.rel (%p389) target = $region44
        $region43: #{tpu_custom_call.1} parent=11 // pred_region
          %s393 = ssub.s32 16, 16
          %394 = vsyncadd [#allocation19], %s393
          %s396 = sshll.u32 [#allocation18], 4
          %s397 = int_to_ptr.vmem [resolvable:$true] %s396
          %399 = dma.hbm_to_vmem [thread:$0]  %s9, 16, %s397, [#allocation19]
        $region44: #{tpu_custom_call.1} parent=11 // pred_fallthru
          _
      $region12: #{tpu_custom_call.1} parent=5 // pred_fallthru
        _
      %p400 = scmp.lt.s32.totalorder %s29, 2
      // Predicated region
      $region45: #{tpu_custom_call.1} parent=5 // pred_check
        %p401 = pneg %p400
      $region46: #{tpu_custom_call.1} parent=5 // pred_check_branch
        %403 = sbr.rel (%p401) target = $region48
      $region47: #{tpu_custom_call.1} parent=5 // pred_region
        // Predicated region
        $region49: #{tpu_custom_call.1} parent=47 // pred_check
          %p404 = pneg %p63
        $region50: #{tpu_custom_call.1} parent=47 // pred_check_branch
          %406 = sbr.rel (%p404) target = $region52
        $region51: #{tpu_custom_call.1} parent=47 // pred_region
          %s407 = sand.u32 %s53, 1
          %s408 = scalar_lea.sflag [#allocation4], %s407
          %s409 = sand.u32 %s53, 1
          %s410 = smul.addr %s409, 4
          %s411 = scalar_lea.vmem [#allocation3], %s410
          %s413 = ssub.s32 64, 64
          %414 = vsyncadd %s408, %s413
          %s415 = sadd.s32 %s37, %s36
          %s416 = smul.addr %s415, 64
          %s417 = scalar_lea.hbm %s0, %s416
          %s419 = sshll.u32 %s411, 4
          %s420 = int_to_ptr.vmem [resolvable:$true] %s419
          %422 = dma.hbm_to_vmem [thread:$0]  %s417, 64, %s420, %s408
        $region52: #{tpu_custom_call.1} parent=47 // pred_fallthru
          _
        // Predicated region
        $region53: #{tpu_custom_call.1} parent=47 // pred_check
          %p423 = pneg %p89
        $region54: #{tpu_custom_call.1} parent=47 // pred_check_branch
          %425 = sbr.rel (%p423) target = $region56
        $region55: #{tpu_custom_call.1} parent=47 // pred_region
          %s426 = sand.u32 %s29, 1
          %s427 = scalar_lea.sflag [#allocation7], %s426
          %s428 = sand.u32 %s79, 1
          %s429 = smul.addr %s428, 4
          %s430 = scalar_lea.vmem [#allocation6], %s429
          %s432 = ssub.s32 64, 64
          %433 = vsyncadd %s427, %s432
          %s434 = smul.addr %s36, 64
          %s435 = scalar_lea.hbm %s1, %s434
          %s437 = sshll.u32 %s430, 4
          %s438 = int_to_ptr.vmem [resolvable:$true] %s437
          %440 = dma.hbm_to_vmem [thread:$0]  %s435, 64, %s438, %s427
        $region56: #{tpu_custom_call.1} parent=47 // pred_fallthru
          _
      $region48: #{tpu_custom_call.1} parent=5 // pred_fallthru
        _
      %p441 = scmp.le.s32.totalorder 1, %s29
      %p442 = scmp.lt.s32.totalorder %s29, 3
      %p443 = pnand %p441, %p442
      %p444 = pneg %p443
      // Predicated region
      $region57: #{tpu_custom_call.1} parent=5 // pred_check
        _
      $region58: #{tpu_custom_call.1} parent=5 // pred_check_branch
        %446 = sbr.rel (%p443) target = $region60
      $region59: #{tpu_custom_call.1} parent=5 // pred_region
        %s447 = ssub.s32 %s29, 1
        %s448 = sand.u32 %s56, 1
        %s449 = scalar_lea.sflag [#allocation4], %s448
        %s450 = sand.u32 %s56, 1
        %s451 = smul.addr %s450, 4
        %s452 = scalar_lea.vmem [#allocation3], %s451
        // Predicated region
        $region61: #{tpu_custom_call.1} parent=59 // pred_check
          %p453 = pneg %p69
        $region62: #{tpu_custom_call.1} parent=59 // pred_check_branch
          %455 = sbr.rel (%p453) target = $region64
        $region63: #{tpu_custom_call.1} parent=59 // pred_region
          %456 = dma.done %s449, 64
        $region64: #{tpu_custom_call.1} parent=59 // pred_fallthru
          _
        %s457 = sand.u32 %s34, 1
        %s458 = scalar_lea.sflag [#allocation7], %s457
        %s459 = sand.u32 %s82, 1
        %s460 = smul.addr %s459, 4
        %s461 = scalar_lea.vmem [#allocation6], %s460
        // Predicated region
        $region65: #{tpu_custom_call.1} parent=59 // pred_check
          %p462 = pneg %p95
        $region66: #{tpu_custom_call.1} parent=59 // pred_check_branch
          %464 = sbr.rel (%p462) target = $region68
        $region67: #{tpu_custom_call.1} parent=59 // pred_region
          %465 = dma.done %s458, 64
        $region68: #{tpu_custom_call.1} parent=59 // pred_fallthru
          _
        // Predicated region
        $region69: #{tpu_custom_call.1} parent=59 // pred_check
          %p466 = pneg %p116
        $region70: #{tpu_custom_call.1} parent=59 // pred_check_branch
          %468 = sbr.rel (%p466) target = $region72
        $region71: #{tpu_custom_call.1} parent=59 // pred_region
          %469 = dma.done [#allocation7], 256
        $region72: #{tpu_custom_call.1} parent=59 // pred_fallthru
          _
        // Predicated region
        $region73: #{tpu_custom_call.1} parent=59 // pred_check
          %p470 = pneg %p137
        $region74: #{tpu_custom_call.1} parent=59 // pred_check_branch
          %472 = sbr.rel (%p470) target = $region76
        $region75: #{tpu_custom_call.1} parent=59 // pred_region
          %473 = dma.done [#allocation10], 16
        $region76: #{tpu_custom_call.1} parent=59 // pred_fallthru
          _
        // Predicated region
        $region77: #{tpu_custom_call.1} parent=59 // pred_check
          %p474 = pneg %p158
        $region78: #{tpu_custom_call.1} parent=59 // pred_check_branch
          %476 = sbr.rel (%p474) target = $region80
        $region79: #{tpu_custom_call.1} parent=59 // pred_region
          %477 = dma.done [#allocation10], 256
        $region80: #{tpu_custom_call.1} parent=59 // pred_fallthru
          _
        // Predicated region
        $region81: #{tpu_custom_call.1} parent=59 // pred_check
          %p478 = pneg %p179
        $region82: #{tpu_custom_call.1} parent=59 // pred_check_branch
          %480 = sbr.rel (%p478) target = $region84
        $region83: #{tpu_custom_call.1} parent=59 // pred_region
          %481 = dma.done [#allocation13], 16
        $region84: #{tpu_custom_call.1} parent=59 // pred_fallthru
          _
        // Predicated region
        $region85: #{tpu_custom_call.1} parent=59 // pred_check
          %p482 = pneg %p200
        $region86: #{tpu_custom_call.1} parent=59 // pred_check_branch
          %484 = sbr.rel (%p482) target = $region88
        $region87: #{tpu_custom_call.1} parent=59 // pred_region
          %485 = dma.done [#allocation13], 256
        $region88: #{tpu_custom_call.1} parent=59 // pred_fallthru
          _
        // Predicated region
        $region89: #{tpu_custom_call.1} parent=59 // pred_check
          %p486 = pneg %p221
        $region90: #{tpu_custom_call.1} parent=59 // pred_check_branch
          %488 = sbr.rel (%p486) target = $region92
        $region91: #{tpu_custom_call.1} parent=59 // pred_region
          %489 = dma.done [#allocation16], 16
        $region92: #{tpu_custom_call.1} parent=59 // pred_fallthru
          _
        // Predicated region
        $region93: #{tpu_custom_call.1} parent=59 // pred_check
          %p490 = pneg %p242
        $region94: #{tpu_custom_call.1} parent=59 // pred_check_branch
          %492 = sbr.rel (%p490) target = $region96
        $region95: #{tpu_custom_call.1} parent=59 // pred_region
          %493 = dma.done [#allocation16], 16
        $region96: #{tpu_custom_call.1} parent=59 // pred_fallthru
          _
        // Predicated region
        $region97: #{tpu_custom_call.1} parent=59 // pred_check
          %p494 = pneg %p263
        $region98: #{tpu_custom_call.1} parent=59 // pred_check_branch
          %496 = sbr.rel (%p494) target = $region100
        $region99: #{tpu_custom_call.1} parent=59 // pred_region
          %497 = dma.done [#allocation19], 16
        $region100: #{tpu_custom_call.1} parent=59 // pred_fallthru
          _
        %s498 = sand.u32 %s56, 1
        %s499 = scalar_lea.sflag [#allocation4], %s498
        %s500 = sand.u32 %s56, 1
        %s501 = smul.addr %s500, 4
        %s502 = scalar_lea.vmem [#allocation3], %s501
        %p503 = pneg %p69
        %p504 = pneg %p66
        %s505 = sand.u32 %s34, 1
        %s506 = scalar_lea.sflag [#allocation7], %s505
        %s507 = sand.u32 %s82, 1
        %s508 = smul.addr %s507, 4
        %s509 = scalar_lea.vmem [#allocation6], %s508
        %p510 = pneg %p95
        %p511 = pneg %p92
        %p512 = pneg %p116
        %p513 = pneg %p113
        %p514 = pneg %p137
        %p515 = pneg %p134
        %p516 = pneg %p158
        %p517 = pneg %p155
        %p518 = pneg %p179
        %p519 = pneg %p176
        %p520 = pneg %p200
        %p521 = pneg %p197
        %p522 = pneg %p221
        %p523 = pneg %p218
        %p524 = pneg %p242
        %p525 = pneg %p239
        %p526 = pneg %p263
        %p527 = pneg %p260
        %p528 = pneg %p291
        %p529 = pneg %p288
        %s530 = sand.u32 %s278, 1
        %s531 = scalar_lea.sflag [#allocation5], %s530
        %s532 = sand.u32 %s278, 1
        %s533 = smul.addr %s532, 8
        %s534 = scalar_lea.vmem [#allocation20], %s533
        %p536 = scmp.eq.s32.totalorder %s39, 0
        // Predicated region
        $region101: #{tpu_custom_call.1} parent=59 // pred_check
          %p537 = pneg %p536
        $region102: #{tpu_custom_call.1} parent=59 // pred_check_branch
          %539 = sbr.rel (%p537) target = $region104
        $region103: #{tpu_custom_call.1} parent=59 // pred_region
          %v540 = vld [vmem:[%s461] sm:$0xf]
          %v541 = vld [vmem:[#allocation11] sm:$0xf]
          %v542 = vld [vmem:[#allocation11 + $0x4] sm:$0xf]
          %v543 = vld [vmem:[#allocation11 + $0x8] sm:$0xf]
          %v544 = vld [vmem:[#allocation11 + $0xc] sm:$0xf]
          %v545 = vld [vmem:[#allocation12] sm:$0x1]
          %v547 = vlaneseq
          %v548 = vshrl.u32 %v547, 7
          %v549 = vsub.s32 0, %v548
          %v550 = vrot.slane %v545, %v549
          %v556 = vunpack.c.l.b16 %v541
          %v557 = vunpack.c.l.b16 %v542
          %v558 = vunpack.c.l.b16 %v543
          %v559 = vunpack.c.l.b16 %v544
          %v560 = vpack.c.b16 %v557, %v556
          %v561 = vpack.c.b16 %v559, %v558
          %vm564 = vcmask 261120
          %v566 = vsel %vm564, %v540, 0
          %568 = vmatprep.subr.bf16.mxu0 0
          %569 = vmatpush1.bf16.msra.mxu0 %v560
          %570 = vmatprep.subr.bf16.mxu0 0
          %571 = vmatpush1.bf16.msra.mxu0 %v561
          %572 = vmatprep.subr.bf16.mxu0 0
          %573 = vmatpush1.bf16.msra.mxu0 0
          %574 = vmatprep.subr.bf16.mxu0 0
          %575 = vmatpush1.bf16.msra.mxu0 0
          %576 = vmatprep.subr.bf16.mxu0 0
          %577 = vmatpush1.bf16.msra.mxu0 0
          %578 = vmatprep.subr.bf16.mxu0 0
          %579 = vmatpush1.bf16.msra.mxu0 0
          %580 = vmatprep.subr.bf16.mxu0 0
          %581 = vmatpush1.bf16.msra.mxu0 0
          %582 = vmatprep.subr.bf16.mxu0 0
          %583 = vmatpush1.bf16.msra.mxu0 0
          %584 = vmatprep.subr.bf16.mxu0 0
          %585 = vmatpush1.bf16.msra.mxu0 0
          %586 = vmatprep.subr.bf16.mxu0 0
          %587 = vmatpush1.bf16.msra.mxu0 0
          %588 = vmatprep.subr.bf16.mxu0 0
          %589 = vmatpush1.bf16.msra.mxu0 0
          %590 = vmatprep.subr.bf16.mxu0 0
          %591 = vmatpush1.bf16.msra.mxu0 0
          %592 = vmatprep.subr.bf16.mxu0 0
          %593 = vmatpush1.bf16.msra.mxu0 0
          %594 = vmatprep.subr.bf16.mxu0 0
          %595 = vmatpush1.bf16.msra.mxu0 0
          %596 = vmatprep.subr.bf16.mxu0 0
          %597 = vmatpush1.bf16.msra.mxu0 0
          %598 = vmatprep.subr.bf16.mxu0 0
          %599 = vmatpush1.bf16.msra.mxu0 0
          %600 = vmatprep.mubr.bf16.mxu0 0
          %601 = vmatmul.mubr.bf16.gmra.mrb[0].mxu0 %v566
          %v602 = vpop.f32.mrb[0].mxu0
          %v603 = vadd.f32 %v550, %v602
          %v604 = vpop.f32.mrb[0].mxu0
          %v605 = vpop.f32.mrb[0].mxu0
          %v606 = vpop.f32.mrb[0].mxu0
          %607 = vdwg.mxu0
          %609 = vrot.lane.b32.xlu0 %v603, 120
          %v610 = vpop.permute.xlu0 %609
          %612 = vrot.lane.b32.xlu0 %v603, 112
          %v613 = vpop.permute.xlu0 %612
          %615 = vrot.lane.b32.xlu0 %v603, 104
          %v616 = vpop.permute.xlu0 %615
          %v618 = vcombine.low %v603, %v613
          %v619 = vcombine.high %v603, %v613
          %v621 = vunpack.c.l.s4 1983009808
          %v622 = vunpack.c.0.s8 %v621
          %v623 = vlaneseq
          %v624 = vshrl.u32 %v623, 7
          %v625 = vsub.s32 %v622, %v624
          %v626 = vrot.slane %v618, %v625
          %v628 = vunpack.c.l.s4 1983009808
          %v629 = vunpack.c.0.s8 %v628
          %v630 = vlaneseq
          %v631 = vshrl.u32 %v630, 7
          %v632 = vsub.s32 %v629, %v631
          %v633 = vrot.slane %v619, %v632
          %v634 = vcombine.low %v610, %v616
          %v635 = vcombine.high %v610, %v616
          %v637 = vunpack.c.l.s4 1983009808
          %v638 = vunpack.c.0.s8 %v637
          %v639 = vlaneseq
          %v640 = vshrl.u32 %v639, 7
          %v641 = vsub.s32 %v638, %v640
          %v642 = vrot.slane %v634, %v641
          %v644 = vunpack.c.l.s4 1983009808
          %v645 = vunpack.c.0.s8 %v644
          %v646 = vlaneseq
          %v647 = vshrl.u32 %v646, 7
          %v648 = vsub.s32 %v645, %v647
          %v649 = vrot.slane %v635, %v648
          %v650 = vcombine.low %v626, %v642
          %v651 = vcombine.high %v626, %v642
          %v653 = vunpack.c.l.s4 1934713408
          %v654 = vunpack.c.0.s8 %v653
          %v655 = vlaneseq
          %v656 = vshrl.u32 %v655, 7
          %v657 = vsub.s32 %v654, %v656
          %v658 = vrot.slane %v650, %v657
          %v660 = vunpack.c.l.s4 1934713408
          %v661 = vunpack.c.0.s8 %v660
          %v662 = vlaneseq
          %v663 = vshrl.u32 %v662, 7
          %v664 = vsub.s32 %v661, %v663
          %v665 = vrot.slane %v651, %v664
          %v666 = vcombine.low %v633, %v649
          %v667 = vcombine.high %v633, %v649
          %v669 = vunpack.c.l.s4 1934713408
          %v670 = vunpack.c.0.s8 %v669
          %v671 = vlaneseq
          %v672 = vshrl.u32 %v671, 7
          %v673 = vsub.s32 %v670, %v672
          %v674 = vrot.slane %v666, %v673
          %v676 = vunpack.c.l.s4 1934713408
          %v677 = vunpack.c.0.s8 %v676
          %v678 = vlaneseq
          %v679 = vshrl.u32 %v678, 7
          %v680 = vsub.s32 %v677, %v679
          %v681 = vrot.slane %v667, %v680
          %v682 = vcombine.high %v658, 0.0
          %v683 = vcombine.high %v665, 0.0
          %v684 = vcombine.high %v674, 0.0
          %v685 = vcombine.high %v681, 0.0
          %686 = vrot.lane.b32.xlu0 %v603, 96
          %v687 = vpop.permute.xlu0 %686
          %688 = vrot.lane.b32.xlu0 %v610, 96
          %v689 = vpop.permute.xlu0 %688
          %690 = vrot.lane.b32.xlu0 %v613, 96
          %v691 = vpop.permute.xlu0 %690
          %692 = vrot.lane.b32.xlu0 %v616, 96
          %v693 = vpop.permute.xlu0 %692
          %v698 = vcombine.low %v687, %v691
          %v699 = vcombine.high %v687, %v691
          %v701 = vunpack.c.l.s4 1983009808
          %v702 = vunpack.c.0.s8 %v701
          %v703 = vlaneseq
          %v704 = vshrl.u32 %v703, 7
          %v705 = vsub.s32 %v702, %v704
          %v706 = vrot.slane %v698, %v705
          %v708 = vunpack.c.l.s4 1983009808
          %v709 = vunpack.c.0.s8 %v708
          %v710 = vlaneseq
          %v711 = vshrl.u32 %v710, 7
          %v712 = vsub.s32 %v709, %v711
          %v713 = vrot.slane %v699, %v712
          %v714 = vcombine.low %v689, %v693
          %v715 = vcombine.high %v689, %v693
          %v717 = vunpack.c.l.s4 1983009808
          %v718 = vunpack.c.0.s8 %v717
          %v719 = vlaneseq
          %v720 = vshrl.u32 %v719, 7
          %v721 = vsub.s32 %v718, %v720
          %v722 = vrot.slane %v714, %v721
          %v724 = vunpack.c.l.s4 1983009808
          %v725 = vunpack.c.0.s8 %v724
          %v726 = vlaneseq
          %v727 = vshrl.u32 %v726, 7
          %v728 = vsub.s32 %v725, %v727
          %v729 = vrot.slane %v715, %v728
          %v730 = vcombine.low %v706, %v722
          %v731 = vcombine.high %v706, %v722
          %v733 = vunpack.c.l.s4 1934713408
          %v734 = vunpack.c.0.s8 %v733
          %v735 = vlaneseq
          %v736 = vshrl.u32 %v735, 7
          %v737 = vsub.s32 %v734, %v736
          %v738 = vrot.slane %v730, %v737
          %v740 = vunpack.c.l.s4 1934713408
          %v741 = vunpack.c.0.s8 %v740
          %v742 = vlaneseq
          %v743 = vshrl.u32 %v742, 7
          %v744 = vsub.s32 %v741, %v743
          %v745 = vrot.slane %v731, %v744
          %v746 = vcombine.low %v713, %v729
          %v747 = vcombine.high %v713, %v729
          %v749 = vunpack.c.l.s4 1934713408
          %v750 = vunpack.c.0.s8 %v749
          %v751 = vlaneseq
          %v752 = vshrl.u32 %v751, 7
          %v753 = vsub.s32 %v750, %v752
          %v754 = vrot.slane %v746, %v753
          %v756 = vunpack.c.l.s4 1934713408
          %v757 = vunpack.c.0.s8 %v756
          %v758 = vlaneseq
          %v759 = vshrl.u32 %v758, 7
          %v760 = vsub.s32 %v757, %v759
          %v761 = vrot.slane %v747, %v760
          %v762 = vcombine.high %v738, 0.0
          %v763 = vcombine.high %v745, 0.0
          %v764 = vcombine.high %v754, 0.0
          %v765 = vcombine.high %v761, 0.0
          %v766 = vcombine.low %v658, %v665
          %v768 = vunpack.c.l.s4 1983009808
          %v769 = vunpack.c.0.s8 %v768
          %v770 = vlaneseq
          %v771 = vshrl.u32 %v770, 7
          %v772 = vsub.s32 %v769, %v771
          %v773 = vrot.slane %v766, %v772
          %v774 = vcombine.low %v682, %v683
          %v776 = vunpack.c.l.s4 1983009808
          %v777 = vunpack.c.0.s8 %v776
          %v778 = vlaneseq
          %v779 = vshrl.u32 %v778, 7
          %v780 = vsub.s32 %v777, %v779
          %v781 = vrot.slane %v774, %v780
          %v782 = vcombine.low %v674, %v681
          %v784 = vunpack.c.l.s4 1983009808
          %v785 = vunpack.c.0.s8 %v784
          %v786 = vlaneseq
          %v787 = vshrl.u32 %v786, 7
          %v788 = vsub.s32 %v785, %v787
          %v789 = vrot.slane %v782, %v788
          %v790 = vcombine.low %v684, %v685
          %v792 = vunpack.c.l.s4 1983009808
          %v793 = vunpack.c.0.s8 %v792
          %v794 = vlaneseq
          %v795 = vshrl.u32 %v794, 7
          %v796 = vsub.s32 %v793, %v795
          %v797 = vrot.slane %v790, %v796
          %v798 = vcombine.low %v773, %v781
          %v799 = vcombine.high %v773, %v781
          %v801 = vunpack.c.l.s4 1934713408
          %v802 = vunpack.c.0.s8 %v801
          %v803 = vlaneseq
          %v804 = vshrl.u32 %v803, 7
          %v805 = vsub.s32 %v802, %v804
          %v806 = vrot.slane %v798, %v805
          %v808 = vunpack.c.l.s4 1934713408
          %v809 = vunpack.c.0.s8 %v808
          %v810 = vlaneseq
          %v811 = vshrl.u32 %v810, 7
          %v812 = vsub.s32 %v809, %v811
          %v813 = vrot.slane %v799, %v812
          %v814 = vcombine.low %v789, %v797
          %v815 = vcombine.high %v789, %v797
          %v817 = vunpack.c.l.s4 1934713408
          %v818 = vunpack.c.0.s8 %v817
          %v819 = vlaneseq
          %v820 = vshrl.u32 %v819, 7
          %v821 = vsub.s32 %v818, %v820
          %v822 = vrot.slane %v814, %v821
          %v824 = vunpack.c.l.s4 1934713408
          %v825 = vunpack.c.0.s8 %v824
          %v826 = vlaneseq
          %v827 = vshrl.u32 %v826, 7
          %v828 = vsub.s32 %v825, %v827
          %v829 = vrot.slane %v815, %v828
          %v830 = vcombine.low %v806, %v822
          %v831 = vcombine.high %v806, %v822
          %v832 = vcombine.low %v813, %v829
          %v833 = vcombine.high %v813, %v829
          %v834 = vpack.c.bf16 %v830, %v830
          %v835 = vpack.c.bf16 %v831, %v831
          %v836 = vpack.c.bf16 %v832, %v832
          %v837 = vpack.c.bf16 %v833, %v833
          %vm838 = vcmask 60416
          %839 = vst.msk [vmem:[#allocation2] sm:$0xf] %vm838, %v834
          %840 = vst.msk [vmem:[#allocation2 + $0x4] sm:$0xf] %vm838, %v835
          %841 = vst.msk [vmem:[#allocation2 + $0x8] sm:$0xf] %vm838, %v836
          %842 = vst.msk [vmem:[#allocation2 + $0xc] sm:$0xf] %vm838, %v837
          %v843 = vcombine.low %v738, %v745
          %v845 = vunpack.c.l.s4 1983009808
          %v846 = vunpack.c.0.s8 %v845
          %v847 = vlaneseq
          %v848 = vshrl.u32 %v847, 7
          %v849 = vsub.s32 %v846, %v848
          %v850 = vrot.slane %v843, %v849
          %v851 = vcombine.low %v762, %v763
          %v853 = vunpack.c.l.s4 1983009808
          %v854 = vunpack.c.0.s8 %v853
          %v855 = vlaneseq
          %v856 = vshrl.u32 %v855, 7
          %v857 = vsub.s32 %v854, %v856
          %v858 = vrot.slane %v851, %v857
          %v859 = vcombine.low %v754, %v761
          %v861 = vunpack.c.l.s4 1983009808
          %v862 = vunpack.c.0.s8 %v861
          %v863 = vlaneseq
          %v864 = vshrl.u32 %v863, 7
          %v865 = vsub.s32 %v862, %v864
          %v866 = vrot.slane %v859, %v865
          %v867 = vcombine.low %v764, %v765
          %v869 = vunpack.c.l.s4 1983009808
          %v870 = vunpack.c.0.s8 %v869
          %v871 = vlaneseq
          %v872 = vshrl.u32 %v871, 7
          %v873 = vsub.s32 %v870, %v872
          %v874 = vrot.slane %v867, %v873
          %v875 = vcombine.low %v850, %v858
          %v876 = vcombine.high %v850, %v858
          %v878 = vunpack.c.l.s4 1934713408
          %v879 = vunpack.c.0.s8 %v878
          %v880 = vlaneseq
          %v881 = vshrl.u32 %v880, 7
          %v882 = vsub.s32 %v879, %v881
          %v883 = vrot.slane %v875, %v882
          %v885 = vunpack.c.l.s4 1934713408
          %v886 = vunpack.c.0.s8 %v885
          %v887 = vlaneseq
          %v888 = vshrl.u32 %v887, 7
          %v889 = vsub.s32 %v886, %v888
          %v890 = vrot.slane %v876, %v889
          %v891 = vcombine.low %v866, %v874
          %v892 = vcombine.high %v866, %v874
          %v894 = vunpack.c.l.s4 1934713408
          %v895 = vunpack.c.0.s8 %v894
          %v896 = vlaneseq
          %v897 = vshrl.u32 %v896, 7
          %v898 = vsub.s32 %v895, %v897
          %v899 = vrot.slane %v891, %v898
          %v901 = vunpack.c.l.s4 1934713408
          %v902 = vunpack.c.0.s8 %v901
          %v903 = vlaneseq
          %v904 = vshrl.u32 %v903, 7
          %v905 = vsub.s32 %v902, %v904
          %v906 = vrot.slane %v892, %v905
          %v907 = vcombine.low %v883, %v899
          %v908 = vcombine.high %v883, %v899
          %v909 = vcombine.low %v890, %v906
          %v910 = vcombine.high %v890, %v906
          %v911 = vpack.c.bf16 %v907, %v907
          %v912 = vpack.c.bf16 %v908, %v908
          %v913 = vpack.c.bf16 %v909, %v909
          %v914 = vpack.c.bf16 %v910, %v910
          %s915 = scalar_lea.vmem [#allocation2], 16
          %916 = vst.msk [vmem:[%s915] sm:$0xf] %vm838, %v911
          %917 = vst.msk [vmem:[%s915 + $0x4] sm:$0xf] %vm838, %v912
          %918 = vst.msk [vmem:[%s915 + $0x8] sm:$0xf] %vm838, %v913
          %919 = vst.msk [vmem:[%s915 + $0xc] sm:$0xf] %vm838, %v914
        $region104: #{tpu_custom_call.1} parent=59 // pred_fallthru
          _
        %v920 = vld [vmem:[%s452] sm:$0xf]
        %v921 = vld [vmem:[#allocation8] sm:$0xf]
        %v922 = vld [vmem:[#allocation8 + $0x4] sm:$0xf]
        %v923 = vld [vmem:[#allocation8 + $0x8] sm:$0xf]
        %v924 = vld [vmem:[#allocation8 + $0xc] sm:$0xf]
        %v925 = vld [vmem:[#allocation9] sm:$0x1]
        %v927 = vlaneseq
        %v928 = vshrl.u32 %v927, 7
        %v929 = vsub.s32 0, %v928
        %v930 = vrot.slane %v925, %v929
        %v936 = vunpack.c.l.b16 %v921
        %v937 = vunpack.c.l.b16 %v922
        %v938 = vunpack.c.l.b16 %v923
        %v939 = vunpack.c.l.b16 %v924
        %v940 = vpack.c.b16 %v937, %v936
        %v941 = vpack.c.b16 %v939, %v938
        %vm944 = vcmask 261120
        %v946 = vsel %vm944, %v920, 0
        %948 = vmatprep.subr.bf16.mxu0 0
        %949 = vmatpush1.bf16.msra.mxu0 %v940
        %950 = vmatprep.subr.bf16.mxu0 0
        %951 = vmatpush1.bf16.msra.mxu0 %v941
        %952 = vmatprep.subr.bf16.mxu0 0
        %953 = vmatpush1.bf16.msra.mxu0 0
        %954 = vmatprep.subr.bf16.mxu0 0
        %955 = vmatpush1.bf16.msra.mxu0 0
        %956 = vmatprep.subr.bf16.mxu0 0
        %957 = vmatpush1.bf16.msra.mxu0 0
        %958 = vmatprep.subr.bf16.mxu0 0
        %959 = vmatpush1.bf16.msra.mxu0 0
        %960 = vmatprep.subr.bf16.mxu0 0
        %961 = vmatpush1.bf16.msra.mxu0 0
        %962 = vmatprep.subr.bf16.mxu0 0
        %963 = vmatpush1.bf16.msra.mxu0 0
        %964 = vmatprep.subr.bf16.mxu0 0
        %965 = vmatpush1.bf16.msra.mxu0 0
        %966 = vmatprep.subr.bf16.mxu0 0
        %967 = vmatpush1.bf16.msra.mxu0 0
        %968 = vmatprep.subr.bf16.mxu0 0
        %969 = vmatpush1.bf16.msra.mxu0 0
        %970 = vmatprep.subr.bf16.mxu0 0
        %971 = vmatpush1.bf16.msra.mxu0 0
        %972 = vmatprep.subr.bf16.mxu0 0
        %973 = vmatpush1.bf16.msra.mxu0 0
        %974 = vmatprep.subr.bf16.mxu0 0
        %975 = vmatpush1.bf16.msra.mxu0 0
        %976 = vmatprep.subr.bf16.mxu0 0
        %977 = vmatpush1.bf16.msra.mxu0 0
        %978 = vmatprep.subr.bf16.mxu0 0
        %979 = vmatpush1.bf16.msra.mxu0 0
        %980 = vmatprep.mubr.bf16.mxu0 0
        %981 = vmatmul.mubr.bf16.gmra.mrb[0].mxu0 %v946
        %v982 = vpop.f32.mrb[0].mxu0
        %v983 = vadd.f32 %v930, %v982
        %v984 = vpop.f32.mrb[0].mxu0
        %v985 = vpop.f32.mrb[0].mxu0
        %v986 = vpop.f32.mrb[0].mxu0
        %987 = vdwg.mxu0
        %989 = vrot.lane.b32.xlu0 %v983, 120
        %v990 = vpop.permute.xlu0 %989
        %992 = vrot.lane.b32.xlu0 %v983, 112
        %v993 = vpop.permute.xlu0 %992
        %995 = vrot.lane.b32.xlu0 %v983, 104
        %v996 = vpop.permute.xlu0 %995
        %v998 = vcombine.low %v983, %v993
        %v999 = vcombine.high %v983, %v993
        %v1001 = vunpack.c.l.s4 1983009808
        %v1002 = vunpack.c.0.s8 %v1001
        %v1003 = vlaneseq
        %v1004 = vshrl.u32 %v1003, 7
        %v1005 = vsub.s32 %v1002, %v1004
        %v1006 = vrot.slane %v998, %v1005
        %v1008 = vunpack.c.l.s4 1983009808
        %v1009 = vunpack.c.0.s8 %v1008
        %v1010 = vlaneseq
        %v1011 = vshrl.u32 %v1010, 7
        %v1012 = vsub.s32 %v1009, %v1011
        %v1013 = vrot.slane %v999, %v1012
        %v1014 = vcombine.low %v990, %v996
        %v1015 = vcombine.high %v990, %v996
        %v1017 = vunpack.c.l.s4 1983009808
        %v1018 = vunpack.c.0.s8 %v1017
        %v1019 = vlaneseq
        %v1020 = vshrl.u32 %v1019, 7
        %v1021 = vsub.s32 %v1018, %v1020
        %v1022 = vrot.slane %v1014, %v1021
        %v1024 = vunpack.c.l.s4 1983009808
        %v1025 = vunpack.c.0.s8 %v1024
        %v1026 = vlaneseq
        %v1027 = vshrl.u32 %v1026, 7
        %v1028 = vsub.s32 %v1025, %v1027
        %v1029 = vrot.slane %v1015, %v1028
        %v1030 = vcombine.low %v1006, %v1022
        %v1031 = vcombine.high %v1006, %v1022
        %v1033 = vunpack.c.l.s4 1934713408
        %v1034 = vunpack.c.0.s8 %v1033
        %v1035 = vlaneseq
        %v1036 = vshrl.u32 %v1035, 7
        %v1037 = vsub.s32 %v1034, %v1036
        %v1038 = vrot.slane %v1030, %v1037
        %v1040 = vunpack.c.l.s4 1934713408
        %v1041 = vunpack.c.0.s8 %v1040
        %v1042 = vlaneseq
        %v1043 = vshrl.u32 %v1042, 7
        %v1044 = vsub.s32 %v1041, %v1043
        %v1045 = vrot.slane %v1031, %v1044
        %v1046 = vcombine.low %v1013, %v1029
        %v1047 = vcombine.high %v1013, %v1029
        %v1049 = vunpack.c.l.s4 1934713408
        %v1050 = vunpack.c.0.s8 %v1049
        %v1051 = vlaneseq
        %v1052 = vshrl.u32 %v1051, 7
        %v1053 = vsub.s32 %v1050, %v1052
        %v1054 = vrot.slane %v1046, %v1053
        %v1056 = vunpack.c.l.s4 1934713408
        %v1057 = vunpack.c.0.s8 %v1056
        %v1058 = vlaneseq
        %v1059 = vshrl.u32 %v1058, 7
        %v1060 = vsub.s32 %v1057, %v1059
        %v1061 = vrot.slane %v1047, %v1060
        %v1062 = vcombine.high %v1038, 0.0
        %v1063 = vcombine.high %v1045, 0.0
        %v1064 = vcombine.high %v1054, 0.0
        %v1065 = vcombine.high %v1061, 0.0
        %v1066 = vcombine.low %v1038, %v1045
        %v1068 = vunpack.c.l.s4 1983009808
        %v1069 = vunpack.c.0.s8 %v1068
        %v1070 = vlaneseq
        %v1071 = vshrl.u32 %v1070, 7
        %v1072 = vsub.s32 %v1069, %v1071
        %v1073 = vrot.slane %v1066, %v1072
        %v1074 = vcombine.low %v1062, %v1063
        %v1076 = vunpack.c.l.s4 1983009808
        %v1077 = vunpack.c.0.s8 %v1076
        %v1078 = vlaneseq
        %v1079 = vshrl.u32 %v1078, 7
        %v1080 = vsub.s32 %v1077, %v1079
        %v1081 = vrot.slane %v1074, %v1080
        %v1082 = vcombine.low %v1054, %v1061
        %v1084 = vunpack.c.l.s4 1983009808
        %v1085 = vunpack.c.0.s8 %v1084
        %v1086 = vlaneseq
        %v1087 = vshrl.u32 %v1086, 7
        %v1088 = vsub.s32 %v1085, %v1087
        %v1089 = vrot.slane %v1082, %v1088
        %v1090 = vcombine.low %v1064, %v1065
        %v1092 = vunpack.c.l.s4 1983009808
        %v1093 = vunpack.c.0.s8 %v1092
        %v1094 = vlaneseq
        %v1095 = vshrl.u32 %v1094, 7
        %v1096 = vsub.s32 %v1093, %v1095
        %v1097 = vrot.slane %v1090, %v1096
        %v1098 = vcombine.low %v1073, %v1081
        %v1099 = vcombine.high %v1073, %v1081
        %v1101 = vunpack.c.l.s4 1934713408
        %v1102 = vunpack.c.0.s8 %v1101
        %v1103 = vlaneseq
        %v1104 = vshrl.u32 %v1103, 7
        %v1105 = vsub.s32 %v1102, %v1104
        %v1106 = vrot.slane %v1098, %v1105
        %v1108 = vunpack.c.l.s4 1934713408
        %v1109 = vunpack.c.0.s8 %v1108
        %v1110 = vlaneseq
        %v1111 = vshrl.u32 %v1110, 7
        %v1112 = vsub.s32 %v1109, %v1111
        %v1113 = vrot.slane %v1099, %v1112
        %v1114 = vcombine.low %v1089, %v1097
        %v1115 = vcombine.high %v1089, %v1097
        %v1117 = vunpack.c.l.s4 1934713408
        %v1118 = vunpack.c.0.s8 %v1117
        %v1119 = vlaneseq
        %v1120 = vshrl.u32 %v1119, 7
        %v1121 = vsub.s32 %v1118, %v1120
        %v1122 = vrot.slane %v1114, %v1121
        %v1124 = vunpack.c.l.s4 1934713408
        %v1125 = vunpack.c.0.s8 %v1124
        %v1126 = vlaneseq
        %v1127 = vshrl.u32 %v1126, 7
        %v1128 = vsub.s32 %v1125, %v1127
        %v1129 = vrot.slane %v1115, %v1128
        %v1130 = vcombine.low %v1106, %v1122
        %v1131 = vcombine.high %v1106, %v1122
        %v1132 = vcombine.low %v1113, %v1129
        %v1133 = vcombine.high %v1113, %v1129
        %v1134 = vpack.c.bf16 %v1130, %v1130
        %v1135 = vpack.c.bf16 %v1131, %v1131
        %v1136 = vpack.c.bf16 %v1132, %v1132
        %v1137 = vpack.c.bf16 %v1133, %v1133
        %v1138 = vld [vmem:[#allocation2] sm:$0xf]
        %v1139 = vld [vmem:[#allocation2 + $0x4] sm:$0xf]
        %v1140 = vld [vmem:[#allocation2 + $0x8] sm:$0xf]
        %v1141 = vld [vmem:[#allocation2 + $0xc] sm:$0xf]
        %s1142 = scalar_lea.vmem [#allocation2], 16
        %v1143 = vld [vmem:[%s1142] sm:$0xf]
        %v1144 = vld [vmem:[%s1142 + $0x4] sm:$0xf]
        %v1145 = vld [vmem:[%s1142 + $0x8] sm:$0xf]
        %v1146 = vld [vmem:[%s1142 + $0xc] sm:$0xf]
        %vm1147 = vcmask 64512
        %v1149 = vsel %vm1147, %v1134, 0
        %v1152 = vsel %vm1147, %v1138, 0
        %1154 = vmatprep.subr.bf16.mxu0 0
        %1155 = vmatpush1.bf16.xpose.msra.mxu0 %v1152
        %1156 = vmatprep.subr.bf16.mxu0 0
        %1157 = vmatpush1.bf16.xpose.msra.mxu0 0
        %1158 = vmatprep.subr.bf16.mxu0 0
        %1159 = vmatpush1.bf16.xpose.msra.mxu0 0
        %1160 = vmatprep.subr.bf16.mxu0 0
        %1161 = vmatpush1.bf16.xpose.msra.mxu0 0
        %1162 = vmatprep.subr.bf16.mxu0 0
        %1163 = vmatpush1.bf16.xpose.msra.mxu0 0
        %1164 = vmatprep.subr.bf16.mxu0 0
        %1165 = vmatpush1.bf16.xpose.msra.mxu0 0
        %1166 = vmatprep.subr.bf16.mxu0 0
        %1167 = vmatpush1.bf16.xpose.msra.mxu0 0
        %1168 = vmatprep.subr.bf16.mxu0 0
        %1169 = vmatpush1.bf16.xpose.msra.mxu0 0
        %1170 = vmatprep.subr.bf16.mxu0 0
        %1171 = vmatpush1.bf16.xpose.msra.mxu0 0
        %1172 = vmatprep.subr.bf16.mxu0 0
        %1173 = vmatpush1.bf16.xpose.msra.mxu0 0
        %1174 = vmatprep.subr.bf16.mxu0 0
        %1175 = vmatpush1.bf16.xpose.msra.mxu0 0
        %1176 = vmatprep.subr.bf16.mxu0 0
        %1177 = vmatpush1.bf16.xpose.msra.mxu0 0
        %1178 = vmatprep.subr.bf16.mxu0 0
        %1179 = vmatpush1.bf16.xpose.msra.mxu0 0
        %1180 = vmatprep.subr.bf16.mxu0 0
        %1181 = vmatpush1.bf16.xpose.msra.mxu0 0
        %1182 = vmatprep.subr.bf16.mxu0 0
        %1183 = vmatpush1.bf16.xpose.msra.mxu0 0
        %1184 = vmatprep.subr.bf16.mxu0 0
        %1185 = vmatpush1.bf16.xpose.msra.mxu0 0
        %1186 = vmatprep.mubr.bf16.mxu0 0
        %1187 = vmatmul.mubr.bf16.gmra.mrb[0].mxu0 %v1149
        %v1188 = vpop.f32.mrb[0].mxu0
        %v1189 = vadd.f32 0.0, %v1188
        %v1190 = vpop.f32.mrb[0].mxu0
        %v1191 = vpop.f32.mrb[0].mxu0
        %v1192 = vpop.f32.mrb[0].mxu0
        %1193 = vdwg.mxu0
        %v1195 = vsel %vm1147, %v1135, 0
        %v1198 = vsel %vm1147, %v1139, 0
        %1200 = vmatprep.subr.bf16.mxu0 0
        %1201 = vmatpush1.bf16.xpose.msra.mxu0 %v1198
        %1202 = vmatprep.subr.bf16.mxu0 0
        %1203 = vmatpush1.bf16.xpose.msra.mxu0 0
        %1204 = vmatprep.subr.bf16.mxu0 0
        %1205 = vmatpush1.bf16.xpose.msra.mxu0 0
        %1206 = vmatprep.subr.bf16.mxu0 0
        %1207 = vmatpush1.bf16.xpose.msra.mxu0 0
        %1208 = vmatprep.subr.bf16.mxu0 0
        %1209 = vmatpush1.bf16.xpose.msra.mxu0 0
        %1210 = vmatprep.subr.bf16.mxu0 0
        %1211 = vmatpush1.bf16.xpose.msra.mxu0 0
        %1212 = vmatprep.subr.bf16.mxu0 0
        %1213 = vmatpush1.bf16.xpose.msra.mxu0 0
        %1214 = vmatprep.subr.bf16.mxu0 0
        %1215 = vmatpush1.bf16.xpose.msra.mxu0 0
        %1216 = vmatprep.subr.bf16.mxu0 0
        %1217 = vmatpush1.bf16.xpose.msra.mxu0 0
        %1218 = vmatprep.subr.bf16.mxu0 0
        %1219 = vmatpush1.bf16.xpose.msra.mxu0 0
        %1220 = vmatprep.subr.bf16.mxu0 0
        %1221 = vmatpush1.bf16.xpose.msra.mxu0 0
        %1222 = vmatprep.subr.bf16.mxu0 0
        %1223 = vmatpush1.bf16.xpose.msra.mxu0 0
        %1224 = vmatprep.subr.bf16.mxu0 0
        %1225 = vmatpush1.bf16.xpose.msra.mxu0 0
        %1226 = vmatprep.subr.bf16.mxu0 0
        %1227 = vmatpush1.bf16.xpose.msra.mxu0 0
        %1228 = vmatprep.subr.bf16.mxu0 0
        %1229 = vmatpush1.bf16.xpose.msra.mxu0 0
        %1230 = vmatprep.subr.bf16.mxu0 0
        %1231 = vmatpush1.bf16.xpose.msra.mxu0 0
        %1232 = vmatprep.mubr.bf16.mxu0 0
        %1233 = vmatmul.mubr.bf16.gmra.mrb[0].mxu0 %v1195
        %v1234 = vpop.f32.mrb[0].mxu0
        %v1235 = vadd.f32 0.0, %v1234
        %v1236 = vpop.f32.mrb[0].mxu0
        %v1237 = vpop.f32.mrb[0].mxu0
        %v1238 = vpop.f32.mrb[0].mxu0
        %1239 = vdwg.mxu0
        %v1241 = vsel %vm1147, %v1136, 0
        %v1244 = vsel %vm1147, %v1140, 0
        %1246 = vmatprep.subr.bf16.mxu0 0
        %1247 = vmatpush1.bf16.xpose.msra.mxu0 %v1244
        %1248 = vmatprep.subr.bf16.mxu0 0
        %1249 = vmatpush1.bf16.xpose.msra.mxu0 0
        %1250 = vmatprep.subr.bf16.mxu0 0
        %1251 = vmatpush1.bf16.xpose.msra.mxu0 0
        %1252 = vmatprep.subr.bf16.mxu0 0
        %1253 = vmatpush1.bf16.xpose.msra.mxu0 0
        %1254 = vmatprep.subr.bf16.mxu0 0
        %1255 = vmatpush1.bf16.xpose.msra.mxu0 0
        %1256 = vmatprep.subr.bf16.mxu0 0
        %1257 = vmatpush1.bf16.xpose.msra.mxu0 0
        %1258 = vmatprep.subr.bf16.mxu0 0
        %1259 = vmatpush1.bf16.xpose.msra.mxu0 0
        %1260 = vmatprep.subr.bf16.mxu0 0
        %1261 = vmatpush1.bf16.xpose.msra.mxu0 0
        %1262 = vmatprep.subr.bf16.mxu0 0
        %1263 = vmatpush1.bf16.xpose.msra.mxu0 0
        %1264 = vmatprep.subr.bf16.mxu0 0
        %1265 = vmatpush1.bf16.xpose.msra.mxu0 0
        %1266 = vmatprep.subr.bf16.mxu0 0
        %1267 = vmatpush1.bf16.xpose.msra.mxu0 0
        %1268 = vmatprep.subr.bf16.mxu0 0
        %1269 = vmatpush1.bf16.xpose.msra.mxu0 0
        %1270 = vmatprep.subr.bf16.mxu0 0
        %1271 = vmatpush1.bf16.xpose.msra.mxu0 0
        %1272 = vmatprep.subr.bf16.mxu0 0
        %1273 = vmatpush1.bf16.xpose.msra.mxu0 0
        %1274 = vmatprep.subr.bf16.mxu0 0
        %1275 = vmatpush1.bf16.xpose.msra.mxu0 0
        %1276 = vmatprep.subr.bf16.mxu0 0
        %1277 = vmatpush1.bf16.xpose.msra.mxu0 0
        %1278 = vmatprep.mubr.bf16.mxu0 0
        %1279 = vmatmul.mubr.bf16.gmra.mrb[0].mxu0 %v1241
        %v1280 = vpop.f32.mrb[0].mxu0
        %v1281 = vadd.f32 0.0, %v1280
        %v1282 = vpop.f32.mrb[0].mxu0
        %v1283 = vpop.f32.mrb[0].mxu0
        %v1284 = vpop.f32.mrb[0].mxu0
        %1285 = vdwg.mxu0
        %v1287 = vsel %vm1147, %v1137, 0
        %v1290 = vsel %vm1147, %v1141, 0
        %1292 = vmatprep.subr.bf16.mxu0 0
        %1293 = vmatpush1.bf16.xpose.msra.mxu0 %v1290
        %1294 = vmatprep.subr.bf16.mxu0 0
        %1295 = vmatpush1.bf16.xpose.msra.mxu0 0
        %1296 = vmatprep.subr.bf16.mxu0 0
        %1297 = vmatpush1.bf16.xpose.msra.mxu0 0
        %1298 = vmatprep.subr.bf16.mxu0 0
        %1299 = vmatpush1.bf16.xpose.msra.mxu0 0
        %1300 = vmatprep.subr.bf16.mxu0 0
        %1301 = vmatpush1.bf16.xpose.msra.mxu0 0
        %1302 = vmatprep.subr.bf16.mxu0 0
        %1303 = vmatpush1.bf16.xpose.msra.mxu0 0
        %1304 = vmatprep.subr.bf16.mxu0 0
        %1305 = vmatpush1.bf16.xpose.msra.mxu0 0
        %1306 = vmatprep.subr.bf16.mxu0 0
        %1307 = vmatpush1.bf16.xpose.msra.mxu0 0
        %1308 = vmatprep.subr.bf16.mxu0 0
        %1309 = vmatpush1.bf16.xpose.msra.mxu0 0
        %1310 = vmatprep.subr.bf16.mxu0 0
        %1311 = vmatpush1.bf16.xpose.msra.mxu0 0
        %1312 = vmatprep.subr.bf16.mxu0 0
        %1313 = vmatpush1.bf16.xpose.msra.mxu0 0
        %1314 = vmatprep.subr.bf16.mxu0 0
        %1315 = vmatpush1.bf16.xpose.msra.mxu0 0
        %1316 = vmatprep.subr.bf16.mxu0 0
        %1317 = vmatpush1.bf16.xpose.msra.mxu0 0
        %1318 = vmatprep.subr.bf16.mxu0 0
        %1319 = vmatpush1.bf16.xpose.msra.mxu0 0
        %1320 = vmatprep.subr.bf16.mxu0 0
        %1321 = vmatpush1.bf16.xpose.msra.mxu0 0
        %1322 = vmatprep.subr.bf16.mxu0 0
        %1323 = vmatpush1.bf16.xpose.msra.mxu0 0
        %1324 = vmatprep.mubr.bf16.mxu0 0
        %1325 = vmatmul.mubr.bf16.gmra.mrb[0].mxu0 %v1287
        %v1326 = vpop.f32.mrb[0].mxu0
        %v1327 = vadd.f32 0.0, %v1326
        %v1328 = vpop.f32.mrb[0].mxu0
        %v1329 = vpop.f32.mrb[0].mxu0
        %v1330 = vpop.f32.mrb[0].mxu0
        %1331 = vdwg.mxu0
        %v1332 = vsel %vm1147, %v1189, -inf
        %1333 = vmax.xlane.f32.xlu0 %v1332
        %v1334 = vpop.xlane.xlu0 %1333
        %v1335 = vsel %vm1147, %v1235, -inf
        %1336 = vmax.xlane.f32.xlu0 %v1335
        %v1337 = vpop.xlane.xlu0 %1336
        %v1338 = vsel %vm1147, %v1281, -inf
        %1339 = vmax.xlane.f32.xlu0 %v1338
        %v1340 = vpop.xlane.xlu0 %1339
        %v1341 = vsel %vm1147, %v1327, -inf
        %1342 = vmax.xlane.f32.xlu0 %v1341
        %v1343 = vpop.xlane.xlu0 %1342
        %v1344 = vsub.f32 %v1189, %v1334
        %v1345 = vsub.f32 %v1235, %v1337
        %v1346 = vsub.f32 %v1281, %v1340
        %v1347 = vsub.f32 %v1327, %v1343
        %v1348 = vmul.f32 %v1344, 1.442695
        %v1349 = vpow.pop %v1348
        %v1350 = vmul.f32 %v1345, 1.442695
        %v1351 = vpow.pop %v1350
        %v1352 = vmul.f32 %v1346, 1.442695
        %v1353 = vpow.pop %v1352
        %v1354 = vmul.f32 %v1347, 1.442695
        %v1355 = vpow.pop %v1354
        %v1356 = vsel %vm1147, %v1349, 0.0
        %1357 = vadd.xlane.f32.xlu0 %v1356
        %v1358 = vpop.xlane.xlu0 %1357
        %v1359 = vsel %vm1147, %v1351, 0.0
        %1360 = vadd.xlane.f32.xlu0 %v1359
        %v1361 = vpop.xlane.xlu0 %1360
        %v1362 = vsel %vm1147, %v1353, 0.0
        %1363 = vadd.xlane.f32.xlu0 %v1362
        %v1364 = vpop.xlane.xlu0 %1363
        %v1365 = vsel %vm1147, %v1355, 0.0
        %1366 = vadd.xlane.f32.xlu0 %v1365
        %v1367 = vpop.xlane.xlu0 %1366
        %v1368 = vpack.c.bf16 %v1349, %v1349
        %v1369 = vpack.c.bf16 %v1351, %v1351
        %v1370 = vpack.c.bf16 %v1353, %v1353
        %v1371 = vpack.c.bf16 %v1355, %v1355
        %v1373 = vsel %vm1147, %v1368, 0
        %vm1375 = vcmask 1043456
        %v1377 = vsel %vm1375, %v1143, 0
        %1379 = vmatprep.subr.bf16.mxu0 0
        %1380 = vmatpush1.bf16.msra.mxu0 %v1377
        %1381 = vmatprep.subr.bf16.mxu0 0
        %1382 = vmatpush1.bf16.msra.mxu0 0
        %1383 = vmatprep.subr.bf16.mxu0 0
        %1384 = vmatpush1.bf16.msra.mxu0 0
        %1385 = vmatprep.subr.bf16.mxu0 0
        %1386 = vmatpush1.bf16.msra.mxu0 0
        %1387 = vmatprep.subr.bf16.mxu0 0
        %1388 = vmatpush1.bf16.msra.mxu0 0
        %1389 = vmatprep.subr.bf16.mxu0 0
        %1390 = vmatpush1.bf16.msra.mxu0 0
        %1391 = vmatprep.subr.bf16.mxu0 0
        %1392 = vmatpush1.bf16.msra.mxu0 0
        %1393 = vmatprep.subr.bf16.mxu0 0
        %1394 = vmatpush1.bf16.msra.mxu0 0
        %1395 = vmatprep.subr.bf16.mxu0 0
        %1396 = vmatpush1.bf16.msra.mxu0 0
        %1397 = vmatprep.subr.bf16.mxu0 0
        %1398 = vmatpush1.bf16.msra.mxu0 0
        %1399 = vmatprep.subr.bf16.mxu0 0
        %1400 = vmatpush1.bf16.msra.mxu0 0
        %1401 = vmatprep.subr.bf16.mxu0 0
        %1402 = vmatpush1.bf16.msra.mxu0 0
        %1403 = vmatprep.subr.bf16.mxu0 0
        %1404 = vmatpush1.bf16.msra.mxu0 0
        %1405 = vmatprep.subr.bf16.mxu0 0
        %1406 = vmatpush1.bf16.msra.mxu0 0
        %1407 = vmatprep.subr.bf16.mxu0 0
        %1408 = vmatpush1.bf16.msra.mxu0 0
        %1409 = vmatprep.subr.bf16.mxu0 0
        %1410 = vmatpush1.bf16.msra.mxu0 0
        %1411 = vmatprep.mubr.bf16.mxu0 0
        %1412 = vmatmul.mubr.bf16.gmra.mrb[0].mxu0 %v1373
        %v1413 = vpop.f32.mrb[0].mxu0
        %v1414 = vadd.f32 0.0, %v1413
        %v1415 = vpop.f32.mrb[0].mxu0
        %v1416 = vpop.f32.mrb[0].mxu0
        %v1417 = vpop.f32.mrb[0].mxu0
        %1418 = vdwg.mxu0
        %v1420 = vsel %vm1147, %v1369, 0
        %v1423 = vsel %vm1375, %v1144, 0
        %1425 = vmatprep.subr.bf16.mxu0 0
        %1426 = vmatpush1.bf16.msra.mxu0 %v1423
        %1427 = vmatprep.subr.bf16.mxu0 0
        %1428 = vmatpush1.bf16.msra.mxu0 0
        %1429 = vmatprep.subr.bf16.mxu0 0
        %1430 = vmatpush1.bf16.msra.mxu0 0
        %1431 = vmatprep.subr.bf16.mxu0 0
        %1432 = vmatpush1.bf16.msra.mxu0 0
        %1433 = vmatprep.subr.bf16.mxu0 0
        %1434 = vmatpush1.bf16.msra.mxu0 0
        %1435 = vmatprep.subr.bf16.mxu0 0
        %1436 = vmatpush1.bf16.msra.mxu0 0
        %1437 = vmatprep.subr.bf16.mxu0 0
        %1438 = vmatpush1.bf16.msra.mxu0 0
        %1439 = vmatprep.subr.bf16.mxu0 0
        %1440 = vmatpush1.bf16.msra.mxu0 0
        %1441 = vmatprep.subr.bf16.mxu0 0
        %1442 = vmatpush1.bf16.msra.mxu0 0
        %1443 = vmatprep.subr.bf16.mxu0 0
        %1444 = vmatpush1.bf16.msra.mxu0 0
        %1445 = vmatprep.subr.bf16.mxu0 0
        %1446 = vmatpush1.bf16.msra.mxu0 0
        %1447 = vmatprep.subr.bf16.mxu0 0
        %1448 = vmatpush1.bf16.msra.mxu0 0
        %1449 = vmatprep.subr.bf16.mxu0 0
        %1450 = vmatpush1.bf16.msra.mxu0 0
        %1451 = vmatprep.subr.bf16.mxu0 0
        %1452 = vmatpush1.bf16.msra.mxu0 0
        %1453 = vmatprep.subr.bf16.mxu0 0
        %1454 = vmatpush1.bf16.msra.mxu0 0
        %1455 = vmatprep.subr.bf16.mxu0 0
        %1456 = vmatpush1.bf16.msra.mxu0 0
        %1457 = vmatprep.mubr.bf16.mxu0 0
        %1458 = vmatmul.mubr.bf16.gmra.mrb[0].mxu0 %v1420
        %v1459 = vpop.f32.mrb[0].mxu0
        %v1460 = vadd.f32 0.0, %v1459
        %v1461 = vpop.f32.mrb[0].mxu0
        %v1462 = vpop.f32.mrb[0].mxu0
        %v1463 = vpop.f32.mrb[0].mxu0
        %1464 = vdwg.mxu0
        %v1466 = vsel %vm1147, %v1370, 0
        %v1469 = vsel %vm1375, %v1145, 0
        %1471 = vmatprep.subr.bf16.mxu0 0
        %1472 = vmatpush1.bf16.msra.mxu0 %v1469
        %1473 = vmatprep.subr.bf16.mxu0 0
        %1474 = vmatpush1.bf16.msra.mxu0 0
        %1475 = vmatprep.subr.bf16.mxu0 0
        %1476 = vmatpush1.bf16.msra.mxu0 0
        %1477 = vmatprep.subr.bf16.mxu0 0
        %1478 = vmatpush1.bf16.msra.mxu0 0
        %1479 = vmatprep.subr.bf16.mxu0 0
        %1480 = vmatpush1.bf16.msra.mxu0 0
        %1481 = vmatprep.subr.bf16.mxu0 0
        %1482 = vmatpush1.bf16.msra.mxu0 0
        %1483 = vmatprep.subr.bf16.mxu0 0
        %1484 = vmatpush1.bf16.msra.mxu0 0
        %1485 = vmatprep.subr.bf16.mxu0 0
        %1486 = vmatpush1.bf16.msra.mxu0 0
        %1487 = vmatprep.subr.bf16.mxu0 0
        %1488 = vmatpush1.bf16.msra.mxu0 0
        %1489 = vmatprep.subr.bf16.mxu0 0
        %1490 = vmatpush1.bf16.msra.mxu0 0
        %1491 = vmatprep.subr.bf16.mxu0 0
        %1492 = vmatpush1.bf16.msra.mxu0 0
        %1493 = vmatprep.subr.bf16.mxu0 0
        %1494 = vmatpush1.bf16.msra.mxu0 0
        %1495 = vmatprep.subr.bf16.mxu0 0
        %1496 = vmatpush1.bf16.msra.mxu0 0
        %1497 = vmatprep.subr.bf16.mxu0 0
        %1498 = vmatpush1.bf16.msra.mxu0 0
        %1499 = vmatprep.subr.bf16.mxu0 0
        %1500 = vmatpush1.bf16.msra.mxu0 0
        %1501 = vmatprep.subr.bf16.mxu0 0
        %1502 = vmatpush1.bf16.msra.mxu0 0
        %1503 = vmatprep.mubr.bf16.mxu0 0
        %1504 = vmatmul.mubr.bf16.gmra.mrb[0].mxu0 %v1466
        %v1505 = vpop.f32.mrb[0].mxu0
        %v1506 = vadd.f32 0.0, %v1505
        %v1507 = vpop.f32.mrb[0].mxu0
        %v1508 = vpop.f32.mrb[0].mxu0
        %v1509 = vpop.f32.mrb[0].mxu0
        %1510 = vdwg.mxu0
        %v1512 = vsel %vm1147, %v1371, 0
        %v1515 = vsel %vm1375, %v1146, 0
        %1517 = vmatprep.subr.bf16.mxu0 0
        %1518 = vmatpush1.bf16.msra.mxu0 %v1515
        %1519 = vmatprep.subr.bf16.mxu0 0
        %1520 = vmatpush1.bf16.msra.mxu0 0
        %1521 = vmatprep.subr.bf16.mxu0 0
        %1522 = vmatpush1.bf16.msra.mxu0 0
        %1523 = vmatprep.subr.bf16.mxu0 0
        %1524 = vmatpush1.bf16.msra.mxu0 0
        %1525 = vmatprep.subr.bf16.mxu0 0
        %1526 = vmatpush1.bf16.msra.mxu0 0
        %1527 = vmatprep.subr.bf16.mxu0 0
        %1528 = vmatpush1.bf16.msra.mxu0 0
        %1529 = vmatprep.subr.bf16.mxu0 0
        %1530 = vmatpush1.bf16.msra.mxu0 0
        %1531 = vmatprep.subr.bf16.mxu0 0
        %1532 = vmatpush1.bf16.msra.mxu0 0
        %1533 = vmatprep.subr.bf16.mxu0 0
        %1534 = vmatpush1.bf16.msra.mxu0 0
        %1535 = vmatprep.subr.bf16.mxu0 0
        %1536 = vmatpush1.bf16.msra.mxu0 0
        %1537 = vmatprep.subr.bf16.mxu0 0
        %1538 = vmatpush1.bf16.msra.mxu0 0
        %1539 = vmatprep.subr.bf16.mxu0 0
        %1540 = vmatpush1.bf16.msra.mxu0 0
        %1541 = vmatprep.subr.bf16.mxu0 0
        %1542 = vmatpush1.bf16.msra.mxu0 0
        %1543 = vmatprep.subr.bf16.mxu0 0
        %1544 = vmatpush1.bf16.msra.mxu0 0
        %1545 = vmatprep.subr.bf16.mxu0 0
        %1546 = vmatpush1.bf16.msra.mxu0 0
        %1547 = vmatprep.subr.bf16.mxu0 0
        %1548 = vmatpush1.bf16.msra.mxu0 0
        %1549 = vmatprep.mubr.bf16.mxu0 0
        %1550 = vmatmul.mubr.bf16.gmra.mrb[0].mxu0 %v1512
        %v1551 = vpop.f32.mrb[0].mxu0
        %v1552 = vadd.f32 0.0, %v1551
        %v1553 = vpop.f32.mrb[0].mxu0
        %v1554 = vpop.f32.mrb[0].mxu0
        %v1555 = vpop.f32.mrb[0].mxu0
        %1556 = vdwg.mxu0
        %v1557 = vrcp.pop %v1358
        %v1558 = vrcp.pop %v1361
        %v1559 = vrcp.pop %v1364
        %v1560 = vrcp.pop %v1367
        %v1561 = vmul.f32 %v1414, %v1557
        %v1562 = vmul.f32 %v1460, %v1558
        %v1563 = vmul.f32 %v1506, %v1559
        %v1564 = vmul.f32 %v1552, %v1560
        %v1565 = vcombine.low %v1561, %v1563
        %v1566 = vcombine.high %v1561, %v1563
        %v1568 = vunpack.c.l.s4 1983009808
        %v1569 = vunpack.c.0.s8 %v1568
        %v1570 = vlaneseq
        %v1571 = vshrl.u32 %v1570, 7
        %v1572 = vsub.s32 %v1569, %v1571
        %v1573 = vrot.slane %v1565, %v1572
        %v1575 = vunpack.c.l.s4 1983009808
        %v1576 = vunpack.c.0.s8 %v1575
        %v1577 = vlaneseq
        %v1578 = vshrl.u32 %v1577, 7
        %v1579 = vsub.s32 %v1576, %v1578
        %v1580 = vrot.slane %v1566, %v1579
        %v1581 = vcombine.low %v1562, %v1564
        %v1582 = vcombine.high %v1562, %v1564
        %v1584 = vunpack.c.l.s4 1983009808
        %v1585 = vunpack.c.0.s8 %v1584
        %v1586 = vlaneseq
        %v1587 = vshrl.u32 %v1586, 7
        %v1588 = vsub.s32 %v1585, %v1587
        %v1589 = vrot.slane %v1581, %v1588
        %v1591 = vunpack.c.l.s4 1983009808
        %v1592 = vunpack.c.0.s8 %v1591
        %v1593 = vlaneseq
        %v1594 = vshrl.u32 %v1593, 7
        %v1595 = vsub.s32 %v1592, %v1594
        %v1596 = vrot.slane %v1582, %v1595
        %v1597 = vcombine.low %v1573, %v1589
        %v1598 = vcombine.high %v1573, %v1589
        %v1600 = vunpack.c.l.s4 1934713408
        %v1601 = vunpack.c.0.s8 %v1600
        %v1602 = vlaneseq
        %v1603 = vshrl.u32 %v1602, 7
        %v1604 = vsub.s32 %v1601, %v1603
        %v1605 = vrot.slane %v1597, %v1604
        %v1607 = vunpack.c.l.s4 1934713408
        %v1608 = vunpack.c.0.s8 %v1607
        %v1609 = vlaneseq
        %v1610 = vshrl.u32 %v1609, 7
        %v1611 = vsub.s32 %v1608, %v1610
        %v1612 = vrot.slane %v1598, %v1611
        %v1613 = vcombine.low %v1580, %v1596
        %v1614 = vcombine.high %v1580, %v1596
        %v1616 = vunpack.c.l.s4 1934713408
        %v1617 = vunpack.c.0.s8 %v1616
        %v1618 = vlaneseq
        %v1619 = vshrl.u32 %v1618, 7
        %v1620 = vsub.s32 %v1617, %v1619
        %v1621 = vrot.slane %v1613, %v1620
        %v1623 = vunpack.c.l.s4 1934713408
        %v1624 = vunpack.c.0.s8 %v1623
        %v1625 = vlaneseq
        %v1626 = vshrl.u32 %v1625, 7
        %v1627 = vsub.s32 %v1624, %v1626
        %v1628 = vrot.slane %v1614, %v1627
        %v1629 = vcombine.high %v1605, 0.0
        %v1630 = vcombine.high %v1612, 0.0
        %v1631 = vcombine.high %v1621, 0.0
        %v1632 = vcombine.high %v1628, 0.0
        %v1633 = vcombine.low %v1605, %v1612
        %v1635 = vunpack.c.l.s4 1983009808
        %v1636 = vunpack.c.0.s8 %v1635
        %v1637 = vlaneseq
        %v1638 = vshrl.u32 %v1637, 7
        %v1639 = vsub.s32 %v1636, %v1638
        %v1640 = vrot.slane %v1633, %v1639
        %v1641 = vcombine.low %v1629, %v1630
        %v1643 = vunpack.c.l.s4 1983009808
        %v1644 = vunpack.c.0.s8 %v1643
        %v1645 = vlaneseq
        %v1646 = vshrl.u32 %v1645, 7
        %v1647 = vsub.s32 %v1644, %v1646
        %v1648 = vrot.slane %v1641, %v1647
        %v1649 = vcombine.low %v1621, %v1628
        %v1651 = vunpack.c.l.s4 1983009808
        %v1652 = vunpack.c.0.s8 %v1651
        %v1653 = vlaneseq
        %v1654 = vshrl.u32 %v1653, 7
        %v1655 = vsub.s32 %v1652, %v1654
        %v1656 = vrot.slane %v1649, %v1655
        %v1657 = vcombine.low %v1631, %v1632
        %v1659 = vunpack.c.l.s4 1983009808
        %v1660 = vunpack.c.0.s8 %v1659
        %v1661 = vlaneseq
        %v1662 = vshrl.u32 %v1661, 7
        %v1663 = vsub.s32 %v1660, %v1662
        %v1664 = vrot.slane %v1657, %v1663
        %v1665 = vcombine.low %v1640, %v1648
        %v1666 = vcombine.high %v1640, %v1648
        %v1668 = vunpack.c.l.s4 1934713408
        %v1669 = vunpack.c.0.s8 %v1668
        %v1670 = vlaneseq
        %v1671 = vshrl.u32 %v1670, 7
        %v1672 = vsub.s32 %v1669, %v1671
        %v1673 = vrot.slane %v1665, %v1672
        %v1675 = vunpack.c.l.s4 1934713408
        %v1676 = vunpack.c.0.s8 %v1675
        %v1677 = vlaneseq
        %v1678 = vshrl.u32 %v1677, 7
        %v1679 = vsub.s32 %v1676, %v1678
        %v1680 = vrot.slane %v1666, %v1679
        %v1681 = vcombine.low %v1656, %v1664
        %v1682 = vcombine.high %v1656, %v1664
        %v1684 = vunpack.c.l.s4 1934713408
        %v1685 = vunpack.c.0.s8 %v1684
        %v1686 = vlaneseq
        %v1687 = vshrl.u32 %v1686, 7
        %v1688 = vsub.s32 %v1685, %v1687
        %v1689 = vrot.slane %v1681, %v1688
        %v1691 = vunpack.c.l.s4 1934713408
        %v1692 = vunpack.c.0.s8 %v1691
        %v1693 = vlaneseq
        %v1694 = vshrl.u32 %v1693, 7
        %v1695 = vsub.s32 %v1692, %v1694
        %v1696 = vrot.slane %v1682, %v1695
        %v1697 = vcombine.low %v1673, %v1689
        %v1698 = vcombine.high %v1673, %v1689
        %v1699 = vcombine.low %v1680, %v1696
        %v1700 = vcombine.high %v1680, %v1696
        %1702 = vrot.lane.b32.xlu0 %v1698, 8
        %v1703 = vpop.permute.xlu0 %1702
        %1706 = vrot.lane.b32.xlu0 %v1699, 16
        %v1707 = vpop.permute.xlu0 %1706
        %1710 = vrot.lane.b32.xlu0 %v1700, 24
        %v1711 = vpop.permute.xlu0 %1710
        %v1713 = vsel %vm1147, %v1697, %v1703
        %vm1714 = vcmask 130048
        %v1715 = vsel %vm1714, %v1713, %v1707
        %vm1716 = vcmask 195584
        %v1717 = vsel %vm1716, %v1715, %v1711
        %v1718 = vpack.c.bf16 %v1717, %v1717
        %v1719 = vld [vmem:[#allocation14] sm:$0xf]
        %v1720 = vld [vmem:[#allocation14 + $0x4] sm:$0xf]
        %v1721 = vld [vmem:[#allocation14 + $0x8] sm:$0xf]
        %v1722 = vld [vmem:[#allocation14 + $0xc] sm:$0xf]
        %v1723 = vld [vmem:[#allocation15] sm:$0x1]
        %v1725 = vlaneseq
        %v1726 = vshrl.u32 %v1725, 7
        %v1727 = vsub.s32 0, %v1726
        %v1728 = vrot.slane %v1723, %v1727
        %v1734 = vunpack.c.l.b16 %v1719
        %v1735 = vunpack.c.l.b16 %v1720
        %v1736 = vunpack.c.l.b16 %v1721
        %v1737 = vunpack.c.l.b16 %v1722
        %v1738 = vpack.c.b16 %v1735, %v1734
        %v1739 = vpack.c.b16 %v1737, %v1736
        %v1743 = vsel %vm944, %v1718, 0
        %1745 = vmatprep.subr.bf16.mxu0 0
        %1746 = vmatpush1.bf16.msra.mxu0 %v1738
        %1747 = vmatprep.subr.bf16.mxu0 0
        %1748 = vmatpush1.bf16.msra.mxu0 %v1739
        %1749 = vmatprep.subr.bf16.mxu0 0
        %1750 = vmatpush1.bf16.msra.mxu0 0
        %1751 = vmatprep.subr.bf16.mxu0 0
        %1752 = vmatpush1.bf16.msra.mxu0 0
        %1753 = vmatprep.subr.bf16.mxu0 0
        %1754 = vmatpush1.bf16.msra.mxu0 0
        %1755 = vmatprep.subr.bf16.mxu0 0
        %1756 = vmatpush1.bf16.msra.mxu0 0
        %1757 = vmatprep.subr.bf16.mxu0 0
        %1758 = vmatpush1.bf16.msra.mxu0 0
        %1759 = vmatprep.subr.bf16.mxu0 0
        %1760 = vmatpush1.bf16.msra.mxu0 0
        %1761 = vmatprep.subr.bf16.mxu0 0
        %1762 = vmatpush1.bf16.msra.mxu0 0
        %1763 = vmatprep.subr.bf16.mxu0 0
        %1764 = vmatpush1.bf16.msra.mxu0 0
        %1765 = vmatprep.subr.bf16.mxu0 0
        %1766 = vmatpush1.bf16.msra.mxu0 0
        %1767 = vmatprep.subr.bf16.mxu0 0
        %1768 = vmatpush1.bf16.msra.mxu0 0
        %1769 = vmatprep.subr.bf16.mxu0 0
        %1770 = vmatpush1.bf16.msra.mxu0 0
        %1771 = vmatprep.subr.bf16.mxu0 0
        %1772 = vmatpush1.bf16.msra.mxu0 0
        %1773 = vmatprep.subr.bf16.mxu0 0
        %1774 = vmatpush1.bf16.msra.mxu0 0
        %1775 = vmatprep.subr.bf16.mxu0 0
        %1776 = vmatpush1.bf16.msra.mxu0 0
        %1777 = vmatprep.mubr.bf16.mxu0 0
        %1778 = vmatmul.mubr.bf16.gmra.mrb[0].mxu0 %v1743
        %v1779 = vpop.f32.mrb[0].mxu0
        %v1780 = vadd.f32 %v1728, %v1779
        %v1781 = vpop.f32.mrb[0].mxu0
        %v1782 = vpop.f32.mrb[0].mxu0
        %v1783 = vpop.f32.mrb[0].mxu0
        %1784 = vdwg.mxu0
        %v1785 = vunpack.c.l.bf16 %v920
        %v1786 = vadd.f32 %v1780, %v1785
        %v1787 = vsel %vm944, %v1786, 0.0
        %1788 = vadd.xlane.f32.xlu0 %v1787
        %v1789 = vpop.xlane.xlu0 %1788
        %v1790 = vrcp.pop 32.0
        %v1791 = vmul.f32 %v1789, %v1790
        %v1792 = vsub.f32 %v1786, %v1791
        %v1793 = vmul.f32 %v1792, %v1792
        %v1794 = vsel %vm944, %v1793, 0.0
        %1795 = vadd.xlane.f32.xlu0 %v1794
        %v1796 = vpop.xlane.xlu0 %1795
        %v1797 = vmul.f32 %v1796, %v1790
        %v1798 = vld [vmem:[#allocation17] sm:$0x1]
        %v1799 = vadd.f32 %v1797, 1e-12
        %v1800 = vrsqrt.pop %v1799
        %v1801 = vmul.f32 %v1792, %v1800
        %v1803 = vlaneseq
        %v1804 = vshrl.u32 %v1803, 7
        %v1805 = vsub.s32 0, %v1804
        %v1806 = vrot.slane %v1798, %v1805
        %v1808 = vmul.f32 %v1806, %v1801
        %v1809 = vld [vmem:[#allocation18] sm:$0x1]
        %v1811 = vlaneseq
        %v1812 = vshrl.u32 %v1811, 7
        %v1813 = vsub.s32 0, %v1812
        %v1814 = vrot.slane %v1809, %v1813
        %v1816 = vadd.f32 %v1808, %v1814
        %1817 = vst.msk [vmem:[%s534] sm:$0xff] %vm944, %v1816
        %s1818 = sand.u32 %s278, 1
        %s1819 = scalar_lea.sflag [#allocation5], %s1818
        %s1820 = sand.u32 %s278, 1
        %s1821 = smul.addr %s1820, 8
        %s1822 = scalar_lea.vmem [#allocation20], %s1821
        // Predicated region
        $region105: #{tpu_custom_call.1} parent=59 // pred_check
          %p1823 = pneg %p288
        $region106: #{tpu_custom_call.1} parent=59 // pred_check_branch
          %1825 = sbr.rel (%p1823) target = $region108
        $region107: #{tpu_custom_call.1} parent=59 // pred_region
          %s1827 = ssub.s32 128, 128
          %1828 = vsyncadd %s1819, %s1827
          %s1829 = sadd.s32 %s39, %s38
          %s1830 = smul.addr %s1829, 128
          %s1831 = scalar_lea.hbm %s10, %s1830
          %s1833 = sshll.u32 %s1822, 4
          %s1834 = int_to_ptr.vmem [resolvable:$true] %s1833
          %1836 = dma.vmem_to_hbm [thread:$0]  %s1834, 128, %s1831, %s1819
        $region108: #{tpu_custom_call.1} parent=59 // pred_fallthru
          _
      $region60: #{tpu_custom_call.1} parent=5 // pred_fallthru
        _
      %p1837 = scmp.le.s32.totalorder 2, %s29
      // Predicated region
      $region109: #{tpu_custom_call.1} parent=5 // pred_check
        %p1838 = pneg %p1837
      $region110: #{tpu_custom_call.1} parent=5 // pred_check_branch
        %1840 = sbr.rel (%p1838) target = $region112
      $region111: #{tpu_custom_call.1} parent=5 // pred_region
        %s1841 = ssub.s32 %s29, 2
        // Predicated region
        $region113: #{tpu_custom_call.1} parent=111 // pred_check
          %p1842 = pneg %p294
        $region114: #{tpu_custom_call.1} parent=111 // pred_check_branch
          %1844 = sbr.rel (%p1842) target = $region116
        $region115: #{tpu_custom_call.1} parent=111 // pred_region
          %s1845 = sand.u32 %s279, 1
          %s1846 = scalar_lea.sflag [#allocation5], %s1845
          %s1847 = sand.u32 %s279, 1
          %s1848 = smul.addr %s1847, 8
          %s1849 = scalar_lea.vmem [#allocation20], %s1848
          %1850 = dma.done %s1846, 128
        $region116: #{tpu_custom_call.1} parent=111 // pred_fallthru
          _
      $region112: #{tpu_custom_call.1} parent=5 // pred_fallthru
        _
    $region6: #{tpu_custom_call.1} parent=1 // loop_footer
      %s33 = sadd.s32 1, %s29
    $region7: #{tpu_custom_call.1} parent=1 // loop_footer_branch
      %28 = sbr.rel target = $region3
    $region8: #{tpu_custom_call.1} parent=1 // loop_exit
      _
    %1851 = vsyncpa [#allocation4], 1
    %s1852 = scalar_lea.sflag [#allocation4], 1
    %1853 = vsyncpa %s1852, 1
    %1854 = vsyncpa [#allocation7], 1
    %s1855 = scalar_lea.sflag [#allocation7], 1
    %1856 = vsyncpa %s1855, 1
    %1857 = vsyncpa [#allocation10], 1
    %1858 = vsyncpa [#allocation13], 1
    %1859 = vsyncpa [#allocation16], 1
    %1860 = vsyncpa [#allocation19], 1
    %1861 = vsyncpa [#allocation5], 1
    %s1862 = scalar_lea.sflag [#allocation5], 1
    %1863 = vsyncpa %s1862, 1

</llo_original>
